<compile_context>
chip_gen: v5e
topology: v5e:2x2
jax: 0.10.0
libtpu: 0.0.40
codegen_flags: <defaults>
</compile_context>

<pallas_src>
import math

import jax
import jax.numpy as jnp
from jax.experimental import pallas as pl
from jax.experimental.pallas import tpu as pltpu


def _round_up(n, m):
    return ((n + m - 1) // m) * m


# ---------------------------------------------------------------------------
# Parameter init (deterministic, PyTorch-default-style uniform bounds).
# Logical layout: fc/out weights transposed to (in, out); GRU gate matrices
# concatenated as (in, 3H)/(H, 3H), torch gate order (r, z, n); b_hh folded
# into the input-side bias for the r/z gates; b_hn kept separate.
# ---------------------------------------------------------------------------
def _uniform(key, shape, fan_in):
    bound = 1.0 / math.sqrt(fan_in)
    return jax.random.uniform(key, shape, jnp.float32, -bound, bound)


def init_params(key, state_dim, obs_dim, output_size, config, weight_factor=1):
    input_size = 2 * obs_dim + state_dim * obs_dim + state_dim
    hidden = output_size * config["hidden_size_mult"]
    FC1_mult, FC2_mult = config["FC1_mult"], config["FC2_mult"]

    params = {"fc1": [], "gru": [], "fc2": []}

    def nxt():
        nonlocal key
        key, sub = jax.random.split(key)
        return sub

    def linear_params(in_f, out_f):
        w = _uniform(nxt(), (out_f, in_f), in_f) * weight_factor   # torch Linear layout
        b = _uniform(nxt(), (out_f,), in_f) * weight_factor
        return jnp.asarray(w.T), b                                 # (in, out), (out,)

    for i in range(config["nb_layer_FC1"]):
        in_f = input_size if i == 0 else input_size * FC1_mult
        params["fc1"].append(linear_params(in_f, input_size * FC1_mult))

    gru_in = input_size * FC1_mult
    for layer in range(config["nbr_GRU"]):
        in_f = gru_in if layer == 0 else hidden
        w_ih = _uniform(nxt(), (3 * hidden, in_f), hidden)
        w_hh = _uniform(nxt(), (3 * hidden, hidden), hidden)
        b_ih = _uniform(nxt(), (3 * hidden,), hidden)
        b_hh = _uniform(nxt(), (3 * hidden,), hidden)
        wih_cat = jnp.asarray(w_ih.T)                 # (in_f, 3H), cols [r | z | n]
        whh_cat = jnp.asarray(w_hh.T)                 # (H, 3H)
        bic = b_ih + jnp.concatenate(
            [b_hh[:2 * hidden], jnp.zeros((hidden,), jnp.float32)])
        bhn = b_hh[2 * hidden:]
        params["gru"].append((wih_cat, whh_cat, bic, bhn))

    for i in range(config["nb_layer_FC2"]):
        in_f = hidden if i == 0 else hidden * FC2_mult
        params["fc2"].append(linear_params(in_f, hidden * FC2_mult))

    params["out"] = linear_params(hidden * FC2_mult, output_size)
    return params


# ---------------------------------------------------------------------------
# Pack all parameters into two (8,128)-tile-aligned VMEM slabs + a static plan.
# ---------------------------------------------------------------------------
def pack_params(params, input_size):
    f32 = jnp.float32
    H = params["gru"][0][1].shape[0]
    Hp = _round_up(H, 128)
    Ww = 3 * Hp

    def padw(n):
        return _round_up(max(int(n), 1), 128)

    def pad2(a, rows, cols):
        a = jnp.asarray(a, f32)
        if a.ndim == 1:
            a = a.reshape(1, -1)
        return jnp.zeros((rows, cols), f32).at[:a.shape[0], :a.shape[1]].set(a)

    def pad_gates(m, rows):
        """(k, 3H) -> (rows, 3*Hp): gate g placed at lanes [g*Hp, g*Hp+H)."""
        m = jnp.asarray(m, f32)
        if m.ndim == 1:
            m = m.reshape(1, -1)
        out = jnp.zeros((rows, Ww), f32)
        for g in range(3):
            out = out.at[:m.shape[0], g * Hp:g * Hp + H].set(m[:, g * H:(g + 1) * H])
        return out

    narrow_entries, wide_entries = [], []
    n_off, w_off = 0, 0

    def add_narrow(arr):
        nonlocal n_off
        off = n_off
        narrow_entries.append(arr)
        n_off += arr.shape[0]
        return off

    def add_wide(arr):
        nonlocal w_off
        off = w_off
        wide_entries.append(arr)
        w_off += arr.shape[0]
        return off

    plan = {"Hp": Hp, "fc1": [], "gru": [], "fc2": [], "out": None,
            "in_pad": padw(input_size),
            "out_size": int(params["out"][0].shape[1])}

    a_w = plan["in_pad"]                 # padded lane width of the current activation

    def add_linear(w, b, dst):
        nonlocal a_w
        kp, np_ = a_w, padw(w.shape[1])
        w_o = add_narrow(pad2(w, kp, np_))
        b_o = add_narrow(pad2(b, 8, np_))           # bias in row 0 of an 8-row block
        dst.append((w_o, kp, np_, b_o))
        a_w = np_

    for (w, b) in params["fc1"]:
        add_linear(w, b, plan["fc1"])

    for (wih, whh, bic, bhn) in params["gru"]:
        kp = a_w
        wih_o = add_wide(pad_gates(wih, kp))        # (kp, 3Hp), zero-padded rows/cols
        whh_o = add_wide(pad_gates(whh, Hp))        # (Hp, 3Hp)
        bic_o = add_wide(pad_gates(bic, 8))         # row 0 holds b_ih (+ b_hh for r,z)
        bhn_o = add_narrow(pad2(bhn, 8, Hp))        # row 0 holds b_hn
        plan["gru"].append((wih_o, kp, whh_o, bic_o, bhn_o))
        a_w = Hp

    for (w, b) in params["fc2"]:
        add_linear(w, b, plan["fc2"])

    out_list = []
    add_linear(params["out"][0], params["out"][1], out_list)
    plan["out"] = out_list[0]
    plan["out_pad"] = plan["out"][2]

    Wn = max(a.shape[1] for a in narrow_entries)
    narrow = jnp.concatenate([pad2(a, a.shape[0], Wn) for a in narrow_entries], axis=0)
    wide = (jnp.concatenate(wide_entries, axis=0)
            if wide_entries else jnp.zeros((8, Ww), jnp.float32))
    return plan, narrow, wide


# ---------------------------------------------------------------------------
# Fused forward kernel (static plan closed over; everything VMEM/vreg resident).
# ---------------------------------------------------------------------------
def _build_kernel(plan, S, Bp):
    Hp = plan["Hp"]
    f32 = jnp.float32

    def linear(h, n_ref, entry, relu):
        w_off, kp, np_, b_off = entry
        w = n_ref[w_off:w_off + kp, 0:np_]
        b = n_ref[b_off:b_off + 1, 0:np_]
        y = jnp.dot(h, w, preferred_element_type=f32) + b
        return jnp.maximum(y, 0.0) if relu else y

    def kernel(x_ref, n_ref, w_ref, o_ref, acc_ref):
        h = x_ref[...]                                           # (S*Bp, in_pad)

        # ---- fc1 (Linear + ReLU) on all S*Bp rows at once ----
        for entry in plan["fc1"]:
            h = linear(h, n_ref, entry, relu=True)

        # ---- stacked GRU layers, zero initial hidden state ----
        for (wih_o, kp, whh_o, bic_o, bhn_o) in plan["gru"]:
            wih = w_ref[wih_o:wih_o + kp, :]                     # (kp, 3Hp)
            whh = w_ref[whh_o:whh_o + Hp, :]                     # (Hp, 3Hp)
            bic = w_ref[bic_o:bic_o + 1, :]                      # (1, 3Hp)
            bhn = n_ref[bhn_o:bhn_o + 1, 0:Hp]                   # (1, Hp)

            # Input-side projection hoisted out of the recurrence; kept as a value
            # (vreg resident) and sliced with static, tile-aligned indices.
            gi_all = jnp.dot(h, wih, preferred_element_type=f32) + bic   # (S*Bp, 3Hp)
            bhn_b = jnp.broadcast_to(bhn, (Bp, Hp))              # hoisted out of t-loop

            # t = 0 specialized: h0 == 0 -> skip the recurrent matmul.
            gi = gi_all[0:Bp, :]
            r = jax.nn.sigmoid(gi[:, 0:Hp])
            z = jax.nn.sigmoid(gi[:, Hp:2 * Hp])
            n = jnp.tanh(gi[:, 2 * Hp:3 * Hp] + r * bhn_b)
            h_t = (1.0 - z) * n
            acc_ref[0:Bp, :] = h_t                               # whole-tile store

            for t in range(1, S):                                # S small -> full unroll
                gi = gi_all[t * Bp:(t + 1) * Bp, :]
                gh = jnp.dot(h_t, whh, preferred_element_type=f32)       # (Bp, 3Hp)
                r = jax.nn.sigmoid(gi[:, 0:Hp] + gh[:, 0:Hp])
                z = jax.nn.sigmoid(gi[:, Hp:2 * Hp] + gh[:, Hp:2 * Hp])
                n = jnp.tanh(gi[:, 2 * Hp:3 * Hp] + r * (gh[:, 2 * Hp:3 * Hp] + bhn_b))
                h_t = (1.0 - z) * n + z * h_t
                acc_ref[t * Bp:(t + 1) * Bp, :] = h_t            # (8,128)-aligned store

            h = acc_ref[...]                                     # (S*Bp, Hp) bulk read

        # ---- fc2 (Linear + ReLU) + output layer (lane-dense store) ----
        for entry in plan["fc2"]:
            h = linear(h, n_ref, entry, relu=True)
        o_ref[...] = linear(h, n_ref, plan["out"], relu=False)

    return kernel


def _estimate_cost(plan, S, Bp, x_bytes, n_bytes, w_bytes, o_bytes):
    R = S * Bp
    Hp = plan["Hp"]
    flops = 0
    for (_, kp, np_, _) in plan["fc1"] + plan["fc2"] + [plan["out"]]:
        flops += 2 * R * kp * np_ + 2 * R * np_
    trans = 0
    for (_, kp, _, _, _) in plan["gru"]:
        flops += 2 * R * kp * 3 * Hp                 # hoisted input projection
        flops += 2 * (S - 1) * Bp * Hp * 3 * Hp      # recurrent matmuls
        flops += 12 * R * Hp                         # gate elementwise math
        trans += 3 * R * Hp                          # sigmoid / tanh
    return pl.CostEstimate(flops=int(flops), transcendentals=int(trans),
                           bytes_accessed=int(x_bytes + n_bytes + w_bytes + o_bytes))


def make_forward(plan):
    """Build a jitted forward fn closing over the static packing plan."""
    in_pad, out_pad, out_size, Hp = (plan["in_pad"], plan["out_pad"],
                                     plan["out_size"], plan["Hp"])

    def fwd(narrow, wide, x):
        S, B, F = x.shape
        Bp = _round_up(max(B, 8), 8)                 # sublane-aligned batch padding
        R = S * Bp

        xp = jnp.zeros((S, Bp, in_pad), jnp.float32).at[:, :B, :F].set(x)
        xp = xp.reshape(R, in_pad)

        kernel = _build_kernel(plan, S, Bp)
        cost = _estimate_cost(plan, S, Bp,
                              x_bytes=4 * R * in_pad,
                              n_bytes=4 * narrow.size,
                              w_bytes=4 * wide.size,
                              o_bytes=4 * R * out_pad)
        y = pl.pallas_call(
            kernel,
            out_shape=jax.ShapeDtypeStruct((R, out_pad), jnp.float32),
            in_specs=[pl.BlockSpec(memory_space=pltpu.MemorySpace.VMEM)] * 3,
            out_specs=pl.BlockSpec(memory_space=pltpu.MemorySpace.VMEM),
            scratch_shapes=[pltpu.VMEM((R, Hp), jnp.float32)],   # per-layer hidden seq
            cost_estimate=cost,
        )(xp, narrow, wide)
        # Padded batch rows / padded output lanes carry only harmless elementwise
        # garbage; slice them off here.
        return y.reshape(S, Bp, out_pad)[:, :B, :out_size]

    return jax.jit(fwd)


if __name__ == "__main__":
    state_dim, obs_dim, output_size = 4, 2, 4
    config = dict(nb_layer_FC1=1, FC1_mult=2, nbr_GRU=2,
                  hidden_size_mult=8, nb_layer_FC2=1, FC2_mult=2)

    key = jax.random.PRNGKey(0)
    pkey, xkey = jax.random.split(key)
    params = init_params(pkey, state_dim, obs_dim, output_size, config)

    input_size = 2 * obs_dim + state_dim * obs_dim + state_dim  # 16
    plan, narrow_slab, wide_slab = pack_params(params, input_size)

    seq, batch = 8, 2
    x = jax.random.normal(xkey, (seq, batch, input_size), jnp.float32)

    fwd = make_forward(plan)
    out = jax.block_until_ready(fwd(narrow_slab, wide_slab, x))
    assert out.shape == (seq, batch, output_size)
    assert bool(jnp.all(jnp.isfinite(out)))
    print("KERNEL_OK")
</pallas_src>

<mosaic_0001>
module attributes {stable_mosaic.version = 11 : i64} {
  func.func @kernel(%arg0: memref<64x128xf32, #tpu.memory_space<vmem>>, %arg1: memref<424x128xf32, #tpu.memory_space<vmem>>, %arg2: memref<528x384xf32, #tpu.memory_space<vmem>>, %arg3: memref<64x128xf32, #tpu.memory_space<vmem>>, %arg4: memref<64x128xf32, #tpu.memory_space<vmem>>) attributes {dimension_semantics = [], scalar_prefetch = 0 : i64, scratch_operands = 1 : i64, tpu.core_type = #tpu.core_type<tc>} {
    %c0 = arith.constant 0 : index
    %c0_0 = arith.constant 0 : index
    %0 = vector.load %arg0[%c0, %c0_0] : memref<64x128xf32, #tpu.memory_space<vmem>>, vector<64x128xf32>
    %c0_1 = arith.constant 0 : index
    %c0_2 = arith.constant 0 : index
    %1 = vector.load %arg1[%c0_1, %c0_2] : memref<424x128xf32, #tpu.memory_space<vmem>>, vector<128x128xf32>
    %c128 = arith.constant 128 : index
    %c0_3 = arith.constant 0 : index
    %2 = vector.load %arg1[%c128, %c0_3] : memref<424x128xf32, #tpu.memory_space<vmem>>, vector<1x128xf32>
    %cst = arith.constant dense<0.000000e+00> : vector<64x128xf32>
    %3 = tpu.matmul %0, %1, %cst {dimension_numbers = #tpu.dot_dimension_numbers<[1], [0], [0], [1], [0, 0, 1, 1], [], []>} : vector<64x128xf32>, vector<128x128xf32>, vector<64x128xf32> -> vector<64x128xf32>
    %4 = vector.broadcast %2 : vector<1x128xf32> to vector<64x128xf32>
    %5 = arith.addf %3, %4 : vector<64x128xf32>
    %cst_4 = arith.constant 0.000000e+00 : f32
    %6 = vector.broadcast %cst_4 : f32 to vector<64x128xf32>
    %7 = arith.maximumf %5, %6 : vector<64x128xf32>
    %c0_5 = arith.constant 0 : index
    %c0_6 = arith.constant 0 : index
    %8 = vector.load %arg2[%c0_5, %c0_6] : memref<528x384xf32, #tpu.memory_space<vmem>>, vector<128x384xf32>
    %c128_7 = arith.constant 128 : index
    %c0_8 = arith.constant 0 : index
    %9 = vector.load %arg2[%c128_7, %c0_8] : memref<528x384xf32, #tpu.memory_space<vmem>>, vector<128x384xf32>
    %c256 = arith.constant 256 : index
    %c0_9 = arith.constant 0 : index
    %10 = vector.load %arg2[%c256, %c0_9] : memref<528x384xf32, #tpu.memory_space<vmem>>, vector<1x384xf32>
    %c136 = arith.constant 136 : index
    %c0_10 = arith.constant 0 : index
    %11 = vector.load %arg1[%c136, %c0_10] : memref<424x128xf32, #tpu.memory_space<vmem>>, vector<1x128xf32>
    %cst_11 = arith.constant dense<0.000000e+00> : vector<64x384xf32>
    %12 = tpu.matmul %7, %8, %cst_11 {dimension_numbers = #tpu.dot_dimension_numbers<[1], [0], [0], [1], [0, 0, 1, 1], [], []>} : vector<64x128xf32>, vector<128x384xf32>, vector<64x384xf32> -> vector<64x384xf32>
    %13 = vector.broadcast %10 : vector<1x384xf32> to vector<64x384xf32>
    %14 = arith.addf %12, %13 : vector<64x384xf32>
    %15 = vector.shape_cast %11 : vector<1x128xf32> to vector<1x128xf32>
    %16 = vector.broadcast %15 : vector<1x128xf32> to vector<8x128xf32>
    %17 = vector.extract_strided_slice %14 {offsets = [0, 0], sizes = [8, 384], strides = [1, 1]} : vector<64x384xf32> to vector<8x384xf32>
    %18 = vector.extract_strided_slice %17 {offsets = [0, 0], sizes = [8, 128], strides = [1, 1]} : vector<8x384xf32> to vector<8x128xf32>
    %19 = arith.negf %18 : vector<8x128xf32>
    %20 = math.exp %19 : vector<8x128xf32>
    %cst_12 = arith.constant 1.000000e+00 : f32
    %21 = vector.broadcast %cst_12 : f32 to vector<8x128xf32>
    %22 = arith.addf %21, %20 : vector<8x128xf32>
    %23 = arith.divf %21, %22 : vector<8x128xf32>
    %24 = vector.extract_strided_slice %17 {offsets = [0, 128], sizes = [8, 128], strides = [1, 1]} : vector<8x384xf32> to vector<8x128xf32>
    %25 = arith.negf %24 : vector<8x128xf32>
    %26 = math.exp %25 : vector<8x128xf32>
    %cst_13 = arith.constant 1.000000e+00 : f32
    %27 = vector.broadcast %cst_13 : f32 to vector<8x128xf32>
    %28 = arith.addf %27, %26 : vector<8x128xf32>
    %29 = arith.divf %27, %28 : vector<8x128xf32>
    %30 = vector.extract_strided_slice %17 {offsets = [0, 256], sizes = [8, 128], strides = [1, 1]} : vector<8x384xf32> to vector<8x128xf32>
    %31 = arith.mulf %23, %16 : vector<8x128xf32>
    %32 = arith.addf %30, %31 : vector<8x128xf32>
    %33 = math.tanh %32 : vector<8x128xf32>
    %cst_14 = arith.constant 1.000000e+00 : f32
    %34 = vector.broadcast %cst_14 : f32 to vector<8x128xf32>
    %35 = arith.subf %34, %29 : vector<8x128xf32>
    %36 = arith.mulf %35, %33 : vector<8x128xf32>
    %c0_15 = arith.constant 0 : index
    %c0_16 = arith.constant 0 : index
    %37 = vector.load %arg4[%c0_15, %c0_16] : memref<64x128xf32, #tpu.memory_space<vmem>>, vector<8x128xf32>
    tpu.vector_store %arg4[%c0_15, %c0_16], %36 {strides = array<i32>} : memref<64x128xf32, #tpu.memory_space<vmem>>, vector<8x128xf32>,
    %38 = vector.extract_strided_slice %14 {offsets = [8, 0], sizes = [8, 384], strides = [1, 1]} : vector<64x384xf32> to vector<8x384xf32>
    %cst_17 = arith.constant dense<0.000000e+00> : vector<8x384xf32>
    %39 = tpu.matmul %36, %9, %cst_17 {dimension_numbers = #tpu.dot_dimension_numbers<[1], [0], [0], [1], [0, 0, 1, 1], [], []>} : vector<8x128xf32>, vector<128x384xf32>, vector<8x384xf32> -> vector<8x384xf32>
    %40 = vector.extract_strided_slice %38 {offsets = [0, 0], sizes = [8, 128], strides = [1, 1]} : vector<8x384xf32> to vector<8x128xf32>
    %41 = vector.extract_strided_slice %39 {offsets = [0, 0], sizes = [8, 128], strides = [1, 1]} : vector<8x384xf32> to vector<8x128xf32>
    %42 = arith.addf %40, %41 : vector<8x128xf32>
    %43 = arith.negf %42 : vector<8x128xf32>
    %44 = math.exp %43 : vector<8x128xf32>
    %cst_18 = arith.constant 1.000000e+00 : f32
    %45 = vector.broadcast %cst_18 : f32 to vector<8x128xf32>
    %46 = arith.addf %45, %44 : vector<8x128xf32>
    %47 = arith.divf %45, %46 : vector<8x128xf32>
    %48 = vector.extract_strided_slice %38 {offsets = [0, 128], sizes = [8, 128], strides = [1, 1]} : vector<8x384xf32> to vector<8x128xf32>
    %49 = vector.extract_strided_slice %39 {offsets = [0, 128], sizes = [8, 128], strides = [1, 1]} : vector<8x384xf32> to vector<8x128xf32>
    %50 = arith.addf %48, %49 : vector<8x128xf32>
    %51 = arith.negf %50 : vector<8x128xf32>
    %52 = math.exp %51 : vector<8x128xf32>
    %cst_19 = arith.constant 1.000000e+00 : f32
    %53 = vector.broadcast %cst_19 : f32 to vector<8x128xf32>
    %54 = arith.addf %53, %52 : vector<8x128xf32>
    %55 = arith.divf %53, %54 : vector<8x128xf32>
    %56 = vector.extract_strided_slice %38 {offsets = [0, 256], sizes = [8, 128], strides = [1, 1]} : vector<8x384xf32> to vector<8x128xf32>
    %57 = vector.extract_strided_slice %39 {offsets = [0, 256], sizes = [8, 128], strides = [1, 1]} : vector<8x384xf32> to vector<8x128xf32>
    %58 = arith.addf %57, %16 : vector<8x128xf32>
    %59 = arith.mulf %47, %58 : vector<8x128xf32>
    %60 = arith.addf %56, %59 : vector<8x128xf32>
    %61 = math.tanh %60 : vector<8x128xf32>
    %cst_20 = arith.constant 1.000000e+00 : f32
    %62 = vector.broadcast %cst_20 : f32 to vector<8x128xf32>
    %63 = arith.subf %62, %55 : vector<8x128xf32>
    %64 = arith.mulf %63, %61 : vector<8x128xf32>
    %65 = arith.mulf %55, %36 : vector<8x128xf32>
    %66 = arith.addf %64, %65 : vector<8x128xf32>
    %c8 = arith.constant 8 : index
    %c0_21 = arith.constant 0 : index
    %67 = vector.load %arg4[%c8, %c0_21] : memref<64x128xf32, #tpu.memory_space<vmem>>, vector<8x128xf32>
    tpu.vector_store %arg4[%c8, %c0_21], %66 {strides = array<i32>} : memref<64x128xf32, #tpu.memory_space<vmem>>, vector<8x128xf32>,
    %68 = vector.extract_strided_slice %14 {offsets = [16, 0], sizes = [8, 384], strides = [1, 1]} : vector<64x384xf32> to vector<8x384xf32>
    %cst_22 = arith.constant dense<0.000000e+00> : vector<8x384xf32>
    %69 = tpu.matmul %66, %9, %cst_22 {dimension_numbers = #tpu.dot_dimension_numbers<[1], [0], [0], [1], [0, 0, 1, 1], [], []>} : vector<8x128xf32>, vector<128x384xf32>, vector<8x384xf32> -> vector<8x384xf32>
    %70 = vector.extract_strided_slice %68 {offsets = [0, 0], sizes = [8, 128], strides = [1, 1]} : vector<8x384xf32> to vector<8x128xf32>
    %71 = vector.extract_strided_slice %69 {offsets = [0, 0], sizes = [8, 128], strides = [1, 1]} : vector<8x384xf32> to vector<8x128xf32>
    %72 = arith.addf %70, %71 : vector<8x128xf32>
    %73 = arith.negf %72 : vector<8x128xf32>
    %74 = math.exp %73 : vector<8x128xf32>
    %cst_23 = arith.constant 1.000000e+00 : f32
    %75 = vector.broadcast %cst_23 : f32 to vector<8x128xf32>
    %76 = arith.addf %75, %74 : vector<8x128xf32>
    %77 = arith.divf %75, %76 : vector<8x128xf32>
    %78 = vector.extract_strided_slice %68 {offsets = [0, 128], sizes = [8, 128], strides = [1, 1]} : vector<8x384xf32> to vector<8x128xf32>
    %79 = vector.extract_strided_slice %69 {offsets = [0, 128], sizes = [8, 128], strides = [1, 1]} : vector<8x384xf32> to vector<8x128xf32>
    %80 = arith.addf %78, %79 : vector<8x128xf32>
    %81 = arith.negf %80 : vector<8x128xf32>
    %82 = math.exp %81 : vector<8x128xf32>
    %cst_24 = arith.constant 1.000000e+00 : f32
    %83 = vector.broadcast %cst_24 : f32 to vector<8x128xf32>
    %84 = arith.addf %83, %82 : vector<8x128xf32>
    %85 = arith.divf %83, %84 : vector<8x128xf32>
    %86 = vector.extract_strided_slice %68 {offsets = [0, 256], sizes = [8, 128], strides = [1, 1]} : vector<8x384xf32> to vector<8x128xf32>
    %87 = vector.extract_strided_slice %69 {offsets = [0, 256], sizes = [8, 128], strides = [1, 1]} : vector<8x384xf32> to vector<8x128xf32>
    %88 = arith.addf %87, %16 : vector<8x128xf32>
    %89 = arith.mulf %77, %88 : vector<8x128xf32>
    %90 = arith.addf %86, %89 : vector<8x128xf32>
    %91 = math.tanh %90 : vector<8x128xf32>
    %cst_25 = arith.constant 1.000000e+00 : f32
    %92 = vector.broadcast %cst_25 : f32 to vector<8x128xf32>
    %93 = arith.subf %92, %85 : vector<8x128xf32>
    %94 = arith.mulf %93, %91 : vector<8x128xf32>
    %95 = arith.mulf %85, %66 : vector<8x128xf32>
    %96 = arith.addf %94, %95 : vector<8x128xf32>
    %c16 = arith.constant 16 : index
    %c0_26 = arith.constant 0 : index
    %97 = vector.load %arg4[%c16, %c0_26] : memref<64x128xf32, #tpu.memory_space<vmem>>, vector<8x128xf32>
    tpu.vector_store %arg4[%c16, %c0_26], %96 {strides = array<i32>} : memref<64x128xf32, #tpu.memory_space<vmem>>, vector<8x128xf32>,
    %98 = vector.extract_strided_slice %14 {offsets = [24, 0], sizes = [8, 384], strides = [1, 1]} : vector<64x384xf32> to vector<8x384xf32>
    %cst_27 = arith.constant dense<0.000000e+00> : vector<8x384xf32>
    %99 = tpu.matmul %96, %9, %cst_27 {dimension_numbers = #tpu.dot_dimension_numbers<[1], [0], [0], [1], [0, 0, 1, 1], [], []>} : vector<8x128xf32>, vector<128x384xf32>, vector<8x384xf32> -> vector<8x384xf32>
    %100 = vector.extract_strided_slice %98 {offsets = [0, 0], sizes = [8, 128], strides = [1, 1]} : vector<8x384xf32> to vector<8x128xf32>
    %101 = vector.extract_strided_slice %99 {offsets = [0, 0], sizes = [8, 128], strides = [1, 1]} : vector<8x384xf32> to vector<8x128xf32>
    %102 = arith.addf %100, %101 : vector<8x128xf32>
    %103 = arith.negf %102 : vector<8x128xf32>
    %104 = math.exp %103 : vector<8x128xf32>
    %cst_28 = arith.constant 1.000000e+00 : f32
    %105 = vector.broadcast %cst_28 : f32 to vector<8x128xf32>
    %106 = arith.addf %105, %104 : vector<8x128xf32>
    %107 = arith.divf %105, %106 : vector<8x128xf32>
    %108 = vector.extract_strided_slice %98 {offsets = [0, 128], sizes = [8, 128], strides = [1, 1]} : vector<8x384xf32> to vector<8x128xf32>
    %109 = vector.extract_strided_slice %99 {offsets = [0, 128], sizes = [8, 128], strides = [1, 1]} : vector<8x384xf32> to vector<8x128xf32>
    %110 = arith.addf %108, %109 : vector<8x128xf32>
    %111 = arith.negf %110 : vector<8x128xf32>
    %112 = math.exp %111 : vector<8x128xf32>
    %cst_29 = arith.constant 1.000000e+00 : f32
    %113 = vector.broadcast %cst_29 : f32 to vector<8x128xf32>
    %114 = arith.addf %113, %112 : vector<8x128xf32>
    %115 = arith.divf %113, %114 : vector<8x128xf32>
    %116 = vector.extract_strided_slice %98 {offsets = [0, 256], sizes = [8, 128], strides = [1, 1]} : vector<8x384xf32> to vector<8x128xf32>
    %117 = vector.extract_strided_slice %99 {offsets = [0, 256], sizes = [8, 128], strides = [1, 1]} : vector<8x384xf32> to vector<8x128xf32>
    %118 = arith.addf %117, %16 : vector<8x128xf32>
    %119 = arith.mulf %107, %118 : vector<8x128xf32>
    %120 = arith.addf %116, %119 : vector<8x128xf32>
    %121 = math.tanh %120 : vector<8x128xf32>
    %cst_30 = arith.constant 1.000000e+00 : f32
    %122 = vector.broadcast %cst_30 : f32 to vector<8x128xf32>
    %123 = arith.subf %122, %115 : vector<8x128xf32>
    %124 = arith.mulf %123, %121 : vector<8x128xf32>
    %125 = arith.mulf %115, %96 : vector<8x128xf32>
    %126 = arith.addf %124, %125 : vector<8x128xf32>
    %c24 = arith.constant 24 : index
    %c0_31 = arith.constant 0 : index
    %127 = vector.load %arg4[%c24, %c0_31] : memref<64x128xf32, #tpu.memory_space<vmem>>, vector<8x128xf32>
    tpu.vector_store %arg4[%c24, %c0_31], %126 {strides = array<i32>} : memref<64x128xf32, #tpu.memory_space<vmem>>, vector<8x128xf32>,
    %128 = vector.extract_strided_slice %14 {offsets = [32, 0], sizes = [8, 384], strides = [1, 1]} : vector<64x384xf32> to vector<8x384xf32>
    %cst_32 = arith.constant dense<0.000000e+00> : vector<8x384xf32>
    %129 = tpu.matmul %126, %9, %cst_32 {dimension_numbers = #tpu.dot_dimension_numbers<[1], [0], [0], [1], [0, 0, 1, 1], [], []>} : vector<8x128xf32>, vector<128x384xf32>, vector<8x384xf32> -> vector<8x384xf32>
    %130 = vector.extract_strided_slice %128 {offsets = [0, 0], sizes = [8, 128], strides = [1, 1]} : vector<8x384xf32> to vector<8x128xf32>
    %131 = vector.extract_strided_slice %129 {offsets = [0, 0], sizes = [8, 128], strides = [1, 1]} : vector<8x384xf32> to vector<8x128xf32>
    %132 = arith.addf %130, %131 : vector<8x128xf32>
    %133 = arith.negf %132 : vector<8x128xf32>
    %134 = math.exp %133 : vector<8x128xf32>
    %cst_33 = arith.constant 1.000000e+00 : f32
    %135 = vector.broadcast %cst_33 : f32 to vector<8x128xf32>
    %136 = arith.addf %135, %134 : vector<8x128xf32>
    %137 = arith.divf %135, %136 : vector<8x128xf32>
    %138 = vector.extract_strided_slice %128 {offsets = [0, 128], sizes = [8, 128], strides = [1, 1]} : vector<8x384xf32> to vector<8x128xf32>
    %139 = vector.extract_strided_slice %129 {offsets = [0, 128], sizes = [8, 128], strides = [1, 1]} : vector<8x384xf32> to vector<8x128xf32>
    %140 = arith.addf %138, %139 : vector<8x128xf32>
    %141 = arith.negf %140 : vector<8x128xf32>
    %142 = math.exp %141 : vector<8x128xf32>
    %cst_34 = arith.constant 1.000000e+00 : f32
    %143 = vector.broadcast %cst_34 : f32 to vector<8x128xf32>
    %144 = arith.addf %143, %142 : vector<8x128xf32>
    %145 = arith.divf %143, %144 : vector<8x128xf32>
    %146 = vector.extract_strided_slice %128 {offsets = [0, 256], sizes = [8, 128], strides = [1, 1]} : vector<8x384xf32> to vector<8x128xf32>
    %147 = vector.extract_strided_slice %129 {offsets = [0, 256], sizes = [8, 128], strides = [1, 1]} : vector<8x384xf32> to vector<8x128xf32>
    %148 = arith.addf %147, %16 : vector<8x128xf32>
    %149 = arith.mulf %137, %148 : vector<8x128xf32>
    %150 = arith.addf %146, %149 : vector<8x128xf32>
    %151 = math.tanh %150 : vector<8x128xf32>
    %cst_35 = arith.constant 1.000000e+00 : f32
    %152 = vector.broadcast %cst_35 : f32 to vector<8x128xf32>
    %153 = arith.subf %152, %145 : vector<8x128xf32>
    %154 = arith.mulf %153, %151 : vector<8x128xf32>
    %155 = arith.mulf %145, %126 : vector<8x128xf32>
    %156 = arith.addf %154, %155 : vector<8x128xf32>
    %c32 = arith.constant 32 : index
    %c0_36 = arith.constant 0 : index
    %157 = vector.load %arg4[%c32, %c0_36] : memref<64x128xf32, #tpu.memory_space<vmem>>, vector<8x128xf32>
    tpu.vector_store %arg4[%c32, %c0_36], %156 {strides = array<i32>} : memref<64x128xf32, #tpu.memory_space<vmem>>, vector<8x128xf32>,
    %158 = vector.extract_strided_slice %14 {offsets = [40, 0], sizes = [8, 384], strides = [1, 1]} : vector<64x384xf32> to vector<8x384xf32>
    %cst_37 = arith.constant dense<0.000000e+00> : vector<8x384xf32>
    %159 = tpu.matmul %156, %9, %cst_37 {dimension_numbers = #tpu.dot_dimension_numbers<[1], [0], [0], [1], [0, 0, 1, 1], [], []>} : vector<8x128xf32>, vector<128x384xf32>, vector<8x384xf32> -> vector<8x384xf32>
    %160 = vector.extract_strided_slice %158 {offsets = [0, 0], sizes = [8, 128], strides = [1, 1]} : vector<8x384xf32> to vector<8x128xf32>
    %161 = vector.extract_strided_slice %159 {offsets = [0, 0], sizes = [8, 128], strides = [1, 1]} : vector<8x384xf32> to vector<8x128xf32>
    %162 = arith.addf %160, %161 : vector<8x128xf32>
    %163 = arith.negf %162 : vector<8x128xf32>
    %164 = math.exp %163 : vector<8x128xf32>
    %cst_38 = arith.constant 1.000000e+00 : f32
    %165 = vector.broadcast %cst_38 : f32 to vector<8x128xf32>
    %166 = arith.addf %165, %164 : vector<8x128xf32>
    %167 = arith.divf %165, %166 : vector<8x128xf32>
    %168 = vector.extract_strided_slice %158 {offsets = [0, 128], sizes = [8, 128], strides = [1, 1]} : vector<8x384xf32> to vector<8x128xf32>
    %169 = vector.extract_strided_slice %159 {offsets = [0, 128], sizes = [8, 128], strides = [1, 1]} : vector<8x384xf32> to vector<8x128xf32>
    %170 = arith.addf %168, %169 : vector<8x128xf32>
    %171 = arith.negf %170 : vector<8x128xf32>
    %172 = math.exp %171 : vector<8x128xf32>
    %cst_39 = arith.constant 1.000000e+00 : f32
    %173 = vector.broadcast %cst_39 : f32 to vector<8x128xf32>
    %174 = arith.addf %173, %172 : vector<8x128xf32>
    %175 = arith.divf %173, %174 : vector<8x128xf32>
    %176 = vector.extract_strided_slice %158 {offsets = [0, 256], sizes = [8, 128], strides = [1, 1]} : vector<8x384xf32> to vector<8x128xf32>
    %177 = vector.extract_strided_slice %159 {offsets = [0, 256], sizes = [8, 128], strides = [1, 1]} : vector<8x384xf32> to vector<8x128xf32>
    %178 = arith.addf %177, %16 : vector<8x128xf32>
    %179 = arith.mulf %167, %178 : vector<8x128xf32>
    %180 = arith.addf %176, %179 : vector<8x128xf32>
    %181 = math.tanh %180 : vector<8x128xf32>
    %cst_40 = arith.constant 1.000000e+00 : f32
    %182 = vector.broadcast %cst_40 : f32 to vector<8x128xf32>
    %183 = arith.subf %182, %175 : vector<8x128xf32>
    %184 = arith.mulf %183, %181 : vector<8x128xf32>
    %185 = arith.mulf %175, %156 : vector<8x128xf32>
    %186 = arith.addf %184, %185 : vector<8x128xf32>
    %c40 = arith.constant 40 : index
    %c0_41 = arith.constant 0 : index
    %187 = vector.load %arg4[%c40, %c0_41] : memref<64x128xf32, #tpu.memory_space<vmem>>, vector<8x128xf32>
    tpu.vector_store %arg4[%c40, %c0_41], %186 {strides = array<i32>} : memref<64x128xf32, #tpu.memory_space<vmem>>, vector<8x128xf32>,
    %188 = vector.extract_strided_slice %14 {offsets = [48, 0], sizes = [8, 384], strides = [1, 1]} : vector<64x384xf32> to vector<8x384xf32>
    %cst_42 = arith.constant dense<0.000000e+00> : vector<8x384xf32>
    %189 = tpu.matmul %186, %9, %cst_42 {dimension_numbers = #tpu.dot_dimension_numbers<[1], [0], [0], [1], [0, 0, 1, 1], [], []>} : vector<8x128xf32>, vector<128x384xf32>, vector<8x384xf32> -> vector<8x384xf32>
    %190 = vector.extract_strided_slice %188 {offsets = [0, 0], sizes = [8, 128], strides = [1, 1]} : vector<8x384xf32> to vector<8x128xf32>
    %191 = vector.extract_strided_slice %189 {offsets = [0, 0], sizes = [8, 128], strides = [1, 1]} : vector<8x384xf32> to vector<8x128xf32>
    %192 = arith.addf %190, %191 : vector<8x128xf32>
    %193 = arith.negf %192 : vector<8x128xf32>
    %194 = math.exp %193 : vector<8x128xf32>
    %cst_43 = arith.constant 1.000000e+00 : f32
    %195 = vector.broadcast %cst_43 : f32 to vector<8x128xf32>
    %196 = arith.addf %195, %194 : vector<8x128xf32>
    %197 = arith.divf %195, %196 : vector<8x128xf32>
    %198 = vector.extract_strided_slice %188 {offsets = [0, 128], sizes = [8, 128], strides = [1, 1]} : vector<8x384xf32> to vector<8x128xf32>
    %199 = vector.extract_strided_slice %189 {offsets = [0, 128], sizes = [8, 128], strides = [1, 1]} : vector<8x384xf32> to vector<8x128xf32>
    %200 = arith.addf %198, %199 : vector<8x128xf32>
    %201 = arith.negf %200 : vector<8x128xf32>
    %202 = math.exp %201 : vector<8x128xf32>
    %cst_44 = arith.constant 1.000000e+00 : f32
    %203 = vector.broadcast %cst_44 : f32 to vector<8x128xf32>
    %204 = arith.addf %203, %202 : vector<8x128xf32>
    %205 = arith.divf %203, %204 : vector<8x128xf32>
    %206 = vector.extract_strided_slice %188 {offsets = [0, 256], sizes = [8, 128], strides = [1, 1]} : vector<8x384xf32> to vector<8x128xf32>
    %207 = vector.extract_strided_slice %189 {offsets = [0, 256], sizes = [8, 128], strides = [1, 1]} : vector<8x384xf32> to vector<8x128xf32>
    %208 = arith.addf %207, %16 : vector<8x128xf32>
    %209 = arith.mulf %197, %208 : vector<8x128xf32>
    %210 = arith.addf %206, %209 : vector<8x128xf32>
    %211 = math.tanh %210 : vector<8x128xf32>
    %cst_45 = arith.constant 1.000000e+00 : f32
    %212 = vector.broadcast %cst_45 : f32 to vector<8x128xf32>
    %213 = arith.subf %212, %205 : vector<8x128xf32>
    %214 = arith.mulf %213, %211 : vector<8x128xf32>
    %215 = arith.mulf %205, %186 : vector<8x128xf32>
    %216 = arith.addf %214, %215 : vector<8x128xf32>
    %c48 = arith.constant 48 : index
    %c0_46 = arith.constant 0 : index
    %217 = vector.load %arg4[%c48, %c0_46] : memref<64x128xf32, #tpu.memory_space<vmem>>, vector<8x128xf32>
    tpu.vector_store %arg4[%c48, %c0_46], %216 {strides = array<i32>} : memref<64x128xf32, #tpu.memory_space<vmem>>, vector<8x128xf32>,
    %218 = vector.extract_strided_slice %14 {offsets = [56, 0], sizes = [8, 384], strides = [1, 1]} : vector<64x384xf32> to vector<8x384xf32>
    %cst_47 = arith.constant dense<0.000000e+00> : vector<8x384xf32>
    %219 = tpu.matmul %216, %9, %cst_47 {dimension_numbers = #tpu.dot_dimension_numbers<[1], [0], [0], [1], [0, 0, 1, 1], [], []>} : vector<8x128xf32>, vector<128x384xf32>, vector<8x384xf32> -> vector<8x384xf32>
    %220 = vector.extract_strided_slice %218 {offsets = [0, 0], sizes = [8, 128], strides = [1, 1]} : vector<8x384xf32> to vector<8x128xf32>
    %221 = vector.extract_strided_slice %219 {offsets = [0, 0], sizes = [8, 128], strides = [1, 1]} : vector<8x384xf32> to vector<8x128xf32>
    %222 = arith.addf %220, %221 : vector<8x128xf32>
    %223 = arith.negf %222 : vector<8x128xf32>
    %224 = math.exp %223 : vector<8x128xf32>
    %cst_48 = arith.constant 1.000000e+00 : f32
    %225 = vector.broadcast %cst_48 : f32 to vector<8x128xf32>
    %226 = arith.addf %225, %224 : vector<8x128xf32>
    %227 = arith.divf %225, %226 : vector<8x128xf32>
    %228 = vector.extract_strided_slice %218 {offsets = [0, 128], sizes = [8, 128], strides = [1, 1]} : vector<8x384xf32> to vector<8x128xf32>
    %229 = vector.extract_strided_slice %219 {offsets = [0, 128], sizes = [8, 128], strides = [1, 1]} : vector<8x384xf32> to vector<8x128xf32>
    %230 = arith.addf %228, %229 : vector<8x128xf32>
    %231 = arith.negf %230 : vector<8x128xf32>
    %232 = math.exp %231 : vector<8x128xf32>
    %cst_49 = arith.constant 1.000000e+00 : f32
    %233 = vector.broadcast %cst_49 : f32 to vector<8x128xf32>
    %234 = arith.addf %233, %232 : vector<8x128xf32>
    %235 = arith.divf %233, %234 : vector<8x128xf32>
    %236 = vector.extract_strided_slice %218 {offsets = [0, 256], sizes = [8, 128], strides = [1, 1]} : vector<8x384xf32> to vector<8x128xf32>
    %237 = vector.extract_strided_slice %219 {offsets = [0, 256], sizes = [8, 128], strides = [1, 1]} : vector<8x384xf32> to vector<8x128xf32>
    %238 = arith.addf %237, %16 : vector<8x128xf32>
    %239 = arith.mulf %227, %238 : vector<8x128xf32>
    %240 = arith.addf %236, %239 : vector<8x128xf32>
    %241 = math.tanh %240 : vector<8x128xf32>
    %cst_50 = arith.constant 1.000000e+00 : f32
    %242 = vector.broadcast %cst_50 : f32 to vector<8x128xf32>
    %243 = arith.subf %242, %235 : vector<8x128xf32>
    %244 = arith.mulf %243, %241 : vector<8x128xf32>
    %245 = arith.mulf %235, %216 : vector<8x128xf32>
    %246 = arith.addf %244, %245 : vector<8x128xf32>
    %c56 = arith.constant 56 : index
    %c0_51 = arith.constant 0 : index
    %247 = vector.load %arg4[%c56, %c0_51] : memref<64x128xf32, #tpu.memory_space<vmem>>, vector<8x128xf32>
    tpu.vector_store %arg4[%c56, %c0_51], %246 {strides = array<i32>} : memref<64x128xf32, #tpu.memory_space<vmem>>, vector<8x128xf32>,
    %c0_52 = arith.constant 0 : index
    %c0_53 = arith.constant 0 : index
    %248 = vector.load %arg4[%c0_52, %c0_53] : memref<64x128xf32, #tpu.memory_space<vmem>>, vector<64x128xf32>
    %c264 = arith.constant 264 : index
    %c0_54 = arith.constant 0 : index
    %249 = vector.load %arg2[%c264, %c0_54] : memref<528x384xf32, #tpu.memory_space<vmem>>, vector<128x384xf32>
    %c392 = arith.constant 392 : index
    %c0_55 = arith.constant 0 : index
    %250 = vector.load %arg2[%c392, %c0_55] : memref<528x384xf32, #tpu.memory_space<vmem>>, vector<128x384xf32>
    %c520 = arith.constant 520 : index
    %c0_56 = arith.constant 0 : index
    %251 = vector.load %arg2[%c520, %c0_56] : memref<528x384xf32, #tpu.memory_space<vmem>>, vector<1x384xf32>
    %c144 = arith.constant 144 : index
    %c0_57 = arith.constant 0 : index
    %252 = vector.load %arg1[%c144, %c0_57] : memref<424x128xf32, #tpu.memory_space<vmem>>, vector<1x128xf32>
    %cst_58 = arith.constant dense<0.000000e+00> : vector<64x384xf32>
    %253 = tpu.matmul %248, %249, %cst_58 {dimension_numbers = #tpu.dot_dimension_numbers<[1], [0], [0], [1], [0, 0, 1, 1], [], []>} : vector<64x128xf32>, vector<128x384xf32>, vector<64x384xf32> -> vector<64x384xf32>
    %254 = vector.broadcast %251 : vector<1x384xf32> to vector<64x384xf32>
    %255 = arith.addf %253, %254 : vector<64x384xf32>
    %256 = vector.shape_cast %252 : vector<1x128xf32> to vector<1x128xf32>
    %257 = vector.broadcast %256 : vector<1x128xf32> to vector<8x128xf32>
    %258 = vector.extract_strided_slice %255 {offsets = [0, 0], sizes = [8, 384], strides = [1, 1]} : vector<64x384xf32> to vector<8x384xf32>
    %259 = vector.extract_strided_slice %258 {offsets = [0, 0], sizes = [8, 128], strides = [1, 1]} : vector<8x384xf32> to vector<8x128xf32>
    %260 = arith.negf %259 : vector<8x128xf32>
    %261 = math.exp %260 : vector<8x128xf32>
    %cst_59 = arith.constant 1.000000e+00 : f32
    %262 = vector.broadcast %cst_59 : f32 to vector<8x128xf32>
    %263 = arith.addf %262, %261 : vector<8x128xf32>
    %264 = arith.divf %262, %263 : vector<8x128xf32>
    %265 = vector.extract_strided_slice %258 {offsets = [0, 128], sizes = [8, 128], strides = [1, 1]} : vector<8x384xf32> to vector<8x128xf32>
    %266 = arith.negf %265 : vector<8x128xf32>
    %267 = math.exp %266 : vector<8x128xf32>
    %cst_60 = arith.constant 1.000000e+00 : f32
    %268 = vector.broadcast %cst_60 : f32 to vector<8x128xf32>
    %269 = arith.addf %268, %267 : vector<8x128xf32>
    %270 = arith.divf %268, %269 : vector<8x128xf32>
    %271 = vector.extract_strided_slice %258 {offsets = [0, 256], sizes = [8, 128], strides = [1, 1]} : vector<8x384xf32> to vector<8x128xf32>
    %272 = arith.mulf %264, %257 : vector<8x128xf32>
    %273 = arith.addf %271, %272 : vector<8x128xf32>
    %274 = math.tanh %273 : vector<8x128xf32>
    %cst_61 = arith.constant 1.000000e+00 : f32
    %275 = vector.broadcast %cst_61 : f32 to vector<8x128xf32>
    %276 = arith.subf %275, %270 : vector<8x128xf32>
    %277 = arith.mulf %276, %274 : vector<8x128xf32>
    %c0_62 = arith.constant 0 : index
    %c0_63 = arith.constant 0 : index
    %278 = vector.load %arg4[%c0_62, %c0_63] : memref<64x128xf32, #tpu.memory_space<vmem>>, vector<8x128xf32>
    tpu.vector_store %arg4[%c0_62, %c0_63], %277 {strides = array<i32>} : memref<64x128xf32, #tpu.memory_space<vmem>>, vector<8x128xf32>,
    %279 = vector.extract_strided_slice %255 {offsets = [8, 0], sizes = [8, 384], strides = [1, 1]} : vector<64x384xf32> to vector<8x384xf32>
    %cst_64 = arith.constant dense<0.000000e+00> : vector<8x384xf32>
    %280 = tpu.matmul %277, %250, %cst_64 {dimension_numbers = #tpu.dot_dimension_numbers<[1], [0], [0], [1], [0, 0, 1, 1], [], []>} : vector<8x128xf32>, vector<128x384xf32>, vector<8x384xf32> -> vector<8x384xf32>
    %281 = vector.extract_strided_slice %279 {offsets = [0, 0], sizes = [8, 128], strides = [1, 1]} : vector<8x384xf32> to vector<8x128xf32>
    %282 = vector.extract_strided_slice %280 {offsets = [0, 0], sizes = [8, 128], strides = [1, 1]} : vector<8x384xf32> to vector<8x128xf32>
    %283 = arith.addf %281, %282 : vector<8x128xf32>
    %284 = arith.negf %283 : vector<8x128xf32>
    %285 = math.exp %284 : vector<8x128xf32>
    %cst_65 = arith.constant 1.000000e+00 : f32
    %286 = vector.broadcast %cst_65 : f32 to vector<8x128xf32>
    %287 = arith.addf %286, %285 : vector<8x128xf32>
    %288 = arith.divf %286, %287 : vector<8x128xf32>
    %289 = vector.extract_strided_slice %279 {offsets = [0, 128], sizes = [8, 128], strides = [1, 1]} : vector<8x384xf32> to vector<8x128xf32>
    %290 = vector.extract_strided_slice %280 {offsets = [0, 128], sizes = [8, 128], strides = [1, 1]} : vector<8x384xf32> to vector<8x128xf32>
    %291 = arith.addf %289, %290 : vector<8x128xf32>
    %292 = arith.negf %291 : vector<8x128xf32>
    %293 = math.exp %292 : vector<8x128xf32>
    %cst_66 = arith.constant 1.000000e+00 : f32
    %294 = vector.broadcast %cst_66 : f32 to vector<8x128xf32>
    %295 = arith.addf %294, %293 : vector<8x128xf32>
    %296 = arith.divf %294, %295 : vector<8x128xf32>
    %297 = vector.extract_strided_slice %279 {offsets = [0, 256], sizes = [8, 128], strides = [1, 1]} : vector<8x384xf32> to vector<8x128xf32>
    %298 = vector.extract_strided_slice %280 {offsets = [0, 256], sizes = [8, 128], strides = [1, 1]} : vector<8x384xf32> to vector<8x128xf32>
    %299 = arith.addf %298, %257 : vector<8x128xf32>
    %300 = arith.mulf %288, %299 : vector<8x128xf32>
    %301 = arith.addf %297, %300 : vector<8x128xf32>
    %302 = math.tanh %301 : vector<8x128xf32>
    %cst_67 = arith.constant 1.000000e+00 : f32
    %303 = vector.broadcast %cst_67 : f32 to vector<8x128xf32>
    %304 = arith.subf %303, %296 : vector<8x128xf32>
    %305 = arith.mulf %304, %302 : vector<8x128xf32>
    %306 = arith.mulf %296, %277 : vector<8x128xf32>
    %307 = arith.addf %305, %306 : vector<8x128xf32>
    %c8_68 = arith.constant 8 : index
    %c0_69 = arith.constant 0 : index
    %308 = vector.load %arg4[%c8_68, %c0_69] : memref<64x128xf32, #tpu.memory_space<vmem>>, vector<8x128xf32>
    tpu.vector_store %arg4[%c8_68, %c0_69], %307 {strides = array<i32>} : memref<64x128xf32, #tpu.memory_space<vmem>>, vector<8x128xf32>,
    %309 = vector.extract_strided_slice %255 {offsets = [16, 0], sizes = [8, 384], strides = [1, 1]} : vector<64x384xf32> to vector<8x384xf32>
    %cst_70 = arith.constant dense<0.000000e+00> : vector<8x384xf32>
    %310 = tpu.matmul %307, %250, %cst_70 {dimension_numbers = #tpu.dot_dimension_numbers<[1], [0], [0], [1], [0, 0, 1, 1], [], []>} : vector<8x128xf32>, vector<128x384xf32>, vector<8x384xf32> -> vector<8x384xf32>
    %311 = vector.extract_strided_slice %309 {offsets = [0, 0], sizes = [8, 128], strides = [1, 1]} : vector<8x384xf32> to vector<8x128xf32>
    %312 = vector.extract_strided_slice %310 {offsets = [0, 0], sizes = [8, 128], strides = [1, 1]} : vector<8x384xf32> to vector<8x128xf32>
    %313 = arith.addf %311, %312 : vector<8x128xf32>
    %314 = arith.negf %313 : vector<8x128xf32>
    %315 = math.exp %314 : vector<8x128xf32>
    %cst_71 = arith.constant 1.000000e+00 : f32
    %316 = vector.broadcast %cst_71 : f32 to vector<8x128xf32>
    %317 = arith.addf %316, %315 : vector<8x128xf32>
    %318 = arith.divf %316, %317 : vector<8x128xf32>
    %319 = vector.extract_strided_slice %309 {offsets = [0, 128], sizes = [8, 128], strides = [1, 1]} : vector<8x384xf32> to vector<8x128xf32>
    %320 = vector.extract_strided_slice %310 {offsets = [0, 128], sizes = [8, 128], strides = [1, 1]} : vector<8x384xf32> to vector<8x128xf32>
    %321 = arith.addf %319, %320 : vector<8x128xf32>
    %322 = arith.negf %321 : vector<8x128xf32>
    %323 = math.exp %322 : vector<8x128xf32>
    %cst_72 = arith.constant 1.000000e+00 : f32
    %324 = vector.broadcast %cst_72 : f32 to vector<8x128xf32>
    %325 = arith.addf %324, %323 : vector<8x128xf32>
    %326 = arith.divf %324, %325 : vector<8x128xf32>
    %327 = vector.extract_strided_slice %309 {offsets = [0, 256], sizes = [8, 128], strides = [1, 1]} : vector<8x384xf32> to vector<8x128xf32>
    %328 = vector.extract_strided_slice %310 {offsets = [0, 256], sizes = [8, 128], strides = [1, 1]} : vector<8x384xf32> to vector<8x128xf32>
    %329 = arith.addf %328, %257 : vector<8x128xf32>
    %330 = arith.mulf %318, %329 : vector<8x128xf32>
    %331 = arith.addf %327, %330 : vector<8x128xf32>
    %332 = math.tanh %331 : vector<8x128xf32>
    %cst_73 = arith.constant 1.000000e+00 : f32
    %333 = vector.broadcast %cst_73 : f32 to vector<8x128xf32>
    %334 = arith.subf %333, %326 : vector<8x128xf32>
    %335 = arith.mulf %334, %332 : vector<8x128xf32>
    %336 = arith.mulf %326, %307 : vector<8x128xf32>
    %337 = arith.addf %335, %336 : vector<8x128xf32>
    %c16_74 = arith.constant 16 : index
    %c0_75 = arith.constant 0 : index
    %338 = vector.load %arg4[%c16_74, %c0_75] : memref<64x128xf32, #tpu.memory_space<vmem>>, vector<8x128xf32>
    tpu.vector_store %arg4[%c16_74, %c0_75], %337 {strides = array<i32>} : memref<64x128xf32, #tpu.memory_space<vmem>>, vector<8x128xf32>,
    %339 = vector.extract_strided_slice %255 {offsets = [24, 0], sizes = [8, 384], strides = [1, 1]} : vector<64x384xf32> to vector<8x384xf32>
    %cst_76 = arith.constant dense<0.000000e+00> : vector<8x384xf32>
    %340 = tpu.matmul %337, %250, %cst_76 {dimension_numbers = #tpu.dot_dimension_numbers<[1], [0], [0], [1], [0, 0, 1, 1], [], []>} : vector<8x128xf32>, vector<128x384xf32>, vector<8x384xf32> -> vector<8x384xf32>
    %341 = vector.extract_strided_slice %339 {offsets = [0, 0], sizes = [8, 128], strides = [1, 1]} : vector<8x384xf32> to vector<8x128xf32>
    %342 = vector.extract_strided_slice %340 {offsets = [0, 0], sizes = [8, 128], strides = [1, 1]} : vector<8x384xf32> to vector<8x128xf32>
    %343 = arith.addf %341, %342 : vector<8x128xf32>
    %344 = arith.negf %343 : vector<8x128xf32>
    %345 = math.exp %344 : vector<8x128xf32>
    %cst_77 = arith.constant 1.000000e+00 : f32
    %346 = vector.broadcast %cst_77 : f32 to vector<8x128xf32>
    %347 = arith.addf %346, %345 : vector<8x128xf32>
    %348 = arith.divf %346, %347 : vector<8x128xf32>
    %349 = vector.extract_strided_slice %339 {offsets = [0, 128], sizes = [8, 128], strides = [1, 1]} : vector<8x384xf32> to vector<8x128xf32>
    %350 = vector.extract_strided_slice %340 {offsets = [0, 128], sizes = [8, 128], strides = [1, 1]} : vector<8x384xf32> to vector<8x128xf32>
    %351 = arith.addf %349, %350 : vector<8x128xf32>
    %352 = arith.negf %351 : vector<8x128xf32>
    %353 = math.exp %352 : vector<8x128xf32>
    %cst_78 = arith.constant 1.000000e+00 : f32
    %354 = vector.broadcast %cst_78 : f32 to vector<8x128xf32>
    %355 = arith.addf %354, %353 : vector<8x128xf32>
    %356 = arith.divf %354, %355 : vector<8x128xf32>
    %357 = vector.extract_strided_slice %339 {offsets = [0, 256], sizes = [8, 128], strides = [1, 1]} : vector<8x384xf32> to vector<8x128xf32>
    %358 = vector.extract_strided_slice %340 {offsets = [0, 256], sizes = [8, 128], strides = [1, 1]} : vector<8x384xf32> to vector<8x128xf32>
    %359 = arith.addf %358, %257 : vector<8x128xf32>
    %360 = arith.mulf %348, %359 : vector<8x128xf32>
    %361 = arith.addf %357, %360 : vector<8x128xf32>
    %362 = math.tanh %361 : vector<8x128xf32>
    %cst_79 = arith.constant 1.000000e+00 : f32
    %363 = vector.broadcast %cst_79 : f32 to vector<8x128xf32>
    %364 = arith.subf %363, %356 : vector<8x128xf32>
    %365 = arith.mulf %364, %362 : vector<8x128xf32>
    %366 = arith.mulf %356, %337 : vector<8x128xf32>
    %367 = arith.addf %365, %366 : vector<8x128xf32>
    %c24_80 = arith.constant 24 : index
    %c0_81 = arith.constant 0 : index
    %368 = vector.load %arg4[%c24_80, %c0_81] : memref<64x128xf32, #tpu.memory_space<vmem>>, vector<8x128xf32>
    tpu.vector_store %arg4[%c24_80, %c0_81], %367 {strides = array<i32>} : memref<64x128xf32, #tpu.memory_space<vmem>>, vector<8x128xf32>,
    %369 = vector.extract_strided_slice %255 {offsets = [32, 0], sizes = [8, 384], strides = [1, 1]} : vector<64x384xf32> to vector<8x384xf32>
    %cst_82 = arith.constant dense<0.000000e+00> : vector<8x384xf32>
    %370 = tpu.matmul %367, %250, %cst_82 {dimension_numbers = #tpu.dot_dimension_numbers<[1], [0], [0], [1], [0, 0, 1, 1], [], []>} : vector<8x128xf32>, vector<128x384xf32>, vector<8x384xf32> -> vector<8x384xf32>
    %371 = vector.extract_strided_slice %369 {offsets = [0, 0], sizes = [8, 128], strides = [1, 1]} : vector<8x384xf32> to vector<8x128xf32>
    %372 = vector.extract_strided_slice %370 {offsets = [0, 0], sizes = [8, 128], strides = [1, 1]} : vector<8x384xf32> to vector<8x128xf32>
    %373 = arith.addf %371, %372 : vector<8x128xf32>
    %374 = arith.negf %373 : vector<8x128xf32>
    %375 = math.exp %374 : vector<8x128xf32>
    %cst_83 = arith.constant 1.000000e+00 : f32
    %376 = vector.broadcast %cst_83 : f32 to vector<8x128xf32>
    %377 = arith.addf %376, %375 : vector<8x128xf32>
    %378 = arith.divf %376, %377 : vector<8x128xf32>
    %379 = vector.extract_strided_slice %369 {offsets = [0, 128], sizes = [8, 128], strides = [1, 1]} : vector<8x384xf32> to vector<8x128xf32>
    %380 = vector.extract_strided_slice %370 {offsets = [0, 128], sizes = [8, 128], strides = [1, 1]} : vector<8x384xf32> to vector<8x128xf32>
    %381 = arith.addf %379, %380 : vector<8x128xf32>
    %382 = arith.negf %381 : vector<8x128xf32>
    %383 = math.exp %382 : vector<8x128xf32>
    %cst_84 = arith.constant 1.000000e+00 : f32
    %384 = vector.broadcast %cst_84 : f32 to vector<8x128xf32>
    %385 = arith.addf %384, %383 : vector<8x128xf32>
    %386 = arith.divf %384, %385 : vector<8x128xf32>
    %387 = vector.extract_strided_slice %369 {offsets = [0, 256], sizes = [8, 128], strides = [1, 1]} : vector<8x384xf32> to vector<8x128xf32>
    %388 = vector.extract_strided_slice %370 {offsets = [0, 256], sizes = [8, 128], strides = [1, 1]} : vector<8x384xf32> to vector<8x128xf32>
    %389 = arith.addf %388, %257 : vector<8x128xf32>
    %390 = arith.mulf %378, %389 : vector<8x128xf32>
    %391 = arith.addf %387, %390 : vector<8x128xf32>
    %392 = math.tanh %391 : vector<8x128xf32>
    %cst_85 = arith.constant 1.000000e+00 : f32
    %393 = vector.broadcast %cst_85 : f32 to vector<8x128xf32>
    %394 = arith.subf %393, %386 : vector<8x128xf32>
    %395 = arith.mulf %394, %392 : vector<8x128xf32>
    %396 = arith.mulf %386, %367 : vector<8x128xf32>
    %397 = arith.addf %395, %396 : vector<8x128xf32>
    %c32_86 = arith.constant 32 : index
    %c0_87 = arith.constant 0 : index
    %398 = vector.load %arg4[%c32_86, %c0_87] : memref<64x128xf32, #tpu.memory_space<vmem>>, vector<8x128xf32>
    tpu.vector_store %arg4[%c32_86, %c0_87], %397 {strides = array<i32>} : memref<64x128xf32, #tpu.memory_space<vmem>>, vector<8x128xf32>,
    %399 = vector.extract_strided_slice %255 {offsets = [40, 0], sizes = [8, 384], strides = [1, 1]} : vector<64x384xf32> to vector<8x384xf32>
    %cst_88 = arith.constant dense<0.000000e+00> : vector<8x384xf32>
    %400 = tpu.matmul %397, %250, %cst_88 {dimension_numbers = #tpu.dot_dimension_numbers<[1], [0], [0], [1], [0, 0, 1, 1], [], []>} : vector<8x128xf32>, vector<128x384xf32>, vector<8x384xf32> -> vector<8x384xf32>
    %401 = vector.extract_strided_slice %399 {offsets = [0, 0], sizes = [8, 128], strides = [1, 1]} : vector<8x384xf32> to vector<8x128xf32>
    %402 = vector.extract_strided_slice %400 {offsets = [0, 0], sizes = [8, 128], strides = [1, 1]} : vector<8x384xf32> to vector<8x128xf32>
    %403 = arith.addf %401, %402 : vector<8x128xf32>
    %404 = arith.negf %403 : vector<8x128xf32>
    %405 = math.exp %404 : vector<8x128xf32>
    %cst_89 = arith.constant 1.000000e+00 : f32
    %406 = vector.broadcast %cst_89 : f32 to vector<8x128xf32>
    %407 = arith.addf %406, %405 : vector<8x128xf32>
    %408 = arith.divf %406, %407 : vector<8x128xf32>
    %409 = vector.extract_strided_slice %399 {offsets = [0, 128], sizes = [8, 128], strides = [1, 1]} : vector<8x384xf32> to vector<8x128xf32>
    %410 = vector.extract_strided_slice %400 {offsets = [0, 128], sizes = [8, 128], strides = [1, 1]} : vector<8x384xf32> to vector<8x128xf32>
    %411 = arith.addf %409, %410 : vector<8x128xf32>
    %412 = arith.negf %411 : vector<8x128xf32>
    %413 = math.exp %412 : vector<8x128xf32>
    %cst_90 = arith.constant 1.000000e+00 : f32
    %414 = vector.broadcast %cst_90 : f32 to vector<8x128xf32>
    %415 = arith.addf %414, %413 : vector<8x128xf32>
    %416 = arith.divf %414, %415 : vector<8x128xf32>
    %417 = vector.extract_strided_slice %399 {offsets = [0, 256], sizes = [8, 128], strides = [1, 1]} : vector<8x384xf32> to vector<8x128xf32>
    %418 = vector.extract_strided_slice %400 {offsets = [0, 256], sizes = [8, 128], strides = [1, 1]} : vector<8x384xf32> to vector<8x128xf32>
    %419 = arith.addf %418, %257 : vector<8x128xf32>
    %420 = arith.mulf %408, %419 : vector<8x128xf32>
    %421 = arith.addf %417, %420 : vector<8x128xf32>
    %422 = math.tanh %421 : vector<8x128xf32>
    %cst_91 = arith.constant 1.000000e+00 : f32
    %423 = vector.broadcast %cst_91 : f32 to vector<8x128xf32>
    %424 = arith.subf %423, %416 : vector<8x128xf32>
    %425 = arith.mulf %424, %422 : vector<8x128xf32>
    %426 = arith.mulf %416, %397 : vector<8x128xf32>
    %427 = arith.addf %425, %426 : vector<8x128xf32>
    %c40_92 = arith.constant 40 : index
    %c0_93 = arith.constant 0 : index
    %428 = vector.load %arg4[%c40_92, %c0_93] : memref<64x128xf32, #tpu.memory_space<vmem>>, vector<8x128xf32>
    tpu.vector_store %arg4[%c40_92, %c0_93], %427 {strides = array<i32>} : memref<64x128xf32, #tpu.memory_space<vmem>>, vector<8x128xf32>,
    %429 = vector.extract_strided_slice %255 {offsets = [48, 0], sizes = [8, 384], strides = [1, 1]} : vector<64x384xf32> to vector<8x384xf32>
    %cst_94 = arith.constant dense<0.000000e+00> : vector<8x384xf32>
    %430 = tpu.matmul %427, %250, %cst_94 {dimension_numbers = #tpu.dot_dimension_numbers<[1], [0], [0], [1], [0, 0, 1, 1], [], []>} : vector<8x128xf32>, vector<128x384xf32>, vector<8x384xf32> -> vector<8x384xf32>
    %431 = vector.extract_strided_slice %429 {offsets = [0, 0], sizes = [8, 128], strides = [1, 1]} : vector<8x384xf32> to vector<8x128xf32>
    %432 = vector.extract_strided_slice %430 {offsets = [0, 0], sizes = [8, 128], strides = [1, 1]} : vector<8x384xf32> to vector<8x128xf32>
    %433 = arith.addf %431, %432 : vector<8x128xf32>
    %434 = arith.negf %433 : vector<8x128xf32>
    %435 = math.exp %434 : vector<8x128xf32>
    %cst_95 = arith.constant 1.000000e+00 : f32
    %436 = vector.broadcast %cst_95 : f32 to vector<8x128xf32>
    %437 = arith.addf %436, %435 : vector<8x128xf32>
    %438 = arith.divf %436, %437 : vector<8x128xf32>
    %439 = vector.extract_strided_slice %429 {offsets = [0, 128], sizes = [8, 128], strides = [1, 1]} : vector<8x384xf32> to vector<8x128xf32>
    %440 = vector.extract_strided_slice %430 {offsets = [0, 128], sizes = [8, 128], strides = [1, 1]} : vector<8x384xf32> to vector<8x128xf32>
    %441 = arith.addf %439, %440 : vector<8x128xf32>
    %442 = arith.negf %441 : vector<8x128xf32>
    %443 = math.exp %442 : vector<8x128xf32>
    %cst_96 = arith.constant 1.000000e+00 : f32
    %444 = vector.broadcast %cst_96 : f32 to vector<8x128xf32>
    %445 = arith.addf %444, %443 : vector<8x128xf32>
    %446 = arith.divf %444, %445 : vector<8x128xf32>
    %447 = vector.extract_strided_slice %429 {offsets = [0, 256], sizes = [8, 128], strides = [1, 1]} : vector<8x384xf32> to vector<8x128xf32>
    %448 = vector.extract_strided_slice %430 {offsets = [0, 256], sizes = [8, 128], strides = [1, 1]} : vector<8x384xf32> to vector<8x128xf32>
    %449 = arith.addf %448, %257 : vector<8x128xf32>
    %450 = arith.mulf %438, %449 : vector<8x128xf32>
    %451 = arith.addf %447, %450 : vector<8x128xf32>
    %452 = math.tanh %451 : vector<8x128xf32>
    %cst_97 = arith.constant 1.000000e+00 : f32
    %453 = vector.broadcast %cst_97 : f32 to vector<8x128xf32>
    %454 = arith.subf %453, %446 : vector<8x128xf32>
    %455 = arith.mulf %454, %452 : vector<8x128xf32>
    %456 = arith.mulf %446, %427 : vector<8x128xf32>
    %457 = arith.addf %455, %456 : vector<8x128xf32>
    %c48_98 = arith.constant 48 : index
    %c0_99 = arith.constant 0 : index
    %458 = vector.load %arg4[%c48_98, %c0_99] : memref<64x128xf32, #tpu.memory_space<vmem>>, vector<8x128xf32>
    tpu.vector_store %arg4[%c48_98, %c0_99], %457 {strides = array<i32>} : memref<64x128xf32, #tpu.memory_space<vmem>>, vector<8x128xf32>,
    %459 = vector.extract_strided_slice %255 {offsets = [56, 0], sizes = [8, 384], strides = [1, 1]} : vector<64x384xf32> to vector<8x384xf32>
    %cst_100 = arith.constant dense<0.000000e+00> : vector<8x384xf32>
    %460 = tpu.matmul %457, %250, %cst_100 {dimension_numbers = #tpu.dot_dimension_numbers<[1], [0], [0], [1], [0, 0, 1, 1], [], []>} : vector<8x128xf32>, vector<128x384xf32>, vector<8x384xf32> -> vector<8x384xf32>
    %461 = vector.extract_strided_slice %459 {offsets = [0, 0], sizes = [8, 128], strides = [1, 1]} : vector<8x384xf32> to vector<8x128xf32>
    %462 = vector.extract_strided_slice %460 {offsets = [0, 0], sizes = [8, 128], strides = [1, 1]} : vector<8x384xf32> to vector<8x128xf32>
    %463 = arith.addf %461, %462 : vector<8x128xf32>
    %464 = arith.negf %463 : vector<8x128xf32>
    %465 = math.exp %464 : vector<8x128xf32>
    %cst_101 = arith.constant 1.000000e+00 : f32
    %466 = vector.broadcast %cst_101 : f32 to vector<8x128xf32>
    %467 = arith.addf %466, %465 : vector<8x128xf32>
    %468 = arith.divf %466, %467 : vector<8x128xf32>
    %469 = vector.extract_strided_slice %459 {offsets = [0, 128], sizes = [8, 128], strides = [1, 1]} : vector<8x384xf32> to vector<8x128xf32>
    %470 = vector.extract_strided_slice %460 {offsets = [0, 128], sizes = [8, 128], strides = [1, 1]} : vector<8x384xf32> to vector<8x128xf32>
    %471 = arith.addf %469, %470 : vector<8x128xf32>
    %472 = arith.negf %471 : vector<8x128xf32>
    %473 = math.exp %472 : vector<8x128xf32>
    %cst_102 = arith.constant 1.000000e+00 : f32
    %474 = vector.broadcast %cst_102 : f32 to vector<8x128xf32>
    %475 = arith.addf %474, %473 : vector<8x128xf32>
    %476 = arith.divf %474, %475 : vector<8x128xf32>
    %477 = vector.extract_strided_slice %459 {offsets = [0, 256], sizes = [8, 128], strides = [1, 1]} : vector<8x384xf32> to vector<8x128xf32>
    %478 = vector.extract_strided_slice %460 {offsets = [0, 256], sizes = [8, 128], strides = [1, 1]} : vector<8x384xf32> to vector<8x128xf32>
    %479 = arith.addf %478, %257 : vector<8x128xf32>
    %480 = arith.mulf %468, %479 : vector<8x128xf32>
    %481 = arith.addf %477, %480 : vector<8x128xf32>
    %482 = math.tanh %481 : vector<8x128xf32>
    %cst_103 = arith.constant 1.000000e+00 : f32
    %483 = vector.broadcast %cst_103 : f32 to vector<8x128xf32>
    %484 = arith.subf %483, %476 : vector<8x128xf32>
    %485 = arith.mulf %484, %482 : vector<8x128xf32>
    %486 = arith.mulf %476, %457 : vector<8x128xf32>
    %487 = arith.addf %485, %486 : vector<8x128xf32>
    %c56_104 = arith.constant 56 : index
    %c0_105 = arith.constant 0 : index
    %488 = vector.load %arg4[%c56_104, %c0_105] : memref<64x128xf32, #tpu.memory_space<vmem>>, vector<8x128xf32>
    tpu.vector_store %arg4[%c56_104, %c0_105], %487 {strides = array<i32>} : memref<64x128xf32, #tpu.memory_space<vmem>>, vector<8x128xf32>,
    %c0_106 = arith.constant 0 : index
    %c0_107 = arith.constant 0 : index
    %489 = vector.load %arg4[%c0_106, %c0_107] : memref<64x128xf32, #tpu.memory_space<vmem>>, vector<64x128xf32>
    %c152 = arith.constant 152 : index
    %c0_108 = arith.constant 0 : index
    %490 = vector.load %arg1[%c152, %c0_108] : memref<424x128xf32, #tpu.memory_space<vmem>>, vector<128x128xf32>
    %c280 = arith.constant 280 : index
    %c0_109 = arith.constant 0 : index
    %491 = vector.load %arg1[%c280, %c0_109] : memref<424x128xf32, #tpu.memory_space<vmem>>, vector<1x128xf32>
    %cst_110 = arith.constant dense<0.000000e+00> : vector<64x128xf32>
    %492 = tpu.matmul %489, %490, %cst_110 {dimension_numbers = #tpu.dot_dimension_numbers<[1], [0], [0], [1], [0, 0, 1, 1], [], []>} : vector<64x128xf32>, vector<128x128xf32>, vector<64x128xf32> -> vector<64x128xf32>
    %493 = vector.broadcast %491 : vector<1x128xf32> to vector<64x128xf32>
    %494 = arith.addf %492, %493 : vector<64x128xf32>
    %cst_111 = arith.constant 0.000000e+00 : f32
    %495 = vector.broadcast %cst_111 : f32 to vector<64x128xf32>
    %496 = arith.maximumf %494, %495 : vector<64x128xf32>
    %c288 = arith.constant 288 : index
    %c0_112 = arith.constant 0 : index
    %497 = vector.load %arg1[%c288, %c0_112] : memref<424x128xf32, #tpu.memory_space<vmem>>, vector<128x128xf32>
    %c416 = arith.constant 416 : index
    %c0_113 = arith.constant 0 : index
    %498 = vector.load %arg1[%c416, %c0_113] : memref<424x128xf32, #tpu.memory_space<vmem>>, vector<1x128xf32>
    %cst_114 = arith.constant dense<0.000000e+00> : vector<64x128xf32>
    %499 = tpu.matmul %496, %497, %cst_114 {dimension_numbers = #tpu.dot_dimension_numbers<[1], [0], [0], [1], [0, 0, 1, 1], [], []>} : vector<64x128xf32>, vector<128x128xf32>, vector<64x128xf32> -> vector<64x128xf32>
    %500 = vector.broadcast %498 : vector<1x128xf32> to vector<64x128xf32>
    %501 = arith.addf %499, %500 : vector<64x128xf32>
    %c0_115 = arith.constant 0 : index
    %c0_116 = arith.constant 0 : index
    %502 = vector.load %arg3[%c0_115, %c0_116] : memref<64x128xf32, #tpu.memory_space<vmem>>, vector<64x128xf32>
    tpu.vector_store %arg3[%c0_115, %c0_116], %501 {strides = array<i32>} : memref<64x128xf32, #tpu.memory_space<vmem>>, vector<64x128xf32>,
    return
  }
}

</mosaic_0001>

<llo_original>
// kernel: fwd.1
$region0: #{fwd.1}
  #allocation0 [shape = 'u32[]', space=smem, size = 0x4, offset = 0x4, fixed_abs, tag = 'smem constant byte address 0x4 - core index']
  #allocation1 [shape = 'u32[72,128]{1,0:T(1,128)}', space=vmem, size = 0x9000, scoped, tag = 'internal scratch']
  #allocation2 [shape = 'f32[64,128]{1,0:T(8,128)}', space=vmem, size = 0x8000, scoped, tag = 'scratch operand']
  %s0 = inlined_call_operand.vmem [shape: f32[64,128], index: 0, kind: input, shape index: {}]
  %s1 = inlined_call_operand.hbm [shape: f32[424,128], index: 1, kind: input, shape index: {}]
  %s2 = inlined_call_operand.hbm [shape: f32[528,384], index: 2, kind: input, shape index: {}]
  %s3 = inlined_call_operand.vmem [shape: f32[64,128], index: 3, kind: output, shape index: {}]
  %s4 = sld [smem:[#allocation0]]
  $region30: #{fwd.1} parent=0
    _
  %s6 = ssub.s32 1, %s4
  %s7 = scalar_select 0, %s6, %s4
  $region1: #{fwd.1} parent=0
    #allocation3 [shape = 'u8[217088]{0}', space=vmem, size = 0x35000, scoped, tag = 'input window, operand 1, single buffered']
    #allocation4 [shape = 's32[1]{0}', space=sflag, size = 0x4, scoped, tag = 'scoped memory for fwd.1']
    #allocation5 [shape = 'u8[811008]{0}', space=vmem, size = 0xc6000, scoped, tag = 'input window, operand 2, single buffered']
    #allocation6 [shape = 's32[1]{0}', space=sflag, size = 0x4, scoped, tag = 'scoped memory for fwd.1']
    %8 = vsyncpa [#allocation4], 0
    %9 = vsyncpa [#allocation6], 0
    // Predicated region
    $region2: #{fwd.1} parent=1 // pred_check
      _
    $region3: #{fwd.1} parent=1 // pred_check_branch
      %11 = sbr.rel (0) target = $region5
    $region4: #{fwd.1} parent=1 // pred_region
      _
    $region5: #{fwd.1} parent=1 // pred_fallthru
      _
    // Predicated region
    $region6: #{fwd.1} parent=1 // pred_check
      _
    $region7: #{fwd.1} parent=1 // pred_check_branch
      %13 = sbr.rel (0) target = $region9
    $region8: #{fwd.1} parent=1 // pred_region
      %15 = vsyncadd [#allocation4], 0
      %s16 = sshll.u32 %s1, 4
      %s17 = int_to_ptr.hbm [resolvable:$true] %s16
      %s18 = sshll.u32 [#allocation3], 4
      %s19 = int_to_ptr.vmem [resolvable:$true] %s18
      %24 = dma.hbm_to_vmem [thread:$0]  %s17, 6784, %s19, [#allocation4], 128, 128, 8
    $region9: #{fwd.1} parent=1 // pred_fallthru
      _
    // Predicated region
    $region10: #{fwd.1} parent=1 // pred_check
      _
    $region11: #{fwd.1} parent=1 // pred_check_branch
      %26 = sbr.rel (0) target = $region13
    $region12: #{fwd.1} parent=1 // pred_region
      %28 = vsyncadd [#allocation6], 0
      %s29 = sshll.u32 %s2, 4
      %s30 = int_to_ptr.hbm [resolvable:$true] %s29
      %s31 = sshll.u32 [#allocation5], 4
      %s32 = int_to_ptr.vmem [resolvable:$true] %s31
      %37 = dma.hbm_to_vmem [thread:$0]  %s30, 25344, %s32, [#allocation6], 384, 384, 24
    $region13: #{fwd.1} parent=1 // pred_fallthru
      _
    // Predicated region
    $region14: #{fwd.1} parent=1 // pred_check
      _
    $region15: #{fwd.1} parent=1 // pred_check_branch
      %39 = sbr.rel (0) target = $region17
    $region16: #{fwd.1} parent=1 // pred_region
      %41 = dma.done [#allocation4], 6784
    $region17: #{fwd.1} parent=1 // pred_fallthru
      _
    // Predicated region
    $region18: #{fwd.1} parent=1 // pred_check
      _
    $region19: #{fwd.1} parent=1 // pred_check_branch
      %43 = sbr.rel (0) target = $region21
    $region20: #{fwd.1} parent=1 // pred_region
      %45 = dma.done [#allocation6], 25344
    $region21: #{fwd.1} parent=1 // pred_fallthru
      _
    %v46 = vld [vmem:[%s0] sm:$0xff]
    %v47 = vld [vmem:[%s0 + $0x8] sm:$0xff]
    %v48 = vld [vmem:[%s0 + $0x10] sm:$0xff]
    %v49 = vld [vmem:[%s0 + $0x18] sm:$0xff]
    %v50 = vld [vmem:[%s0 + $0x20] sm:$0xff]
    %v51 = vld [vmem:[%s0 + $0x28] sm:$0xff]
    %v52 = vld [vmem:[%s0 + $0x30] sm:$0xff]
    %v53 = vld [vmem:[%s0 + $0x38] sm:$0xff]
    %v54 = vld [vmem:[#allocation3] sm:$0xff]
    %v55 = vld [vmem:[#allocation3 + $0x8] sm:$0xff]
    %v56 = vld [vmem:[#allocation3 + $0x10] sm:$0xff]
    %v57 = vld [vmem:[#allocation3 + $0x18] sm:$0xff]
    %v58 = vld [vmem:[#allocation3 + $0x20] sm:$0xff]
    %v59 = vld [vmem:[#allocation3 + $0x28] sm:$0xff]
    %v60 = vld [vmem:[#allocation3 + $0x30] sm:$0xff]
    %v61 = vld [vmem:[#allocation3 + $0x38] sm:$0xff]
    %v62 = vld [vmem:[#allocation3 + $0x40] sm:$0xff]
    %v63 = vld [vmem:[#allocation3 + $0x48] sm:$0xff]
    %v64 = vld [vmem:[#allocation3 + $0x50] sm:$0xff]
    %v65 = vld [vmem:[#allocation3 + $0x58] sm:$0xff]
    %v66 = vld [vmem:[#allocation3 + $0x60] sm:$0xff]
    %v67 = vld [vmem:[#allocation3 + $0x68] sm:$0xff]
    %v68 = vld [vmem:[#allocation3 + $0x70] sm:$0xff]
    %v69 = vld [vmem:[#allocation3 + $0x78] sm:$0xff]
    %v70 = vld [vmem:[#allocation3 + $0x80] sm:$0x1]
    %v71 = vperm.slane %v70, 0
    %72 = vmatpush.msra.mxu0 %v69
    %73 = vmatpush.msra.mxu0 %v68
    %74 = vmatpush.msra.mxu0 %v67
    %75 = vmatpush.msra.mxu0 %v66
    %76 = vmatpush.msra.mxu0 %v65
    %77 = vmatpush.msra.mxu0 %v64
    %78 = vmatpush.msra.mxu0 %v63
    %79 = vmatpush.msra.mxu0 %v62
    %80 = vmatpush.msra.mxu0 %v61
    %81 = vmatpush.msra.mxu0 %v60
    %82 = vmatpush.msra.mxu0 %v59
    %83 = vmatpush.msra.mxu0 %v58
    %84 = vmatpush.msra.mxu0 %v57
    %85 = vmatpush.msra.mxu0 %v56
    %86 = vmatpush.msra.mxu0 %v55
    %87 = vmatpush.msra.mxu0 %v54
    %88 = vmatmul.f32.gmra.mxu0 %v46
    %v89 = vpop.f32.mrf.mxu0
    %v90 = vadd.f32 %v71, %v89
    %91 = vmatmul.f32.gmra.mxu0 %v47
    %v92 = vpop.f32.mrf.mxu0
    %v93 = vadd.f32 %v71, %v92
    %94 = vmatmul.f32.gmra.mxu0 %v48
    %v95 = vpop.f32.mrf.mxu0
    %v96 = vadd.f32 %v71, %v95
    %97 = vmatmul.f32.gmra.mxu0 %v49
    %v98 = vpop.f32.mrf.mxu0
    %v99 = vadd.f32 %v71, %v98
    %100 = vmatmul.f32.gmra.mxu0 %v50
    %v101 = vpop.f32.mrf.mxu0
    %v102 = vadd.f32 %v71, %v101
    %103 = vmatmul.f32.gmra.mxu0 %v51
    %v104 = vpop.f32.mrf.mxu0
    %v105 = vadd.f32 %v71, %v104
    %106 = vmatmul.f32.gmra.mxu0 %v52
    %v107 = vpop.f32.mrf.mxu0
    %v108 = vadd.f32 %v71, %v107
    %109 = vmatmul.f32.gmra.mxu0 %v53
    %v110 = vpop.f32.mrf.mxu0
    %v111 = vadd.f32 %v71, %v110
    %112 = vdwg.mxu0
    %v113 = vmax.f32 %v90, 0.0
    %v114 = vmax.f32 %v93, 0.0
    %v115 = vmax.f32 %v96, 0.0
    %v116 = vmax.f32 %v99, 0.0
    %v117 = vmax.f32 %v102, 0.0
    %v118 = vmax.f32 %v105, 0.0
    %v119 = vmax.f32 %v108, 0.0
    %v120 = vmax.f32 %v111, 0.0
    %v121 = vld [vmem:[#allocation5] sm:$0xff]
    %v122 = vld [vmem:[#allocation5 + $0x8] sm:$0xff]
    %v123 = vld [vmem:[#allocation5 + $0x10] sm:$0xff]
    %v124 = vld [vmem:[#allocation5 + $0x18] sm:$0xff]
    %v125 = vld [vmem:[#allocation5 + $0x20] sm:$0xff]
    %v126 = vld [vmem:[#allocation5 + $0x28] sm:$0xff]
    %v127 = vld [vmem:[#allocation5 + $0x30] sm:$0xff]
    %v128 = vld [vmem:[#allocation5 + $0x38] sm:$0xff]
    %v129 = vld [vmem:[#allocation5 + $0x40] sm:$0xff]
    %v130 = vld [vmem:[#allocation5 + $0x48] sm:$0xff]
    %v131 = vld [vmem:[#allocation5 + $0x50] sm:$0xff]
    %v132 = vld [vmem:[#allocation5 + $0x58] sm:$0xff]
    %v133 = vld [vmem:[#allocation5 + $0x60] sm:$0xff]
    %v134 = vld [vmem:[#allocation5 + $0x68] sm:$0xff]
    %v135 = vld [vmem:[#allocation5 + $0x70] sm:$0xff]
    %v136 = vld [vmem:[#allocation5 + $0x78] sm:$0xff]
    %v137 = vld [vmem:[#allocation5 + $0x80] sm:$0xff]
    %v138 = vld [vmem:[#allocation5 + $0x88] sm:$0xff]
    %v139 = vld [vmem:[#allocation5 + $0x90] sm:$0xff]
    %v140 = vld [vmem:[#allocation5 + $0x98] sm:$0xff]
    %v141 = vld [vmem:[#allocation5 + $0xa0] sm:$0xff]
    %v142 = vld [vmem:[#allocation5 + $0xa8] sm:$0xff]
    %v143 = vld [vmem:[#allocation5 + $0xb0] sm:$0xff]
    %v144 = vld [vmem:[#allocation5 + $0xb8] sm:$0xff]
    %v145 = vld [vmem:[#allocation5 + $0xc0] sm:$0xff]
    %v146 = vld [vmem:[#allocation5 + $0xc8] sm:$0xff]
    %v147 = vld [vmem:[#allocation5 + $0xd0] sm:$0xff]
    %v148 = vld [vmem:[#allocation5 + $0xd8] sm:$0xff]
    %v149 = vld [vmem:[#allocation5 + $0xe0] sm:$0xff]
    %v150 = vld [vmem:[#allocation5 + $0xe8] sm:$0xff]
    %v151 = vld [vmem:[#allocation5 + $0xf0] sm:$0xff]
    %v152 = vld [vmem:[#allocation5 + $0xf8] sm:$0xff]
    %v153 = vld [vmem:[#allocation5 + $0x100] sm:$0xff]
    %v154 = vld [vmem:[#allocation5 + $0x108] sm:$0xff]
    %v155 = vld [vmem:[#allocation5 + $0x110] sm:$0xff]
    %v156 = vld [vmem:[#allocation5 + $0x118] sm:$0xff]
    %v157 = vld [vmem:[#allocation5 + $0x120] sm:$0xff]
    %v158 = vld [vmem:[#allocation5 + $0x128] sm:$0xff]
    %v159 = vld [vmem:[#allocation5 + $0x130] sm:$0xff]
    %v160 = vld [vmem:[#allocation5 + $0x138] sm:$0xff]
    %v161 = vld [vmem:[#allocation5 + $0x140] sm:$0xff]
    %v162 = vld [vmem:[#allocation5 + $0x148] sm:$0xff]
    %v163 = vld [vmem:[#allocation5 + $0x150] sm:$0xff]
    %v164 = vld [vmem:[#allocation5 + $0x158] sm:$0xff]
    %v165 = vld [vmem:[#allocation5 + $0x160] sm:$0xff]
    %v166 = vld [vmem:[#allocation5 + $0x168] sm:$0xff]
    %v167 = vld [vmem:[#allocation5 + $0x170] sm:$0xff]
    %v168 = vld [vmem:[#allocation5 + $0x178] sm:$0xff]
    %v169 = vld [vmem:[#allocation5 + $0x180] sm:$0xff]
    %v170 = vld [vmem:[#allocation5 + $0x188] sm:$0xff]
    %v171 = vld [vmem:[#allocation5 + $0x190] sm:$0xff]
    %v172 = vld [vmem:[#allocation5 + $0x198] sm:$0xff]
    %v173 = vld [vmem:[#allocation5 + $0x1a0] sm:$0xff]
    %v174 = vld [vmem:[#allocation5 + $0x1a8] sm:$0xff]
    %v175 = vld [vmem:[#allocation5 + $0x1b0] sm:$0xff]
    %v176 = vld [vmem:[#allocation5 + $0x1b8] sm:$0xff]
    %v177 = vld [vmem:[#allocation5 + $0x1c0] sm:$0xff]
    %v178 = vld [vmem:[#allocation5 + $0x1c8] sm:$0xff]
    %v179 = vld [vmem:[#allocation5 + $0x1d0] sm:$0xff]
    %v180 = vld [vmem:[#allocation5 + $0x1d8] sm:$0xff]
    %v181 = vld [vmem:[#allocation5 + $0x1e0] sm:$0xff]
    %v182 = vld [vmem:[#allocation5 + $0x1e8] sm:$0xff]
    %v183 = vld [vmem:[#allocation5 + $0x1f0] sm:$0xff]
    %v184 = vld [vmem:[#allocation5 + $0x1f8] sm:$0xff]
    %v185 = vld [vmem:[#allocation5 + $0x200] sm:$0xff]
    %v186 = vld [vmem:[#allocation5 + $0x208] sm:$0xff]
    %v187 = vld [vmem:[#allocation5 + $0x210] sm:$0xff]
    %v188 = vld [vmem:[#allocation5 + $0x218] sm:$0xff]
    %v189 = vld [vmem:[#allocation5 + $0x220] sm:$0xff]
    %v190 = vld [vmem:[#allocation5 + $0x228] sm:$0xff]
    %v191 = vld [vmem:[#allocation5 + $0x230] sm:$0xff]
    %v192 = vld [vmem:[#allocation5 + $0x238] sm:$0xff]
    %v193 = vld [vmem:[#allocation5 + $0x240] sm:$0xff]
    %v194 = vld [vmem:[#allocation5 + $0x248] sm:$0xff]
    %v195 = vld [vmem:[#allocation5 + $0x250] sm:$0xff]
    %v196 = vld [vmem:[#allocation5 + $0x258] sm:$0xff]
    %v197 = vld [vmem:[#allocation5 + $0x260] sm:$0xff]
    %v198 = vld [vmem:[#allocation5 + $0x268] sm:$0xff]
    %v199 = vld [vmem:[#allocation5 + $0x270] sm:$0xff]
    %v200 = vld [vmem:[#allocation5 + $0x278] sm:$0xff]
    %v201 = vld [vmem:[#allocation5 + $0x280] sm:$0xff]
    %v202 = vld [vmem:[#allocation5 + $0x288] sm:$0xff]
    %v203 = vld [vmem:[#allocation5 + $0x290] sm:$0xff]
    %v204 = vld [vmem:[#allocation5 + $0x298] sm:$0xff]
    %v205 = vld [vmem:[#allocation5 + $0x2a0] sm:$0xff]
    %v206 = vld [vmem:[#allocation5 + $0x2a8] sm:$0xff]
    %v207 = vld [vmem:[#allocation5 + $0x2b0] sm:$0xff]
    %v208 = vld [vmem:[#allocation5 + $0x2b8] sm:$0xff]
    %v209 = vld [vmem:[#allocation5 + $0x2c0] sm:$0xff]
    %v210 = vld [vmem:[#allocation5 + $0x2c8] sm:$0xff]
    %v211 = vld [vmem:[#allocation5 + $0x2d0] sm:$0xff]
    %v212 = vld [vmem:[#allocation5 + $0x2d8] sm:$0xff]
    %v213 = vld [vmem:[#allocation5 + $0x2e0] sm:$0xff]
    %v214 = vld [vmem:[#allocation5 + $0x2e8] sm:$0xff]
    %v215 = vld [vmem:[#allocation5 + $0x2f0] sm:$0xff]
    %v216 = vld [vmem:[#allocation5 + $0x2f8] sm:$0xff]
    %s217 = scalar_lea.vmem [#allocation5], 768
    %v218 = vld [vmem:[%s217] ss:$8 sm:$0x7]
    %v219 = vld [vmem:[#allocation3 + $0x88] sm:$0x1]
    %v221 = vperm.slane %v218, 0
    %v222 = vperm.slane %v218, 1
    %v223 = vperm.slane %v218, 2
    %227 = vmatpush.msra.mxu0 %v166
    %228 = vmatpush.msra.mxu0 %v163
    %229 = vmatpush.msra.mxu0 %v160
    %230 = vmatpush.msra.mxu0 %v157
    %231 = vmatpush.msra.mxu0 %v154
    %232 = vmatpush.msra.mxu0 %v151
    %233 = vmatpush.msra.mxu0 %v148
    %234 = vmatpush.msra.mxu0 %v145
    %235 = vmatpush.msra.mxu0 %v142
    %236 = vmatpush.msra.mxu0 %v139
    %237 = vmatpush.msra.mxu0 %v136
    %238 = vmatpush.msra.mxu0 %v133
    %239 = vmatpush.msra.mxu0 %v130
    %240 = vmatpush.msra.mxu0 %v127
    %241 = vmatpush.msra.mxu0 %v124
    %242 = vmatpush.msra.mxu0 %v121
    %243 = vmatmul.f32.gmra.mxu0 %v113
    %v244 = vpop.f32.mrf.mxu0
    %v245 = vadd.f32 %v221, %v244
    %246 = vmatmul.f32.gmra.mxu0 %v114
    %v247 = vpop.f32.mrf.mxu0
    %v248 = vadd.f32 %v221, %v247
    %249 = vmatmul.f32.gmra.mxu0 %v115
    %v250 = vpop.f32.mrf.mxu0
    %v251 = vadd.f32 %v221, %v250
    %252 = vmatmul.f32.gmra.mxu0 %v116
    %v253 = vpop.f32.mrf.mxu0
    %v254 = vadd.f32 %v221, %v253
    %255 = vmatmul.f32.gmra.mxu0 %v117
    %v256 = vpop.f32.mrf.mxu0
    %v257 = vadd.f32 %v221, %v256
    %258 = vmatmul.f32.gmra.mxu0 %v118
    %v259 = vpop.f32.mrf.mxu0
    %v260 = vadd.f32 %v221, %v259
    %261 = vmatmul.f32.gmra.mxu0 %v119
    %v262 = vpop.f32.mrf.mxu0
    %v263 = vadd.f32 %v221, %v262
    %264 = vmatmul.f32.gmra.mxu0 %v120
    %v265 = vpop.f32.mrf.mxu0
    %v266 = vadd.f32 %v221, %v265
    %267 = vdwg.mxu0
    %268 = vmatpush.msra.mxu0 %v167
    %269 = vmatpush.msra.mxu0 %v164
    %270 = vmatpush.msra.mxu0 %v161
    %271 = vmatpush.msra.mxu0 %v158
    %272 = vmatpush.msra.mxu0 %v155
    %273 = vmatpush.msra.mxu0 %v152
    %274 = vmatpush.msra.mxu0 %v149
    %275 = vmatpush.msra.mxu0 %v146
    %276 = vmatpush.msra.mxu0 %v143
    %277 = vmatpush.msra.mxu0 %v140
    %278 = vmatpush.msra.mxu0 %v137
    %279 = vmatpush.msra.mxu0 %v134
    %280 = vmatpush.msra.mxu0 %v131
    %281 = vmatpush.msra.mxu0 %v128
    %282 = vmatpush.msra.mxu0 %v125
    %283 = vmatpush.msra.mxu0 %v122
    %284 = vmatmul.f32.gmra.mxu0 %v113
    %v285 = vpop.f32.mrf.mxu0
    %v286 = vadd.f32 %v222, %v285
    %287 = vmatmul.f32.gmra.mxu0 %v114
    %v288 = vpop.f32.mrf.mxu0
    %v289 = vadd.f32 %v222, %v288
    %290 = vmatmul.f32.gmra.mxu0 %v115
    %v291 = vpop.f32.mrf.mxu0
    %v292 = vadd.f32 %v222, %v291
    %293 = vmatmul.f32.gmra.mxu0 %v116
    %v294 = vpop.f32.mrf.mxu0
    %v295 = vadd.f32 %v222, %v294
    %296 = vmatmul.f32.gmra.mxu0 %v117
    %v297 = vpop.f32.mrf.mxu0
    %v298 = vadd.f32 %v222, %v297
    %299 = vmatmul.f32.gmra.mxu0 %v118
    %v300 = vpop.f32.mrf.mxu0
    %v301 = vadd.f32 %v222, %v300
    %302 = vmatmul.f32.gmra.mxu0 %v119
    %v303 = vpop.f32.mrf.mxu0
    %v304 = vadd.f32 %v222, %v303
    %305 = vmatmul.f32.gmra.mxu0 %v120
    %v306 = vpop.f32.mrf.mxu0
    %v307 = vadd.f32 %v222, %v306
    %308 = vdwg.mxu0
    %309 = vmatpush.msra.mxu0 %v168
    %310 = vmatpush.msra.mxu0 %v165
    %311 = vmatpush.msra.mxu0 %v162
    %312 = vmatpush.msra.mxu0 %v159
    %313 = vmatpush.msra.mxu0 %v156
    %314 = vmatpush.msra.mxu0 %v153
    %315 = vmatpush.msra.mxu0 %v150
    %316 = vmatpush.msra.mxu0 %v147
    %317 = vmatpush.msra.mxu0 %v144
    %318 = vmatpush.msra.mxu0 %v141
    %319 = vmatpush.msra.mxu0 %v138
    %320 = vmatpush.msra.mxu0 %v135
    %321 = vmatpush.msra.mxu0 %v132
    %322 = vmatpush.msra.mxu0 %v129
    %323 = vmatpush.msra.mxu0 %v126
    %324 = vmatpush.msra.mxu0 %v123
    %325 = vmatmul.f32.gmra.mxu0 %v113
    %v326 = vpop.f32.mrf.mxu0
    %v327 = vadd.f32 %v223, %v326
    %328 = vmatmul.f32.gmra.mxu0 %v114
    %v329 = vpop.f32.mrf.mxu0
    %v330 = vadd.f32 %v223, %v329
    %331 = vmatmul.f32.gmra.mxu0 %v115
    %v332 = vpop.f32.mrf.mxu0
    %v333 = vadd.f32 %v223, %v332
    %334 = vmatmul.f32.gmra.mxu0 %v116
    %v335 = vpop.f32.mrf.mxu0
    %v336 = vadd.f32 %v223, %v335
    %337 = vmatmul.f32.gmra.mxu0 %v117
    %v338 = vpop.f32.mrf.mxu0
    %v339 = vadd.f32 %v223, %v338
    %340 = vmatmul.f32.gmra.mxu0 %v118
    %v341 = vpop.f32.mrf.mxu0
    %v342 = vadd.f32 %v223, %v341
    %343 = vmatmul.f32.gmra.mxu0 %v119
    %v344 = vpop.f32.mrf.mxu0
    %v345 = vadd.f32 %v223, %v344
    %346 = vmatmul.f32.gmra.mxu0 %v120
    %v347 = vpop.f32.mrf.mxu0
    %v348 = vadd.f32 %v223, %v347
    %349 = vdwg.mxu0
    %v350 = vperm.slane %v219, 0
    %v351 = vxor.u32 %v245, 2147483648
    %v352 = vmul.f32 %v351, 1.442695
    %v353 = vpow.pop %v352
    %v354 = vadd.f32 %v353, 1.0
    %v355 = vrcp.pop %v354
    %v356 = vmul.f32 %v354, %v355
    %v357 = vsub.f32 1.0, %v356
    %v358 = vmul.f32 %v355, %v357
    %v359 = vadd.f32 %v355, %v358
    %vm360 = vweird.f32 %v354
    %vm361 = vweird.f32 %v355
    %vm362 = vmor %vm360, %vm361
    %v363 = vsel %vm362, %v355, %v359
    %v364 = vand.u32 2147483647, %v354
    %vm365 = vcmp.eq.f32.partialorder %v364, 8.507059e+37
    %v366 = vand.u32 %v354, 2147483648
    %v367 = vor.u32 1.1754944e-38, %v366
    %v368 = vsel %vm365, %v367, %v363
    %v369 = vmul.f32 1.0, %v368
    %v370 = vxor.u32 %v286, 2147483648
    %v371 = vmul.f32 %v370, 1.442695
    %v372 = vpow.pop %v371
    %v373 = vadd.f32 %v372, 1.0
    %v374 = vrcp.pop %v373
    %v375 = vmul.f32 %v373, %v374
    %v376 = vsub.f32 1.0, %v375
    %v377 = vmul.f32 %v374, %v376
    %v378 = vadd.f32 %v374, %v377
    %vm379 = vweird.f32 %v373
    %vm380 = vweird.f32 %v374
    %vm381 = vmor %vm379, %vm380
    %v382 = vsel %vm381, %v374, %v378
    %v383 = vand.u32 2147483647, %v373
    %vm384 = vcmp.eq.f32.partialorder %v383, 8.507059e+37
    %v385 = vand.u32 %v373, 2147483648
    %v386 = vor.u32 1.1754944e-38, %v385
    %v387 = vsel %vm384, %v386, %v382
    %v388 = vmul.f32 1.0, %v387
    %v389 = vmul.f32 %v369, %v350
    %v390 = vadd.f32 %v327, %v389
    %v391 = vtanh.pop %v390
    %v392 = vsub.f32 1.0, %v388
    %v393 = vmul.f32 %v392, %v391
    %394 = vst [vmem:[#allocation2] sm:$0xff] %v393
    %395 = vmatpush.msra.mxu0 %v214
    %396 = vmatpush.msra.mxu0 %v211
    %397 = vmatpush.msra.mxu0 %v208
    %398 = vmatpush.msra.mxu0 %v205
    %399 = vmatpush.msra.mxu0 %v202
    %400 = vmatpush.msra.mxu0 %v199
    %401 = vmatpush.msra.mxu0 %v196
    %402 = vmatpush.msra.mxu0 %v193
    %403 = vmatpush.msra.mxu0 %v190
    %404 = vmatpush.msra.mxu0 %v187
    %405 = vmatpush.msra.mxu0 %v184
    %406 = vmatpush.msra.mxu0 %v181
    %407 = vmatpush.msra.mxu0 %v178
    %408 = vmatpush.msra.mxu0 %v175
    %409 = vmatpush.msra.mxu0 %v172
    %410 = vmatpush.msra.mxu0 %v169
    %411 = vmatmul.f32.gmra.mxu0 %v393
    %v412 = vpop.f32.mrf.mxu0
    %v413 = vadd.f32 0.0, %v412
    %414 = vdwg.mxu0
    %415 = vmatpush.msra.mxu0 %v215
    %416 = vmatpush.msra.mxu0 %v212
    %417 = vmatpush.msra.mxu0 %v209
    %418 = vmatpush.msra.mxu0 %v206
    %419 = vmatpush.msra.mxu0 %v203
    %420 = vmatpush.msra.mxu0 %v200
    %421 = vmatpush.msra.mxu0 %v197
    %422 = vmatpush.msra.mxu0 %v194
    %423 = vmatpush.msra.mxu0 %v191
    %424 = vmatpush.msra.mxu0 %v188
    %425 = vmatpush.msra.mxu0 %v185
    %426 = vmatpush.msra.mxu0 %v182
    %427 = vmatpush.msra.mxu0 %v179
    %428 = vmatpush.msra.mxu0 %v176
    %429 = vmatpush.msra.mxu0 %v173
    %430 = vmatpush.msra.mxu0 %v170
    %431 = vmatmul.f32.gmra.mxu0 %v393
    %v432 = vpop.f32.mrf.mxu0
    %v433 = vadd.f32 0.0, %v432
    %434 = vdwg.mxu0
    %435 = vmatpush.msra.mxu0 %v216
    %436 = vmatpush.msra.mxu0 %v213
    %437 = vmatpush.msra.mxu0 %v210
    %438 = vmatpush.msra.mxu0 %v207
    %439 = vmatpush.msra.mxu0 %v204
    %440 = vmatpush.msra.mxu0 %v201
    %441 = vmatpush.msra.mxu0 %v198
    %442 = vmatpush.msra.mxu0 %v195
    %443 = vmatpush.msra.mxu0 %v192
    %444 = vmatpush.msra.mxu0 %v189
    %445 = vmatpush.msra.mxu0 %v186
    %446 = vmatpush.msra.mxu0 %v183
    %447 = vmatpush.msra.mxu0 %v180
    %448 = vmatpush.msra.mxu0 %v177
    %449 = vmatpush.msra.mxu0 %v174
    %450 = vmatpush.msra.mxu0 %v171
    %451 = vmatmul.f32.gmra.mxu0 %v393
    %v452 = vpop.f32.mrf.mxu0
    %v453 = vadd.f32 0.0, %v452
    %454 = vdwg.mxu0
    %v455 = vadd.f32 %v248, %v413
    %v456 = vxor.u32 %v455, 2147483648
    %v457 = vmul.f32 %v456, 1.442695
    %v458 = vpow.pop %v457
    %v459 = vadd.f32 %v458, 1.0
    %v460 = vrcp.pop %v459
    %v461 = vmul.f32 %v459, %v460
    %v462 = vsub.f32 1.0, %v461
    %v463 = vmul.f32 %v460, %v462
    %v464 = vadd.f32 %v460, %v463
    %vm465 = vweird.f32 %v459
    %vm466 = vweird.f32 %v460
    %vm467 = vmor %vm465, %vm466
    %v468 = vsel %vm467, %v460, %v464
    %v469 = vand.u32 2147483647, %v459
    %vm470 = vcmp.eq.f32.partialorder %v469, 8.507059e+37
    %v471 = vand.u32 %v459, 2147483648
    %v472 = vor.u32 1.1754944e-38, %v471
    %v473 = vsel %vm470, %v472, %v468
    %v474 = vmul.f32 1.0, %v473
    %v475 = vadd.f32 %v289, %v433
    %v476 = vxor.u32 %v475, 2147483648
    %v477 = vmul.f32 %v476, 1.442695
    %v478 = vpow.pop %v477
    %v479 = vadd.f32 %v478, 1.0
    %v480 = vrcp.pop %v479
    %v481 = vmul.f32 %v479, %v480
    %v482 = vsub.f32 1.0, %v481
    %v483 = vmul.f32 %v480, %v482
    %v484 = vadd.f32 %v480, %v483
    %vm485 = vweird.f32 %v479
    %vm486 = vweird.f32 %v480
    %vm487 = vmor %vm485, %vm486
    %v488 = vsel %vm487, %v480, %v484
    %v489 = vand.u32 2147483647, %v479
    %vm490 = vcmp.eq.f32.partialorder %v489, 8.507059e+37
    %v491 = vand.u32 %v479, 2147483648
    %v492 = vor.u32 1.1754944e-38, %v491
    %v493 = vsel %vm490, %v492, %v488
    %v494 = vmul.f32 1.0, %v493
    %v495 = vadd.f32 %v453, %v350
    %v496 = vmul.f32 %v474, %v495
    %v497 = vadd.f32 %v330, %v496
    %v498 = vtanh.pop %v497
    %v499 = vsub.f32 1.0, %v494
    %v500 = vmul.f32 %v499, %v498
    %v501 = vmul.f32 %v494, %v393
    %v502 = vadd.f32 %v500, %v501
    %503 = vst [vmem:[#allocation2 + $0x8] sm:$0xff] %v502
    %504 = vmatpush.msra.mxu0 %v214
    %505 = vmatpush.msra.mxu0 %v211
    %506 = vmatpush.msra.mxu0 %v208
    %507 = vmatpush.msra.mxu0 %v205
    %508 = vmatpush.msra.mxu0 %v202
    %509 = vmatpush.msra.mxu0 %v199
    %510 = vmatpush.msra.mxu0 %v196
    %511 = vmatpush.msra.mxu0 %v193
    %512 = vmatpush.msra.mxu0 %v190
    %513 = vmatpush.msra.mxu0 %v187
    %514 = vmatpush.msra.mxu0 %v184
    %515 = vmatpush.msra.mxu0 %v181
    %516 = vmatpush.msra.mxu0 %v178
    %517 = vmatpush.msra.mxu0 %v175
    %518 = vmatpush.msra.mxu0 %v172
    %519 = vmatpush.msra.mxu0 %v169
    %520 = vmatmul.f32.gmra.mxu0 %v502
    %v521 = vpop.f32.mrf.mxu0
    %v522 = vadd.f32 0.0, %v521
    %523 = vdwg.mxu0
    %524 = vmatpush.msra.mxu0 %v215
    %525 = vmatpush.msra.mxu0 %v212
    %526 = vmatpush.msra.mxu0 %v209
    %527 = vmatpush.msra.mxu0 %v206
    %528 = vmatpush.msra.mxu0 %v203
    %529 = vmatpush.msra.mxu0 %v200
    %530 = vmatpush.msra.mxu0 %v197
    %531 = vmatpush.msra.mxu0 %v194
    %532 = vmatpush.msra.mxu0 %v191
    %533 = vmatpush.msra.mxu0 %v188
    %534 = vmatpush.msra.mxu0 %v185
    %535 = vmatpush.msra.mxu0 %v182
    %536 = vmatpush.msra.mxu0 %v179
    %537 = vmatpush.msra.mxu0 %v176
    %538 = vmatpush.msra.mxu0 %v173
    %539 = vmatpush.msra.mxu0 %v170
    %540 = vmatmul.f32.gmra.mxu0 %v502
    %v541 = vpop.f32.mrf.mxu0
    %v542 = vadd.f32 0.0, %v541
    %543 = vdwg.mxu0
    %544 = vmatpush.msra.mxu0 %v216
    %545 = vmatpush.msra.mxu0 %v213
    %546 = vmatpush.msra.mxu0 %v210
    %547 = vmatpush.msra.mxu0 %v207
    %548 = vmatpush.msra.mxu0 %v204
    %549 = vmatpush.msra.mxu0 %v201
    %550 = vmatpush.msra.mxu0 %v198
    %551 = vmatpush.msra.mxu0 %v195
    %552 = vmatpush.msra.mxu0 %v192
    %553 = vmatpush.msra.mxu0 %v189
    %554 = vmatpush.msra.mxu0 %v186
    %555 = vmatpush.msra.mxu0 %v183
    %556 = vmatpush.msra.mxu0 %v180
    %557 = vmatpush.msra.mxu0 %v177
    %558 = vmatpush.msra.mxu0 %v174
    %559 = vmatpush.msra.mxu0 %v171
    %560 = vmatmul.f32.gmra.mxu0 %v502
    %v561 = vpop.f32.mrf.mxu0
    %v562 = vadd.f32 0.0, %v561
    %563 = vdwg.mxu0
    %v564 = vadd.f32 %v251, %v522
    %v565 = vxor.u32 %v564, 2147483648
    %v566 = vmul.f32 %v565, 1.442695
    %v567 = vpow.pop %v566
    %v568 = vadd.f32 %v567, 1.0
    %v569 = vrcp.pop %v568
    %v570 = vmul.f32 %v568, %v569
    %v571 = vsub.f32 1.0, %v570
    %v572 = vmul.f32 %v569, %v571
    %v573 = vadd.f32 %v569, %v572
    %vm574 = vweird.f32 %v568
    %vm575 = vweird.f32 %v569
    %vm576 = vmor %vm574, %vm575
    %v577 = vsel %vm576, %v569, %v573
    %v578 = vand.u32 2147483647, %v568
    %vm579 = vcmp.eq.f32.partialorder %v578, 8.507059e+37
    %v580 = vand.u32 %v568, 2147483648
    %v581 = vor.u32 1.1754944e-38, %v580
    %v582 = vsel %vm579, %v581, %v577
    %v583 = vmul.f32 1.0, %v582
    %v584 = vadd.f32 %v292, %v542
    %v585 = vxor.u32 %v584, 2147483648
    %v586 = vmul.f32 %v585, 1.442695
    %v587 = vpow.pop %v586
    %v588 = vadd.f32 %v587, 1.0
    %v589 = vrcp.pop %v588
    %v590 = vmul.f32 %v588, %v589
    %v591 = vsub.f32 1.0, %v590
    %v592 = vmul.f32 %v589, %v591
    %v593 = vadd.f32 %v589, %v592
    %vm594 = vweird.f32 %v588
    %vm595 = vweird.f32 %v589
    %vm596 = vmor %vm594, %vm595
    %v597 = vsel %vm596, %v589, %v593
    %v598 = vand.u32 2147483647, %v588
    %vm599 = vcmp.eq.f32.partialorder %v598, 8.507059e+37
    %v600 = vand.u32 %v588, 2147483648
    %v601 = vor.u32 1.1754944e-38, %v600
    %v602 = vsel %vm599, %v601, %v597
    %v603 = vmul.f32 1.0, %v602
    %v604 = vadd.f32 %v562, %v350
    %v605 = vmul.f32 %v583, %v604
    %v606 = vadd.f32 %v333, %v605
    %v607 = vtanh.pop %v606
    %v608 = vsub.f32 1.0, %v603
    %v609 = vmul.f32 %v608, %v607
    %v610 = vmul.f32 %v603, %v502
    %v611 = vadd.f32 %v609, %v610
    %612 = vst [vmem:[#allocation2 + $0x10] sm:$0xff] %v611
    %613 = vmatpush.msra.mxu0 %v214
    %614 = vmatpush.msra.mxu0 %v211
    %615 = vmatpush.msra.mxu0 %v208
    %616 = vmatpush.msra.mxu0 %v205
    %617 = vmatpush.msra.mxu0 %v202
    %618 = vmatpush.msra.mxu0 %v199
    %619 = vmatpush.msra.mxu0 %v196
    %620 = vmatpush.msra.mxu0 %v193
    %621 = vmatpush.msra.mxu0 %v190
    %622 = vmatpush.msra.mxu0 %v187
    %623 = vmatpush.msra.mxu0 %v184
    %624 = vmatpush.msra.mxu0 %v181
    %625 = vmatpush.msra.mxu0 %v178
    %626 = vmatpush.msra.mxu0 %v175
    %627 = vmatpush.msra.mxu0 %v172
    %628 = vmatpush.msra.mxu0 %v169
    %629 = vmatmul.f32.gmra.mxu0 %v611
    %v630 = vpop.f32.mrf.mxu0
    %v631 = vadd.f32 0.0, %v630
    %632 = vdwg.mxu0
    %633 = vmatpush.msra.mxu0 %v215
    %634 = vmatpush.msra.mxu0 %v212
    %635 = vmatpush.msra.mxu0 %v209
    %636 = vmatpush.msra.mxu0 %v206
    %637 = vmatpush.msra.mxu0 %v203
    %638 = vmatpush.msra.mxu0 %v200
    %639 = vmatpush.msra.mxu0 %v197
    %640 = vmatpush.msra.mxu0 %v194
    %641 = vmatpush.msra.mxu0 %v191
    %642 = vmatpush.msra.mxu0 %v188
    %643 = vmatpush.msra.mxu0 %v185
    %644 = vmatpush.msra.mxu0 %v182
    %645 = vmatpush.msra.mxu0 %v179
    %646 = vmatpush.msra.mxu0 %v176
    %647 = vmatpush.msra.mxu0 %v173
    %648 = vmatpush.msra.mxu0 %v170
    %649 = vmatmul.f32.gmra.mxu0 %v611
    %v650 = vpop.f32.mrf.mxu0
    %v651 = vadd.f32 0.0, %v650
    %652 = vdwg.mxu0
    %653 = vmatpush.msra.mxu0 %v216
    %654 = vmatpush.msra.mxu0 %v213
    %655 = vmatpush.msra.mxu0 %v210
    %656 = vmatpush.msra.mxu0 %v207
    %657 = vmatpush.msra.mxu0 %v204
    %658 = vmatpush.msra.mxu0 %v201
    %659 = vmatpush.msra.mxu0 %v198
    %660 = vmatpush.msra.mxu0 %v195
    %661 = vmatpush.msra.mxu0 %v192
    %662 = vmatpush.msra.mxu0 %v189
    %663 = vmatpush.msra.mxu0 %v186
    %664 = vmatpush.msra.mxu0 %v183
    %665 = vmatpush.msra.mxu0 %v180
    %666 = vmatpush.msra.mxu0 %v177
    %667 = vmatpush.msra.mxu0 %v174
    %668 = vmatpush.msra.mxu0 %v171
    %669 = vmatmul.f32.gmra.mxu0 %v611
    %v670 = vpop.f32.mrf.mxu0
    %v671 = vadd.f32 0.0, %v670
    %672 = vdwg.mxu0
    %v673 = vadd.f32 %v254, %v631
    %v674 = vxor.u32 %v673, 2147483648
    %v675 = vmul.f32 %v674, 1.442695
    %v676 = vpow.pop %v675
    %v677 = vadd.f32 %v676, 1.0
    %v678 = vrcp.pop %v677
    %v679 = vmul.f32 %v677, %v678
    %v680 = vsub.f32 1.0, %v679
    %v681 = vmul.f32 %v678, %v680
    %v682 = vadd.f32 %v678, %v681
    %vm683 = vweird.f32 %v677
    %vm684 = vweird.f32 %v678
    %vm685 = vmor %vm683, %vm684
    %v686 = vsel %vm685, %v678, %v682
    %v687 = vand.u32 2147483647, %v677
    %vm688 = vcmp.eq.f32.partialorder %v687, 8.507059e+37
    %v689 = vand.u32 %v677, 2147483648
    %v690 = vor.u32 1.1754944e-38, %v689
    %v691 = vsel %vm688, %v690, %v686
    %v692 = vmul.f32 1.0, %v691
    %v693 = vadd.f32 %v295, %v651
    %v694 = vxor.u32 %v693, 2147483648
    %v695 = vmul.f32 %v694, 1.442695
    %v696 = vpow.pop %v695
    %v697 = vadd.f32 %v696, 1.0
    %v698 = vrcp.pop %v697
    %v699 = vmul.f32 %v697, %v698
    %v700 = vsub.f32 1.0, %v699
    %v701 = vmul.f32 %v698, %v700
    %v702 = vadd.f32 %v698, %v701
    %vm703 = vweird.f32 %v697
    %vm704 = vweird.f32 %v698
    %vm705 = vmor %vm703, %vm704
    %v706 = vsel %vm705, %v698, %v702
    %v707 = vand.u32 2147483647, %v697
    %vm708 = vcmp.eq.f32.partialorder %v707, 8.507059e+37
    %v709 = vand.u32 %v697, 2147483648
    %v710 = vor.u32 1.1754944e-38, %v709
    %v711 = vsel %vm708, %v710, %v706
    %v712 = vmul.f32 1.0, %v711
    %v713 = vadd.f32 %v671, %v350
    %v714 = vmul.f32 %v692, %v713
    %v715 = vadd.f32 %v336, %v714
    %v716 = vtanh.pop %v715
    %v717 = vsub.f32 1.0, %v712
    %v718 = vmul.f32 %v717, %v716
    %v719 = vmul.f32 %v712, %v611
    %v720 = vadd.f32 %v718, %v719
    %721 = vst [vmem:[#allocation2 + $0x18] sm:$0xff] %v720
    %722 = vmatpush.msra.mxu0 %v214
    %723 = vmatpush.msra.mxu0 %v211
    %724 = vmatpush.msra.mxu0 %v208
    %725 = vmatpush.msra.mxu0 %v205
    %726 = vmatpush.msra.mxu0 %v202
    %727 = vmatpush.msra.mxu0 %v199
    %728 = vmatpush.msra.mxu0 %v196
    %729 = vmatpush.msra.mxu0 %v193
    %730 = vmatpush.msra.mxu0 %v190
    %731 = vmatpush.msra.mxu0 %v187
    %732 = vmatpush.msra.mxu0 %v184
    %733 = vmatpush.msra.mxu0 %v181
    %734 = vmatpush.msra.mxu0 %v178
    %735 = vmatpush.msra.mxu0 %v175
    %736 = vmatpush.msra.mxu0 %v172
    %737 = vmatpush.msra.mxu0 %v169
    %738 = vmatmul.f32.gmra.mxu0 %v720
    %v739 = vpop.f32.mrf.mxu0
    %v740 = vadd.f32 0.0, %v739
    %741 = vdwg.mxu0
    %742 = vmatpush.msra.mxu0 %v215
    %743 = vmatpush.msra.mxu0 %v212
    %744 = vmatpush.msra.mxu0 %v209
    %745 = vmatpush.msra.mxu0 %v206
    %746 = vmatpush.msra.mxu0 %v203
    %747 = vmatpush.msra.mxu0 %v200
    %748 = vmatpush.msra.mxu0 %v197
    %749 = vmatpush.msra.mxu0 %v194
    %750 = vmatpush.msra.mxu0 %v191
    %751 = vmatpush.msra.mxu0 %v188
    %752 = vmatpush.msra.mxu0 %v185
    %753 = vmatpush.msra.mxu0 %v182
    %754 = vmatpush.msra.mxu0 %v179
    %755 = vmatpush.msra.mxu0 %v176
    %756 = vmatpush.msra.mxu0 %v173
    %757 = vmatpush.msra.mxu0 %v170
    %758 = vmatmul.f32.gmra.mxu0 %v720
    %v759 = vpop.f32.mrf.mxu0
    %v760 = vadd.f32 0.0, %v759
    %761 = vdwg.mxu0
    %762 = vmatpush.msra.mxu0 %v216
    %763 = vmatpush.msra.mxu0 %v213
    %764 = vmatpush.msra.mxu0 %v210
    %765 = vmatpush.msra.mxu0 %v207
    %766 = vmatpush.msra.mxu0 %v204
    %767 = vmatpush.msra.mxu0 %v201
    %768 = vmatpush.msra.mxu0 %v198
    %769 = vmatpush.msra.mxu0 %v195
    %770 = vmatpush.msra.mxu0 %v192
    %771 = vmatpush.msra.mxu0 %v189
    %772 = vmatpush.msra.mxu0 %v186
    %773 = vmatpush.msra.mxu0 %v183
    %774 = vmatpush.msra.mxu0 %v180
    %775 = vmatpush.msra.mxu0 %v177
    %776 = vmatpush.msra.mxu0 %v174
    %777 = vmatpush.msra.mxu0 %v171
    %778 = vmatmul.f32.gmra.mxu0 %v720
    %v779 = vpop.f32.mrf.mxu0
    %v780 = vadd.f32 0.0, %v779
    %781 = vdwg.mxu0
    %v782 = vadd.f32 %v257, %v740
    %v783 = vxor.u32 %v782, 2147483648
    %v784 = vmul.f32 %v783, 1.442695
    %v785 = vpow.pop %v784
    %v786 = vadd.f32 %v785, 1.0
    %v787 = vrcp.pop %v786
    %v788 = vmul.f32 %v786, %v787
    %v789 = vsub.f32 1.0, %v788
    %v790 = vmul.f32 %v787, %v789
    %v791 = vadd.f32 %v787, %v790
    %vm792 = vweird.f32 %v786
    %vm793 = vweird.f32 %v787
    %vm794 = vmor %vm792, %vm793
    %v795 = vsel %vm794, %v787, %v791
    %v796 = vand.u32 2147483647, %v786
    %vm797 = vcmp.eq.f32.partialorder %v796, 8.507059e+37
    %v798 = vand.u32 %v786, 2147483648
    %v799 = vor.u32 1.1754944e-38, %v798
    %v800 = vsel %vm797, %v799, %v795
    %v801 = vmul.f32 1.0, %v800
    %v802 = vadd.f32 %v298, %v760
    %v803 = vxor.u32 %v802, 2147483648
    %v804 = vmul.f32 %v803, 1.442695
    %v805 = vpow.pop %v804
    %v806 = vadd.f32 %v805, 1.0
    %v807 = vrcp.pop %v806
    %v808 = vmul.f32 %v806, %v807
    %v809 = vsub.f32 1.0, %v808
    %v810 = vmul.f32 %v807, %v809
    %v811 = vadd.f32 %v807, %v810
    %vm812 = vweird.f32 %v806
    %vm813 = vweird.f32 %v807
    %vm814 = vmor %vm812, %vm813
    %v815 = vsel %vm814, %v807, %v811
    %v816 = vand.u32 2147483647, %v806
    %vm817 = vcmp.eq.f32.partialorder %v816, 8.507059e+37
    %v818 = vand.u32 %v806, 2147483648
    %v819 = vor.u32 1.1754944e-38, %v818
    %v820 = vsel %vm817, %v819, %v815
    %v821 = vmul.f32 1.0, %v820
    %v822 = vadd.f32 %v780, %v350
    %v823 = vmul.f32 %v801, %v822
    %v824 = vadd.f32 %v339, %v823
    %v825 = vtanh.pop %v824
    %v826 = vsub.f32 1.0, %v821
    %v827 = vmul.f32 %v826, %v825
    %v828 = vmul.f32 %v821, %v720
    %v829 = vadd.f32 %v827, %v828
    %830 = vst [vmem:[#allocation2 + $0x20] sm:$0xff] %v829
    %831 = vmatpush.msra.mxu0 %v214
    %832 = vmatpush.msra.mxu0 %v211
    %833 = vmatpush.msra.mxu0 %v208
    %834 = vmatpush.msra.mxu0 %v205
    %835 = vmatpush.msra.mxu0 %v202
    %836 = vmatpush.msra.mxu0 %v199
    %837 = vmatpush.msra.mxu0 %v196
    %838 = vmatpush.msra.mxu0 %v193
    %839 = vmatpush.msra.mxu0 %v190
    %840 = vmatpush.msra.mxu0 %v187
    %841 = vmatpush.msra.mxu0 %v184
    %842 = vmatpush.msra.mxu0 %v181
    %843 = vmatpush.msra.mxu0 %v178
    %844 = vmatpush.msra.mxu0 %v175
    %845 = vmatpush.msra.mxu0 %v172
    %846 = vmatpush.msra.mxu0 %v169
    %847 = vmatmul.f32.gmra.mxu0 %v829
    %v848 = vpop.f32.mrf.mxu0
    %v849 = vadd.f32 0.0, %v848
    %850 = vdwg.mxu0
    %851 = vmatpush.msra.mxu0 %v215
    %852 = vmatpush.msra.mxu0 %v212
    %853 = vmatpush.msra.mxu0 %v209
    %854 = vmatpush.msra.mxu0 %v206
    %855 = vmatpush.msra.mxu0 %v203
    %856 = vmatpush.msra.mxu0 %v200
    %857 = vmatpush.msra.mxu0 %v197
    %858 = vmatpush.msra.mxu0 %v194
    %859 = vmatpush.msra.mxu0 %v191
    %860 = vmatpush.msra.mxu0 %v188
    %861 = vmatpush.msra.mxu0 %v185
    %862 = vmatpush.msra.mxu0 %v182
    %863 = vmatpush.msra.mxu0 %v179
    %864 = vmatpush.msra.mxu0 %v176
    %865 = vmatpush.msra.mxu0 %v173
    %866 = vmatpush.msra.mxu0 %v170
    %867 = vmatmul.f32.gmra.mxu0 %v829
    %v868 = vpop.f32.mrf.mxu0
    %v869 = vadd.f32 0.0, %v868
    %870 = vdwg.mxu0
    %871 = vmatpush.msra.mxu0 %v216
    %872 = vmatpush.msra.mxu0 %v213
    %873 = vmatpush.msra.mxu0 %v210
    %874 = vmatpush.msra.mxu0 %v207
    %875 = vmatpush.msra.mxu0 %v204
    %876 = vmatpush.msra.mxu0 %v201
    %877 = vmatpush.msra.mxu0 %v198
    %878 = vmatpush.msra.mxu0 %v195
    %879 = vmatpush.msra.mxu0 %v192
    %880 = vmatpush.msra.mxu0 %v189
    %881 = vmatpush.msra.mxu0 %v186
    %882 = vmatpush.msra.mxu0 %v183
    %883 = vmatpush.msra.mxu0 %v180
    %884 = vmatpush.msra.mxu0 %v177
    %885 = vmatpush.msra.mxu0 %v174
    %886 = vmatpush.msra.mxu0 %v171
    %887 = vmatmul.f32.gmra.mxu0 %v829
    %v888 = vpop.f32.mrf.mxu0
    %v889 = vadd.f32 0.0, %v888
    %890 = vdwg.mxu0
    %v891 = vadd.f32 %v260, %v849
    %v892 = vxor.u32 %v891, 2147483648
    %v893 = vmul.f32 %v892, 1.442695
    %v894 = vpow.pop %v893
    %v895 = vadd.f32 %v894, 1.0
    %v896 = vrcp.pop %v895
    %v897 = vmul.f32 %v895, %v896
    %v898 = vsub.f32 1.0, %v897
    %v899 = vmul.f32 %v896, %v898
    %v900 = vadd.f32 %v896, %v899
    %vm901 = vweird.f32 %v895
    %vm902 = vweird.f32 %v896
    %vm903 = vmor %vm901, %vm902
    %v904 = vsel %vm903, %v896, %v900
    %v905 = vand.u32 2147483647, %v895
    %vm906 = vcmp.eq.f32.partialorder %v905, 8.507059e+37
    %v907 = vand.u32 %v895, 2147483648
    %v908 = vor.u32 1.1754944e-38, %v907
    %v909 = vsel %vm906, %v908, %v904
    %v910 = vmul.f32 1.0, %v909
    %v911 = vadd.f32 %v301, %v869
    %v912 = vxor.u32 %v911, 2147483648
    %v913 = vmul.f32 %v912, 1.442695
    %v914 = vpow.pop %v913
    %v915 = vadd.f32 %v914, 1.0
    %v916 = vrcp.pop %v915
    %v917 = vmul.f32 %v915, %v916
    %v918 = vsub.f32 1.0, %v917
    %v919 = vmul.f32 %v916, %v918
    %v920 = vadd.f32 %v916, %v919
    %vm921 = vweird.f32 %v915
    %vm922 = vweird.f32 %v916
    %vm923 = vmor %vm921, %vm922
    %v924 = vsel %vm923, %v916, %v920
    %v925 = vand.u32 2147483647, %v915
    %vm926 = vcmp.eq.f32.partialorder %v925, 8.507059e+37
    %v927 = vand.u32 %v915, 2147483648
    %v928 = vor.u32 1.1754944e-38, %v927
    %v929 = vsel %vm926, %v928, %v924
    %v930 = vmul.f32 1.0, %v929
    %v931 = vadd.f32 %v889, %v350
    %v932 = vmul.f32 %v910, %v931
    %v933 = vadd.f32 %v342, %v932
    %v934 = vtanh.pop %v933
    %v935 = vsub.f32 1.0, %v930
    %v936 = vmul.f32 %v935, %v934
    %v937 = vmul.f32 %v930, %v829
    %v938 = vadd.f32 %v936, %v937
    %939 = vst [vmem:[#allocation2 + $0x28] sm:$0xff] %v938
    %940 = vmatpush.msra.mxu0 %v214
    %941 = vmatpush.msra.mxu0 %v211
    %942 = vmatpush.msra.mxu0 %v208
    %943 = vmatpush.msra.mxu0 %v205
    %944 = vmatpush.msra.mxu0 %v202
    %945 = vmatpush.msra.mxu0 %v199
    %946 = vmatpush.msra.mxu0 %v196
    %947 = vmatpush.msra.mxu0 %v193
    %948 = vmatpush.msra.mxu0 %v190
    %949 = vmatpush.msra.mxu0 %v187
    %950 = vmatpush.msra.mxu0 %v184
    %951 = vmatpush.msra.mxu0 %v181
    %952 = vmatpush.msra.mxu0 %v178
    %953 = vmatpush.msra.mxu0 %v175
    %954 = vmatpush.msra.mxu0 %v172
    %955 = vmatpush.msra.mxu0 %v169
    %956 = vmatmul.f32.gmra.mxu0 %v938
    %v957 = vpop.f32.mrf.mxu0
    %v958 = vadd.f32 0.0, %v957
    %959 = vdwg.mxu0
    %960 = vmatpush.msra.mxu0 %v215
    %961 = vmatpush.msra.mxu0 %v212
    %962 = vmatpush.msra.mxu0 %v209
    %963 = vmatpush.msra.mxu0 %v206
    %964 = vmatpush.msra.mxu0 %v203
    %965 = vmatpush.msra.mxu0 %v200
    %966 = vmatpush.msra.mxu0 %v197
    %967 = vmatpush.msra.mxu0 %v194
    %968 = vmatpush.msra.mxu0 %v191
    %969 = vmatpush.msra.mxu0 %v188
    %970 = vmatpush.msra.mxu0 %v185
    %971 = vmatpush.msra.mxu0 %v182
    %972 = vmatpush.msra.mxu0 %v179
    %973 = vmatpush.msra.mxu0 %v176
    %974 = vmatpush.msra.mxu0 %v173
    %975 = vmatpush.msra.mxu0 %v170
    %976 = vmatmul.f32.gmra.mxu0 %v938
    %v977 = vpop.f32.mrf.mxu0
    %v978 = vadd.f32 0.0, %v977
    %979 = vdwg.mxu0
    %980 = vmatpush.msra.mxu0 %v216
    %981 = vmatpush.msra.mxu0 %v213
    %982 = vmatpush.msra.mxu0 %v210
    %983 = vmatpush.msra.mxu0 %v207
    %984 = vmatpush.msra.mxu0 %v204
    %985 = vmatpush.msra.mxu0 %v201
    %986 = vmatpush.msra.mxu0 %v198
    %987 = vmatpush.msra.mxu0 %v195
    %988 = vmatpush.msra.mxu0 %v192
    %989 = vmatpush.msra.mxu0 %v189
    %990 = vmatpush.msra.mxu0 %v186
    %991 = vmatpush.msra.mxu0 %v183
    %992 = vmatpush.msra.mxu0 %v180
    %993 = vmatpush.msra.mxu0 %v177
    %994 = vmatpush.msra.mxu0 %v174
    %995 = vmatpush.msra.mxu0 %v171
    %996 = vmatmul.f32.gmra.mxu0 %v938
    %v997 = vpop.f32.mrf.mxu0
    %v998 = vadd.f32 0.0, %v997
    %999 = vdwg.mxu0
    %v1000 = vadd.f32 %v263, %v958
    %v1001 = vxor.u32 %v1000, 2147483648
    %v1002 = vmul.f32 %v1001, 1.442695
    %v1003 = vpow.pop %v1002
    %v1004 = vadd.f32 %v1003, 1.0
    %v1005 = vrcp.pop %v1004
    %v1006 = vmul.f32 %v1004, %v1005
    %v1007 = vsub.f32 1.0, %v1006
    %v1008 = vmul.f32 %v1005, %v1007
    %v1009 = vadd.f32 %v1005, %v1008
    %vm1010 = vweird.f32 %v1004
    %vm1011 = vweird.f32 %v1005
    %vm1012 = vmor %vm1010, %vm1011
    %v1013 = vsel %vm1012, %v1005, %v1009
    %v1014 = vand.u32 2147483647, %v1004
    %vm1015 = vcmp.eq.f32.partialorder %v1014, 8.507059e+37
    %v1016 = vand.u32 %v1004, 2147483648
    %v1017 = vor.u32 1.1754944e-38, %v1016
    %v1018 = vsel %vm1015, %v1017, %v1013
    %v1019 = vmul.f32 1.0, %v1018
    %v1020 = vadd.f32 %v304, %v978
    %v1021 = vxor.u32 %v1020, 2147483648
    %v1022 = vmul.f32 %v1021, 1.442695
    %v1023 = vpow.pop %v1022
    %v1024 = vadd.f32 %v1023, 1.0
    %v1025 = vrcp.pop %v1024
    %v1026 = vmul.f32 %v1024, %v1025
    %v1027 = vsub.f32 1.0, %v1026
    %v1028 = vmul.f32 %v1025, %v1027
    %v1029 = vadd.f32 %v1025, %v1028
    %vm1030 = vweird.f32 %v1024
    %vm1031 = vweird.f32 %v1025
    %vm1032 = vmor %vm1030, %vm1031
    %v1033 = vsel %vm1032, %v1025, %v1029
    %v1034 = vand.u32 2147483647, %v1024
    %vm1035 = vcmp.eq.f32.partialorder %v1034, 8.507059e+37
    %v1036 = vand.u32 %v1024, 2147483648
    %v1037 = vor.u32 1.1754944e-38, %v1036
    %v1038 = vsel %vm1035, %v1037, %v1033
    %v1039 = vmul.f32 1.0, %v1038
    %v1040 = vadd.f32 %v998, %v350
    %v1041 = vmul.f32 %v1019, %v1040
    %v1042 = vadd.f32 %v345, %v1041
    %v1043 = vtanh.pop %v1042
    %v1044 = vsub.f32 1.0, %v1039
    %v1045 = vmul.f32 %v1044, %v1043
    %v1046 = vmul.f32 %v1039, %v938
    %v1047 = vadd.f32 %v1045, %v1046
    %1048 = vst [vmem:[#allocation2 + $0x30] sm:$0xff] %v1047
    %1049 = vmatpush.msra.mxu0 %v214
    %1050 = vmatpush.msra.mxu0 %v211
    %1051 = vmatpush.msra.mxu0 %v208
    %1052 = vmatpush.msra.mxu0 %v205
    %1053 = vmatpush.msra.mxu0 %v202
    %1054 = vmatpush.msra.mxu0 %v199
    %1055 = vmatpush.msra.mxu0 %v196
    %1056 = vmatpush.msra.mxu0 %v193
    %1057 = vmatpush.msra.mxu0 %v190
    %1058 = vmatpush.msra.mxu0 %v187
    %1059 = vmatpush.msra.mxu0 %v184
    %1060 = vmatpush.msra.mxu0 %v181
    %1061 = vmatpush.msra.mxu0 %v178
    %1062 = vmatpush.msra.mxu0 %v175
    %1063 = vmatpush.msra.mxu0 %v172
    %1064 = vmatpush.msra.mxu0 %v169
    %1065 = vmatmul.f32.gmra.mxu0 %v1047
    %v1066 = vpop.f32.mrf.mxu0
    %v1067 = vadd.f32 0.0, %v1066
    %1068 = vdwg.mxu0
    %1069 = vmatpush.msra.mxu0 %v215
    %1070 = vmatpush.msra.mxu0 %v212
    %1071 = vmatpush.msra.mxu0 %v209
    %1072 = vmatpush.msra.mxu0 %v206
    %1073 = vmatpush.msra.mxu0 %v203
    %1074 = vmatpush.msra.mxu0 %v200
    %1075 = vmatpush.msra.mxu0 %v197
    %1076 = vmatpush.msra.mxu0 %v194
    %1077 = vmatpush.msra.mxu0 %v191
    %1078 = vmatpush.msra.mxu0 %v188
    %1079 = vmatpush.msra.mxu0 %v185
    %1080 = vmatpush.msra.mxu0 %v182
    %1081 = vmatpush.msra.mxu0 %v179
    %1082 = vmatpush.msra.mxu0 %v176
    %1083 = vmatpush.msra.mxu0 %v173
    %1084 = vmatpush.msra.mxu0 %v170
    %1085 = vmatmul.f32.gmra.mxu0 %v1047
    %v1086 = vpop.f32.mrf.mxu0
    %v1087 = vadd.f32 0.0, %v1086
    %1088 = vdwg.mxu0
    %1089 = vmatpush.msra.mxu0 %v216
    %1090 = vmatpush.msra.mxu0 %v213
    %1091 = vmatpush.msra.mxu0 %v210
    %1092 = vmatpush.msra.mxu0 %v207
    %1093 = vmatpush.msra.mxu0 %v204
    %1094 = vmatpush.msra.mxu0 %v201
    %1095 = vmatpush.msra.mxu0 %v198
    %1096 = vmatpush.msra.mxu0 %v195
    %1097 = vmatpush.msra.mxu0 %v192
    %1098 = vmatpush.msra.mxu0 %v189
    %1099 = vmatpush.msra.mxu0 %v186
    %1100 = vmatpush.msra.mxu0 %v183
    %1101 = vmatpush.msra.mxu0 %v180
    %1102 = vmatpush.msra.mxu0 %v177
    %1103 = vmatpush.msra.mxu0 %v174
    %1104 = vmatpush.msra.mxu0 %v171
    %1105 = vmatmul.f32.gmra.mxu0 %v1047
    %v1106 = vpop.f32.mrf.mxu0
    %v1107 = vadd.f32 0.0, %v1106
    %1108 = vdwg.mxu0
    %v1109 = vadd.f32 %v266, %v1067
    %v1110 = vxor.u32 %v1109, 2147483648
    %v1111 = vmul.f32 %v1110, 1.442695
    %v1112 = vpow.pop %v1111
    %v1113 = vadd.f32 %v1112, 1.0
    %v1114 = vrcp.pop %v1113
    %v1115 = vmul.f32 %v1113, %v1114
    %v1116 = vsub.f32 1.0, %v1115
    %v1117 = vmul.f32 %v1114, %v1116
    %v1118 = vadd.f32 %v1114, %v1117
    %vm1119 = vweird.f32 %v1113
    %vm1120 = vweird.f32 %v1114
    %vm1121 = vmor %vm1119, %vm1120
    %v1122 = vsel %vm1121, %v1114, %v1118
    %v1123 = vand.u32 2147483647, %v1113
    %vm1124 = vcmp.eq.f32.partialorder %v1123, 8.507059e+37
    %v1125 = vand.u32 %v1113, 2147483648
    %v1126 = vor.u32 1.1754944e-38, %v1125
    %v1127 = vsel %vm1124, %v1126, %v1122
    %v1128 = vmul.f32 1.0, %v1127
    %v1129 = vadd.f32 %v307, %v1087
    %v1130 = vxor.u32 %v1129, 2147483648
    %v1131 = vmul.f32 %v1130, 1.442695
    %v1132 = vpow.pop %v1131
    %v1133 = vadd.f32 %v1132, 1.0
    %v1134 = vrcp.pop %v1133
    %v1135 = vmul.f32 %v1133, %v1134
    %v1136 = vsub.f32 1.0, %v1135
    %v1137 = vmul.f32 %v1134, %v1136
    %v1138 = vadd.f32 %v1134, %v1137
    %vm1139 = vweird.f32 %v1133
    %vm1140 = vweird.f32 %v1134
    %vm1141 = vmor %vm1139, %vm1140
    %v1142 = vsel %vm1141, %v1134, %v1138
    %v1143 = vand.u32 2147483647, %v1133
    %vm1144 = vcmp.eq.f32.partialorder %v1143, 8.507059e+37
    %v1145 = vand.u32 %v1133, 2147483648
    %v1146 = vor.u32 1.1754944e-38, %v1145
    %v1147 = vsel %vm1144, %v1146, %v1142
    %v1148 = vmul.f32 1.0, %v1147
    %v1149 = vadd.f32 %v1107, %v350
    %v1150 = vmul.f32 %v1128, %v1149
    %v1151 = vadd.f32 %v348, %v1150
    %v1152 = vtanh.pop %v1151
    %v1153 = vsub.f32 1.0, %v1148
    %v1154 = vmul.f32 %v1153, %v1152
    %v1155 = vmul.f32 %v1148, %v1047
    %v1156 = vadd.f32 %v1154, %v1155
    %1157 = vst [vmem:[#allocation2 + $0x38] sm:$0xff] %v1156
    %v1158 = vld [vmem:[#allocation2] sm:$0xff]
    %v1159 = vld [vmem:[#allocation2 + $0x8] sm:$0xff]
    %v1160 = vld [vmem:[#allocation2 + $0x10] sm:$0xff]
    %v1161 = vld [vmem:[#allocation2 + $0x18] sm:$0xff]
    %v1162 = vld [vmem:[#allocation2 + $0x20] sm:$0xff]
    %v1163 = vld [vmem:[#allocation2 + $0x28] sm:$0xff]
    %v1164 = vld [vmem:[#allocation2 + $0x30] sm:$0xff]
    %v1165 = vld [vmem:[#allocation2 + $0x38] sm:$0xff]
    %v1166 = vld [vmem:[#allocation5 + $0x318] sm:$0xff]
    %v1167 = vld [vmem:[#allocation5 + $0x320] sm:$0xff]
    %v1168 = vld [vmem:[#allocation5 + $0x328] sm:$0xff]
    %v1169 = vld [vmem:[#allocation5 + $0x330] sm:$0xff]
    %v1170 = vld [vmem:[#allocation5 + $0x338] sm:$0xff]
    %v1171 = vld [vmem:[#allocation5 + $0x340] sm:$0xff]
    %v1172 = vld [vmem:[#allocation5 + $0x348] sm:$0xff]
    %v1173 = vld [vmem:[#allocation5 + $0x350] sm:$0xff]
    %v1174 = vld [vmem:[#allocation5 + $0x358] sm:$0xff]
    %v1175 = vld [vmem:[#allocation5 + $0x360] sm:$0xff]
    %v1176 = vld [vmem:[#allocation5 + $0x368] sm:$0xff]
    %v1177 = vld [vmem:[#allocation5 + $0x370] sm:$0xff]
    %v1178 = vld [vmem:[#allocation5 + $0x378] sm:$0xff]
    %v1179 = vld [vmem:[#allocation5 + $0x380] sm:$0xff]
    %v1180 = vld [vmem:[#allocation5 + $0x388] sm:$0xff]
    %v1181 = vld [vmem:[#allocation5 + $0x390] sm:$0xff]
    %v1182 = vld [vmem:[#allocation5 + $0x398] sm:$0xff]
    %v1183 = vld [vmem:[#allocation5 + $0x3a0] sm:$0xff]
    %v1184 = vld [vmem:[#allocation5 + $0x3a8] sm:$0xff]
    %v1185 = vld [vmem:[#allocation5 + $0x3b0] sm:$0xff]
    %v1186 = vld [vmem:[#allocation5 + $0x3b8] sm:$0xff]
    %v1187 = vld [vmem:[#allocation5 + $0x3c0] sm:$0xff]
    %v1188 = vld [vmem:[#allocation5 + $0x3c8] sm:$0xff]
    %v1189 = vld [vmem:[#allocation5 + $0x3d0] sm:$0xff]
    %v1190 = vld [vmem:[#allocation5 + $0x3d8] sm:$0xff]
    %v1191 = vld [vmem:[#allocation5 + $0x3e0] sm:$0xff]
    %v1192 = vld [vmem:[#allocation5 + $0x3e8] sm:$0xff]
    %v1193 = vld [vmem:[#allocation5 + $0x3f0] sm:$0xff]
    %v1194 = vld [vmem:[#allocation5 + $0x3f8] sm:$0xff]
    %v1195 = vld [vmem:[#allocation5 + $0x400] sm:$0xff]
    %v1196 = vld [vmem:[#allocation5 + $0x408] sm:$0xff]
    %v1197 = vld [vmem:[#allocation5 + $0x410] sm:$0xff]
    %v1198 = vld [vmem:[#allocation5 + $0x418] sm:$0xff]
    %v1199 = vld [vmem:[#allocation5 + $0x420] sm:$0xff]
    %v1200 = vld [vmem:[#allocation5 + $0x428] sm:$0xff]
    %v1201 = vld [vmem:[#allocation5 + $0x430] sm:$0xff]
    %v1202 = vld [vmem:[#allocation5 + $0x438] sm:$0xff]
    %v1203 = vld [vmem:[#allocation5 + $0x440] sm:$0xff]
    %v1204 = vld [vmem:[#allocation5 + $0x448] sm:$0xff]
    %v1205 = vld [vmem:[#allocation5 + $0x450] sm:$0xff]
    %v1206 = vld [vmem:[#allocation5 + $0x458] sm:$0xff]
    %v1207 = vld [vmem:[#allocation5 + $0x460] sm:$0xff]
    %v1208 = vld [vmem:[#allocation5 + $0x468] sm:$0xff]
    %v1209 = vld [vmem:[#allocation5 + $0x470] sm:$0xff]
    %v1210 = vld [vmem:[#allocation5 + $0x478] sm:$0xff]
    %v1211 = vld [vmem:[#allocation5 + $0x480] sm:$0xff]
    %v1212 = vld [vmem:[#allocation5 + $0x488] sm:$0xff]
    %v1213 = vld [vmem:[#allocation5 + $0x490] sm:$0xff]
    %v1214 = vld [vmem:[#allocation5 + $0x498] sm:$0xff]
    %v1215 = vld [vmem:[#allocation5 + $0x4a0] sm:$0xff]
    %v1216 = vld [vmem:[#allocation5 + $0x4a8] sm:$0xff]
    %v1217 = vld [vmem:[#allocation5 + $0x4b0] sm:$0xff]
    %v1218 = vld [vmem:[#allocation5 + $0x4b8] sm:$0xff]
    %v1219 = vld [vmem:[#allocation5 + $0x4c0] sm:$0xff]
    %v1220 = vld [vmem:[#allocation5 + $0x4c8] sm:$0xff]
    %v1221 = vld [vmem:[#allocation5 + $0x4d0] sm:$0xff]
    %v1222 = vld [vmem:[#allocation5 + $0x4d8] sm:$0xff]
    %v1223 = vld [vmem:[#allocation5 + $0x4e0] sm:$0xff]
    %v1224 = vld [vmem:[#allocation5 + $0x4e8] sm:$0xff]
    %v1225 = vld [vmem:[#allocation5 + $0x4f0] sm:$0xff]
    %v1226 = vld [vmem:[#allocation5 + $0x4f8] sm:$0xff]
    %v1227 = vld [vmem:[#allocation5 + $0x500] sm:$0xff]
    %v1228 = vld [vmem:[#allocation5 + $0x508] sm:$0xff]
    %v1229 = vld [vmem:[#allocation5 + $0x510] sm:$0xff]
    %v1230 = vld [vmem:[#allocation5 + $0x518] sm:$0xff]
    %v1231 = vld [vmem:[#allocation5 + $0x520] sm:$0xff]
    %v1232 = vld [vmem:[#allocation5 + $0x528] sm:$0xff]
    %v1233 = vld [vmem:[#allocation5 + $0x530] sm:$0xff]
    %v1234 = vld [vmem:[#allocation5 + $0x538] sm:$0xff]
    %v1235 = vld [vmem:[#allocation5 + $0x540] sm:$0xff]
    %v1236 = vld [vmem:[#allocation5 + $0x548] sm:$0xff]
    %v1237 = vld [vmem:[#allocation5 + $0x550] sm:$0xff]
    %v1238 = vld [vmem:[#allocation5 + $0x558] sm:$0xff]
    %v1239 = vld [vmem:[#allocation5 + $0x560] sm:$0xff]
    %v1240 = vld [vmem:[#allocation5 + $0x568] sm:$0xff]
    %v1241 = vld [vmem:[#allocation5 + $0x570] sm:$0xff]
    %v1242 = vld [vmem:[#allocation5 + $0x578] sm:$0xff]
    %v1243 = vld [vmem:[#allocation5 + $0x580] sm:$0xff]
    %v1244 = vld [vmem:[#allocation5 + $0x588] sm:$0xff]
    %v1245 = vld [vmem:[#allocation5 + $0x590] sm:$0xff]
    %v1246 = vld [vmem:[#allocation5 + $0x598] sm:$0xff]
    %v1247 = vld [vmem:[#allocation5 + $0x5a0] sm:$0xff]
    %v1248 = vld [vmem:[#allocation5 + $0x5a8] sm:$0xff]
    %v1249 = vld [vmem:[#allocation5 + $0x5b0] sm:$0xff]
    %v1250 = vld [vmem:[#allocation5 + $0x5b8] sm:$0xff]
    %v1251 = vld [vmem:[#allocation5 + $0x5c0] sm:$0xff]
    %v1252 = vld [vmem:[#allocation5 + $0x5c8] sm:$0xff]
    %v1253 = vld [vmem:[#allocation5 + $0x5d0] sm:$0xff]
    %v1254 = vld [vmem:[#allocation5 + $0x5d8] sm:$0xff]
    %v1255 = vld [vmem:[#allocation5 + $0x5e0] sm:$0xff]
    %v1256 = vld [vmem:[#allocation5 + $0x5e8] sm:$0xff]
    %v1257 = vld [vmem:[#allocation5 + $0x5f0] sm:$0xff]
    %v1258 = vld [vmem:[#allocation5 + $0x5f8] sm:$0xff]
    %v1259 = vld [vmem:[#allocation5 + $0x600] sm:$0xff]
    %v1260 = vld [vmem:[#allocation5 + $0x608] sm:$0xff]
    %v1261 = vld [vmem:[#allocation5 + $0x610] sm:$0xff]
    %s1262 = scalar_lea.vmem [#allocation5], 1560
    %v1263 = vld [vmem:[%s1262] ss:$8 sm:$0x7]
    %v1264 = vld [vmem:[#allocation3 + $0x90] sm:$0x1]
    %v1266 = vperm.slane %v1263, 0
    %v1267 = vperm.slane %v1263, 1
    %v1268 = vperm.slane %v1263, 2
    %1272 = vmatpush.msra.mxu0 %v1211
    %1273 = vmatpush.msra.mxu0 %v1208
    %1274 = vmatpush.msra.mxu0 %v1205
    %1275 = vmatpush.msra.mxu0 %v1202
    %1276 = vmatpush.msra.mxu0 %v1199
    %1277 = vmatpush.msra.mxu0 %v1196
    %1278 = vmatpush.msra.mxu0 %v1193
    %1279 = vmatpush.msra.mxu0 %v1190
    %1280 = vmatpush.msra.mxu0 %v1187
    %1281 = vmatpush.msra.mxu0 %v1184
    %1282 = vmatpush.msra.mxu0 %v1181
    %1283 = vmatpush.msra.mxu0 %v1178
    %1284 = vmatpush.msra.mxu0 %v1175
    %1285 = vmatpush.msra.mxu0 %v1172
    %1286 = vmatpush.msra.mxu0 %v1169
    %1287 = vmatpush.msra.mxu0 %v1166
    %1288 = vmatmul.f32.gmra.mxu0 %v1158
    %v1289 = vpop.f32.mrf.mxu0
    %v1290 = vadd.f32 %v1266, %v1289
    %1291 = vmatmul.f32.gmra.mxu0 %v1159
    %v1292 = vpop.f32.mrf.mxu0
    %v1293 = vadd.f32 %v1266, %v1292
    %1294 = vmatmul.f32.gmra.mxu0 %v1160
    %v1295 = vpop.f32.mrf.mxu0
    %v1296 = vadd.f32 %v1266, %v1295
    %1297 = vmatmul.f32.gmra.mxu0 %v1161
    %v1298 = vpop.f32.mrf.mxu0
    %v1299 = vadd.f32 %v1266, %v1298
    %1300 = vmatmul.f32.gmra.mxu0 %v1162
    %v1301 = vpop.f32.mrf.mxu0
    %v1302 = vadd.f32 %v1266, %v1301
    %1303 = vmatmul.f32.gmra.mxu0 %v1163
    %v1304 = vpop.f32.mrf.mxu0
    %v1305 = vadd.f32 %v1266, %v1304
    %1306 = vmatmul.f32.gmra.mxu0 %v1164
    %v1307 = vpop.f32.mrf.mxu0
    %v1308 = vadd.f32 %v1266, %v1307
    %1309 = vmatmul.f32.gmra.mxu0 %v1165
    %v1310 = vpop.f32.mrf.mxu0
    %v1311 = vadd.f32 %v1266, %v1310
    %1312 = vdwg.mxu0
    %1313 = vmatpush.msra.mxu0 %v1212
    %1314 = vmatpush.msra.mxu0 %v1209
    %1315 = vmatpush.msra.mxu0 %v1206
    %1316 = vmatpush.msra.mxu0 %v1203
    %1317 = vmatpush.msra.mxu0 %v1200
    %1318 = vmatpush.msra.mxu0 %v1197
    %1319 = vmatpush.msra.mxu0 %v1194
    %1320 = vmatpush.msra.mxu0 %v1191
    %1321 = vmatpush.msra.mxu0 %v1188
    %1322 = vmatpush.msra.mxu0 %v1185
    %1323 = vmatpush.msra.mxu0 %v1182
    %1324 = vmatpush.msra.mxu0 %v1179
    %1325 = vmatpush.msra.mxu0 %v1176
    %1326 = vmatpush.msra.mxu0 %v1173
    %1327 = vmatpush.msra.mxu0 %v1170
    %1328 = vmatpush.msra.mxu0 %v1167
    %1329 = vmatmul.f32.gmra.mxu0 %v1158
    %v1330 = vpop.f32.mrf.mxu0
    %v1331 = vadd.f32 %v1267, %v1330
    %1332 = vmatmul.f32.gmra.mxu0 %v1159
    %v1333 = vpop.f32.mrf.mxu0
    %v1334 = vadd.f32 %v1267, %v1333
    %1335 = vmatmul.f32.gmra.mxu0 %v1160
    %v1336 = vpop.f32.mrf.mxu0
    %v1337 = vadd.f32 %v1267, %v1336
    %1338 = vmatmul.f32.gmra.mxu0 %v1161
    %v1339 = vpop.f32.mrf.mxu0
    %v1340 = vadd.f32 %v1267, %v1339
    %1341 = vmatmul.f32.gmra.mxu0 %v1162
    %v1342 = vpop.f32.mrf.mxu0
    %v1343 = vadd.f32 %v1267, %v1342
    %1344 = vmatmul.f32.gmra.mxu0 %v1163
    %v1345 = vpop.f32.mrf.mxu0
    %v1346 = vadd.f32 %v1267, %v1345
    %1347 = vmatmul.f32.gmra.mxu0 %v1164
    %v1348 = vpop.f32.mrf.mxu0
    %v1349 = vadd.f32 %v1267, %v1348
    %1350 = vmatmul.f32.gmra.mxu0 %v1165
    %v1351 = vpop.f32.mrf.mxu0
    %v1352 = vadd.f32 %v1267, %v1351
    %1353 = vdwg.mxu0
    %1354 = vmatpush.msra.mxu0 %v1213
    %1355 = vmatpush.msra.mxu0 %v1210
    %1356 = vmatpush.msra.mxu0 %v1207
    %1357 = vmatpush.msra.mxu0 %v1204
    %1358 = vmatpush.msra.mxu0 %v1201
    %1359 = vmatpush.msra.mxu0 %v1198
    %1360 = vmatpush.msra.mxu0 %v1195
    %1361 = vmatpush.msra.mxu0 %v1192
    %1362 = vmatpush.msra.mxu0 %v1189
    %1363 = vmatpush.msra.mxu0 %v1186
    %1364 = vmatpush.msra.mxu0 %v1183
    %1365 = vmatpush.msra.mxu0 %v1180
    %1366 = vmatpush.msra.mxu0 %v1177
    %1367 = vmatpush.msra.mxu0 %v1174
    %1368 = vmatpush.msra.mxu0 %v1171
    %1369 = vmatpush.msra.mxu0 %v1168
    %1370 = vmatmul.f32.gmra.mxu0 %v1158
    %v1371 = vpop.f32.mrf.mxu0
    %v1372 = vadd.f32 %v1268, %v1371
    %1373 = vmatmul.f32.gmra.mxu0 %v1159
    %v1374 = vpop.f32.mrf.mxu0
    %v1375 = vadd.f32 %v1268, %v1374
    %1376 = vmatmul.f32.gmra.mxu0 %v1160
    %v1377 = vpop.f32.mrf.mxu0
    %v1378 = vadd.f32 %v1268, %v1377
    %1379 = vmatmul.f32.gmra.mxu0 %v1161
    %v1380 = vpop.f32.mrf.mxu0
    %v1381 = vadd.f32 %v1268, %v1380
    %1382 = vmatmul.f32.gmra.mxu0 %v1162
    %v1383 = vpop.f32.mrf.mxu0
    %v1384 = vadd.f32 %v1268, %v1383
    %1385 = vmatmul.f32.gmra.mxu0 %v1163
    %v1386 = vpop.f32.mrf.mxu0
    %v1387 = vadd.f32 %v1268, %v1386
    %1388 = vmatmul.f32.gmra.mxu0 %v1164
    %v1389 = vpop.f32.mrf.mxu0
    %v1390 = vadd.f32 %v1268, %v1389
    %1391 = vmatmul.f32.gmra.mxu0 %v1165
    %v1392 = vpop.f32.mrf.mxu0
    %v1393 = vadd.f32 %v1268, %v1392
    %1394 = vdwg.mxu0
    %v1395 = vperm.slane %v1264, 0
    %v1396 = vxor.u32 %v1290, 2147483648
    %v1397 = vmul.f32 %v1396, 1.442695
    %v1398 = vpow.pop %v1397
    %v1399 = vadd.f32 %v1398, 1.0
    %v1400 = vrcp.pop %v1399
    %v1401 = vmul.f32 %v1399, %v1400
    %v1402 = vsub.f32 1.0, %v1401
    %v1403 = vmul.f32 %v1400, %v1402
    %v1404 = vadd.f32 %v1400, %v1403
    %vm1405 = vweird.f32 %v1399
    %vm1406 = vweird.f32 %v1400
    %vm1407 = vmor %vm1405, %vm1406
    %v1408 = vsel %vm1407, %v1400, %v1404
    %v1409 = vand.u32 2147483647, %v1399
    %vm1410 = vcmp.eq.f32.partialorder %v1409, 8.507059e+37
    %v1411 = vand.u32 %v1399, 2147483648
    %v1412 = vor.u32 1.1754944e-38, %v1411
    %v1413 = vsel %vm1410, %v1412, %v1408
    %v1414 = vmul.f32 1.0, %v1413
    %v1415 = vxor.u32 %v1331, 2147483648
    %v1416 = vmul.f32 %v1415, 1.442695
    %v1417 = vpow.pop %v1416
    %v1418 = vadd.f32 %v1417, 1.0
    %v1419 = vrcp.pop %v1418
    %v1420 = vmul.f32 %v1418, %v1419
    %v1421 = vsub.f32 1.0, %v1420
    %v1422 = vmul.f32 %v1419, %v1421
    %v1423 = vadd.f32 %v1419, %v1422
    %vm1424 = vweird.f32 %v1418
    %vm1425 = vweird.f32 %v1419
    %vm1426 = vmor %vm1424, %vm1425
    %v1427 = vsel %vm1426, %v1419, %v1423
    %v1428 = vand.u32 2147483647, %v1418
    %vm1429 = vcmp.eq.f32.partialorder %v1428, 8.507059e+37
    %v1430 = vand.u32 %v1418, 2147483648
    %v1431 = vor.u32 1.1754944e-38, %v1430
    %v1432 = vsel %vm1429, %v1431, %v1427
    %v1433 = vmul.f32 1.0, %v1432
    %v1434 = vmul.f32 %v1414, %v1395
    %v1435 = vadd.f32 %v1372, %v1434
    %v1436 = vtanh.pop %v1435
    %v1437 = vsub.f32 1.0, %v1433
    %v1438 = vmul.f32 %v1437, %v1436
    %1439 = vst [vmem:[#allocation2] sm:$0xff] %v1438
    %1440 = vmatpush.msra.mxu0 %v1259
    %1441 = vmatpush.msra.mxu0 %v1256
    %1442 = vmatpush.msra.mxu0 %v1253
    %1443 = vmatpush.msra.mxu0 %v1250
    %1444 = vmatpush.msra.mxu0 %v1247
    %1445 = vmatpush.msra.mxu0 %v1244
    %1446 = vmatpush.msra.mxu0 %v1241
    %1447 = vmatpush.msra.mxu0 %v1238
    %1448 = vmatpush.msra.mxu0 %v1235
    %1449 = vmatpush.msra.mxu0 %v1232
    %1450 = vmatpush.msra.mxu0 %v1229
    %1451 = vmatpush.msra.mxu0 %v1226
    %1452 = vmatpush.msra.mxu0 %v1223
    %1453 = vmatpush.msra.mxu0 %v1220
    %1454 = vmatpush.msra.mxu0 %v1217
    %1455 = vmatpush.msra.mxu0 %v1214
    %1456 = vmatmul.f32.gmra.mxu0 %v1438
    %v1457 = vpop.f32.mrf.mxu0
    %v1458 = vadd.f32 0.0, %v1457
    %1459 = vdwg.mxu0
    %1460 = vmatpush.msra.mxu0 %v1260
    %1461 = vmatpush.msra.mxu0 %v1257
    %1462 = vmatpush.msra.mxu0 %v1254
    %1463 = vmatpush.msra.mxu0 %v1251
    %1464 = vmatpush.msra.mxu0 %v1248
    %1465 = vmatpush.msra.mxu0 %v1245
    %1466 = vmatpush.msra.mxu0 %v1242
    %1467 = vmatpush.msra.mxu0 %v1239
    %1468 = vmatpush.msra.mxu0 %v1236
    %1469 = vmatpush.msra.mxu0 %v1233
    %1470 = vmatpush.msra.mxu0 %v1230
    %1471 = vmatpush.msra.mxu0 %v1227
    %1472 = vmatpush.msra.mxu0 %v1224
    %1473 = vmatpush.msra.mxu0 %v1221
    %1474 = vmatpush.msra.mxu0 %v1218
    %1475 = vmatpush.msra.mxu0 %v1215
    %1476 = vmatmul.f32.gmra.mxu0 %v1438
    %v1477 = vpop.f32.mrf.mxu0
    %v1478 = vadd.f32 0.0, %v1477
    %1479 = vdwg.mxu0
    %1480 = vmatpush.msra.mxu0 %v1261
    %1481 = vmatpush.msra.mxu0 %v1258
    %1482 = vmatpush.msra.mxu0 %v1255
    %1483 = vmatpush.msra.mxu0 %v1252
    %1484 = vmatpush.msra.mxu0 %v1249
    %1485 = vmatpush.msra.mxu0 %v1246
    %1486 = vmatpush.msra.mxu0 %v1243
    %1487 = vmatpush.msra.mxu0 %v1240
    %1488 = vmatpush.msra.mxu0 %v1237
    %1489 = vmatpush.msra.mxu0 %v1234
    %1490 = vmatpush.msra.mxu0 %v1231
    %1491 = vmatpush.msra.mxu0 %v1228
    %1492 = vmatpush.msra.mxu0 %v1225
    %1493 = vmatpush.msra.mxu0 %v1222
    %1494 = vmatpush.msra.mxu0 %v1219
    %1495 = vmatpush.msra.mxu0 %v1216
    %1496 = vmatmul.f32.gmra.mxu0 %v1438
    %v1497 = vpop.f32.mrf.mxu0
    %v1498 = vadd.f32 0.0, %v1497
    %1499 = vdwg.mxu0
    %v1500 = vadd.f32 %v1293, %v1458
    %v1501 = vxor.u32 %v1500, 2147483648
    %v1502 = vmul.f32 %v1501, 1.442695
    %v1503 = vpow.pop %v1502
    %v1504 = vadd.f32 %v1503, 1.0
    %v1505 = vrcp.pop %v1504
    %v1506 = vmul.f32 %v1504, %v1505
    %v1507 = vsub.f32 1.0, %v1506
    %v1508 = vmul.f32 %v1505, %v1507
    %v1509 = vadd.f32 %v1505, %v1508
    %vm1510 = vweird.f32 %v1504
    %vm1511 = vweird.f32 %v1505
    %vm1512 = vmor %vm1510, %vm1511
    %v1513 = vsel %vm1512, %v1505, %v1509
    %v1514 = vand.u32 2147483647, %v1504
    %vm1515 = vcmp.eq.f32.partialorder %v1514, 8.507059e+37
    %v1516 = vand.u32 %v1504, 2147483648
    %v1517 = vor.u32 1.1754944e-38, %v1516
    %v1518 = vsel %vm1515, %v1517, %v1513
    %v1519 = vmul.f32 1.0, %v1518
    %v1520 = vadd.f32 %v1334, %v1478
    %v1521 = vxor.u32 %v1520, 2147483648
    %v1522 = vmul.f32 %v1521, 1.442695
    %v1523 = vpow.pop %v1522
    %v1524 = vadd.f32 %v1523, 1.0
    %v1525 = vrcp.pop %v1524
    %v1526 = vmul.f32 %v1524, %v1525
    %v1527 = vsub.f32 1.0, %v1526
    %v1528 = vmul.f32 %v1525, %v1527
    %v1529 = vadd.f32 %v1525, %v1528
    %vm1530 = vweird.f32 %v1524
    %vm1531 = vweird.f32 %v1525
    %vm1532 = vmor %vm1530, %vm1531
    %v1533 = vsel %vm1532, %v1525, %v1529
    %v1534 = vand.u32 2147483647, %v1524
    %vm1535 = vcmp.eq.f32.partialorder %v1534, 8.507059e+37
    %v1536 = vand.u32 %v1524, 2147483648
    %v1537 = vor.u32 1.1754944e-38, %v1536
    %v1538 = vsel %vm1535, %v1537, %v1533
    %v1539 = vmul.f32 1.0, %v1538
    %v1540 = vadd.f32 %v1498, %v1395
    %v1541 = vmul.f32 %v1519, %v1540
    %v1542 = vadd.f32 %v1375, %v1541
    %v1543 = vtanh.pop %v1542
    %v1544 = vsub.f32 1.0, %v1539
    %v1545 = vmul.f32 %v1544, %v1543
    %v1546 = vmul.f32 %v1539, %v1438
    %v1547 = vadd.f32 %v1545, %v1546
    %1548 = vst [vmem:[#allocation2 + $0x8] sm:$0xff] %v1547
    %1549 = vmatpush.msra.mxu0 %v1259
    %1550 = vmatpush.msra.mxu0 %v1256
    %1551 = vmatpush.msra.mxu0 %v1253
    %1552 = vmatpush.msra.mxu0 %v1250
    %1553 = vmatpush.msra.mxu0 %v1247
    %1554 = vmatpush.msra.mxu0 %v1244
    %1555 = vmatpush.msra.mxu0 %v1241
    %1556 = vmatpush.msra.mxu0 %v1238
    %1557 = vmatpush.msra.mxu0 %v1235
    %1558 = vmatpush.msra.mxu0 %v1232
    %1559 = vmatpush.msra.mxu0 %v1229
    %1560 = vmatpush.msra.mxu0 %v1226
    %1561 = vmatpush.msra.mxu0 %v1223
    %1562 = vmatpush.msra.mxu0 %v1220
    %1563 = vmatpush.msra.mxu0 %v1217
    %1564 = vmatpush.msra.mxu0 %v1214
    %1565 = vmatmul.f32.gmra.mxu0 %v1547
    %v1566 = vpop.f32.mrf.mxu0
    %v1567 = vadd.f32 0.0, %v1566
    %1568 = vdwg.mxu0
    %1569 = vmatpush.msra.mxu0 %v1260
    %1570 = vmatpush.msra.mxu0 %v1257
    %1571 = vmatpush.msra.mxu0 %v1254
    %1572 = vmatpush.msra.mxu0 %v1251
    %1573 = vmatpush.msra.mxu0 %v1248
    %1574 = vmatpush.msra.mxu0 %v1245
    %1575 = vmatpush.msra.mxu0 %v1242
    %1576 = vmatpush.msra.mxu0 %v1239
    %1577 = vmatpush.msra.mxu0 %v1236
    %1578 = vmatpush.msra.mxu0 %v1233
    %1579 = vmatpush.msra.mxu0 %v1230
    %1580 = vmatpush.msra.mxu0 %v1227
    %1581 = vmatpush.msra.mxu0 %v1224
    %1582 = vmatpush.msra.mxu0 %v1221
    %1583 = vmatpush.msra.mxu0 %v1218
    %1584 = vmatpush.msra.mxu0 %v1215
    %1585 = vmatmul.f32.gmra.mxu0 %v1547
    %v1586 = vpop.f32.mrf.mxu0
    %v1587 = vadd.f32 0.0, %v1586
    %1588 = vdwg.mxu0
    %1589 = vmatpush.msra.mxu0 %v1261
    %1590 = vmatpush.msra.mxu0 %v1258
    %1591 = vmatpush.msra.mxu0 %v1255
    %1592 = vmatpush.msra.mxu0 %v1252
    %1593 = vmatpush.msra.mxu0 %v1249
    %1594 = vmatpush.msra.mxu0 %v1246
    %1595 = vmatpush.msra.mxu0 %v1243
    %1596 = vmatpush.msra.mxu0 %v1240
    %1597 = vmatpush.msra.mxu0 %v1237
    %1598 = vmatpush.msra.mxu0 %v1234
    %1599 = vmatpush.msra.mxu0 %v1231
    %1600 = vmatpush.msra.mxu0 %v1228
    %1601 = vmatpush.msra.mxu0 %v1225
    %1602 = vmatpush.msra.mxu0 %v1222
    %1603 = vmatpush.msra.mxu0 %v1219
    %1604 = vmatpush.msra.mxu0 %v1216
    %1605 = vmatmul.f32.gmra.mxu0 %v1547
    %v1606 = vpop.f32.mrf.mxu0
    %v1607 = vadd.f32 0.0, %v1606
    %1608 = vdwg.mxu0
    %v1609 = vadd.f32 %v1296, %v1567
    %v1610 = vxor.u32 %v1609, 2147483648
    %v1611 = vmul.f32 %v1610, 1.442695
    %v1612 = vpow.pop %v1611
    %v1613 = vadd.f32 %v1612, 1.0
    %v1614 = vrcp.pop %v1613
    %v1615 = vmul.f32 %v1613, %v1614
    %v1616 = vsub.f32 1.0, %v1615
    %v1617 = vmul.f32 %v1614, %v1616
    %v1618 = vadd.f32 %v1614, %v1617
    %vm1619 = vweird.f32 %v1613
    %vm1620 = vweird.f32 %v1614
    %vm1621 = vmor %vm1619, %vm1620
    %v1622 = vsel %vm1621, %v1614, %v1618
    %v1623 = vand.u32 2147483647, %v1613
    %vm1624 = vcmp.eq.f32.partialorder %v1623, 8.507059e+37
    %v1625 = vand.u32 %v1613, 2147483648
    %v1626 = vor.u32 1.1754944e-38, %v1625
    %v1627 = vsel %vm1624, %v1626, %v1622
    %v1628 = vmul.f32 1.0, %v1627
    %v1629 = vadd.f32 %v1337, %v1587
    %v1630 = vxor.u32 %v1629, 2147483648
    %v1631 = vmul.f32 %v1630, 1.442695
    %v1632 = vpow.pop %v1631
    %v1633 = vadd.f32 %v1632, 1.0
    %v1634 = vrcp.pop %v1633
    %v1635 = vmul.f32 %v1633, %v1634
    %v1636 = vsub.f32 1.0, %v1635
    %v1637 = vmul.f32 %v1634, %v1636
    %v1638 = vadd.f32 %v1634, %v1637
    %vm1639 = vweird.f32 %v1633
    %vm1640 = vweird.f32 %v1634
    %vm1641 = vmor %vm1639, %vm1640
    %v1642 = vsel %vm1641, %v1634, %v1638
    %v1643 = vand.u32 2147483647, %v1633
    %vm1644 = vcmp.eq.f32.partialorder %v1643, 8.507059e+37
    %v1645 = vand.u32 %v1633, 2147483648
    %v1646 = vor.u32 1.1754944e-38, %v1645
    %v1647 = vsel %vm1644, %v1646, %v1642
    %v1648 = vmul.f32 1.0, %v1647
    %v1649 = vadd.f32 %v1607, %v1395
    %v1650 = vmul.f32 %v1628, %v1649
    %v1651 = vadd.f32 %v1378, %v1650
    %v1652 = vtanh.pop %v1651
    %v1653 = vsub.f32 1.0, %v1648
    %v1654 = vmul.f32 %v1653, %v1652
    %v1655 = vmul.f32 %v1648, %v1547
    %v1656 = vadd.f32 %v1654, %v1655
    %1657 = vst [vmem:[#allocation2 + $0x10] sm:$0xff] %v1656
    %1658 = vmatpush.msra.mxu0 %v1259
    %1659 = vmatpush.msra.mxu0 %v1256
    %1660 = vmatpush.msra.mxu0 %v1253
    %1661 = vmatpush.msra.mxu0 %v1250
    %1662 = vmatpush.msra.mxu0 %v1247
    %1663 = vmatpush.msra.mxu0 %v1244
    %1664 = vmatpush.msra.mxu0 %v1241
    %1665 = vmatpush.msra.mxu0 %v1238
    %1666 = vmatpush.msra.mxu0 %v1235
    %1667 = vmatpush.msra.mxu0 %v1232
    %1668 = vmatpush.msra.mxu0 %v1229
    %1669 = vmatpush.msra.mxu0 %v1226
    %1670 = vmatpush.msra.mxu0 %v1223
    %1671 = vmatpush.msra.mxu0 %v1220
    %1672 = vmatpush.msra.mxu0 %v1217
    %1673 = vmatpush.msra.mxu0 %v1214
    %1674 = vmatmul.f32.gmra.mxu0 %v1656
    %v1675 = vpop.f32.mrf.mxu0
    %v1676 = vadd.f32 0.0, %v1675
    %1677 = vdwg.mxu0
    %1678 = vmatpush.msra.mxu0 %v1260
    %1679 = vmatpush.msra.mxu0 %v1257
    %1680 = vmatpush.msra.mxu0 %v1254
    %1681 = vmatpush.msra.mxu0 %v1251
    %1682 = vmatpush.msra.mxu0 %v1248
    %1683 = vmatpush.msra.mxu0 %v1245
    %1684 = vmatpush.msra.mxu0 %v1242
    %1685 = vmatpush.msra.mxu0 %v1239
    %1686 = vmatpush.msra.mxu0 %v1236
    %1687 = vmatpush.msra.mxu0 %v1233
    %1688 = vmatpush.msra.mxu0 %v1230
    %1689 = vmatpush.msra.mxu0 %v1227
    %1690 = vmatpush.msra.mxu0 %v1224
    %1691 = vmatpush.msra.mxu0 %v1221
    %1692 = vmatpush.msra.mxu0 %v1218
    %1693 = vmatpush.msra.mxu0 %v1215
    %1694 = vmatmul.f32.gmra.mxu0 %v1656
    %v1695 = vpop.f32.mrf.mxu0
    %v1696 = vadd.f32 0.0, %v1695
    %1697 = vdwg.mxu0
    %1698 = vmatpush.msra.mxu0 %v1261
    %1699 = vmatpush.msra.mxu0 %v1258
    %1700 = vmatpush.msra.mxu0 %v1255
    %1701 = vmatpush.msra.mxu0 %v1252
    %1702 = vmatpush.msra.mxu0 %v1249
    %1703 = vmatpush.msra.mxu0 %v1246
    %1704 = vmatpush.msra.mxu0 %v1243
    %1705 = vmatpush.msra.mxu0 %v1240
    %1706 = vmatpush.msra.mxu0 %v1237
    %1707 = vmatpush.msra.mxu0 %v1234
    %1708 = vmatpush.msra.mxu0 %v1231
    %1709 = vmatpush.msra.mxu0 %v1228
    %1710 = vmatpush.msra.mxu0 %v1225
    %1711 = vmatpush.msra.mxu0 %v1222
    %1712 = vmatpush.msra.mxu0 %v1219
    %1713 = vmatpush.msra.mxu0 %v1216
    %1714 = vmatmul.f32.gmra.mxu0 %v1656
    %v1715 = vpop.f32.mrf.mxu0
    %v1716 = vadd.f32 0.0, %v1715
    %1717 = vdwg.mxu0
    %v1718 = vadd.f32 %v1299, %v1676
    %v1719 = vxor.u32 %v1718, 2147483648
    %v1720 = vmul.f32 %v1719, 1.442695
    %v1721 = vpow.pop %v1720
    %v1722 = vadd.f32 %v1721, 1.0
    %v1723 = vrcp.pop %v1722
    %v1724 = vmul.f32 %v1722, %v1723
    %v1725 = vsub.f32 1.0, %v1724
    %v1726 = vmul.f32 %v1723, %v1725
    %v1727 = vadd.f32 %v1723, %v1726
    %vm1728 = vweird.f32 %v1722
    %vm1729 = vweird.f32 %v1723
    %vm1730 = vmor %vm1728, %vm1729
    %v1731 = vsel %vm1730, %v1723, %v1727
    %v1732 = vand.u32 2147483647, %v1722
    %vm1733 = vcmp.eq.f32.partialorder %v1732, 8.507059e+37
    %v1734 = vand.u32 %v1722, 2147483648
    %v1735 = vor.u32 1.1754944e-38, %v1734
    %v1736 = vsel %vm1733, %v1735, %v1731
    %v1737 = vmul.f32 1.0, %v1736
    %v1738 = vadd.f32 %v1340, %v1696
    %v1739 = vxor.u32 %v1738, 2147483648
    %v1740 = vmul.f32 %v1739, 1.442695
    %v1741 = vpow.pop %v1740
    %v1742 = vadd.f32 %v1741, 1.0
    %v1743 = vrcp.pop %v1742
    %v1744 = vmul.f32 %v1742, %v1743
    %v1745 = vsub.f32 1.0, %v1744
    %v1746 = vmul.f32 %v1743, %v1745
    %v1747 = vadd.f32 %v1743, %v1746
    %vm1748 = vweird.f32 %v1742
    %vm1749 = vweird.f32 %v1743
    %vm1750 = vmor %vm1748, %vm1749
    %v1751 = vsel %vm1750, %v1743, %v1747
    %v1752 = vand.u32 2147483647, %v1742
    %vm1753 = vcmp.eq.f32.partialorder %v1752, 8.507059e+37
    %v1754 = vand.u32 %v1742, 2147483648
    %v1755 = vor.u32 1.1754944e-38, %v1754
    %v1756 = vsel %vm1753, %v1755, %v1751
    %v1757 = vmul.f32 1.0, %v1756
    %v1758 = vadd.f32 %v1716, %v1395
    %v1759 = vmul.f32 %v1737, %v1758
    %v1760 = vadd.f32 %v1381, %v1759
    %v1761 = vtanh.pop %v1760
    %v1762 = vsub.f32 1.0, %v1757
    %v1763 = vmul.f32 %v1762, %v1761
    %v1764 = vmul.f32 %v1757, %v1656
    %v1765 = vadd.f32 %v1763, %v1764
    %1766 = vst [vmem:[#allocation2 + $0x18] sm:$0xff] %v1765
    %1767 = vmatpush.msra.mxu0 %v1259
    %1768 = vmatpush.msra.mxu0 %v1256
    %1769 = vmatpush.msra.mxu0 %v1253
    %1770 = vmatpush.msra.mxu0 %v1250
    %1771 = vmatpush.msra.mxu0 %v1247
    %1772 = vmatpush.msra.mxu0 %v1244
    %1773 = vmatpush.msra.mxu0 %v1241
    %1774 = vmatpush.msra.mxu0 %v1238
    %1775 = vmatpush.msra.mxu0 %v1235
    %1776 = vmatpush.msra.mxu0 %v1232
    %1777 = vmatpush.msra.mxu0 %v1229
    %1778 = vmatpush.msra.mxu0 %v1226
    %1779 = vmatpush.msra.mxu0 %v1223
    %1780 = vmatpush.msra.mxu0 %v1220
    %1781 = vmatpush.msra.mxu0 %v1217
    %1782 = vmatpush.msra.mxu0 %v1214
    %1783 = vmatmul.f32.gmra.mxu0 %v1765
    %v1784 = vpop.f32.mrf.mxu0
    %v1785 = vadd.f32 0.0, %v1784
    %1786 = vdwg.mxu0
    %1787 = vmatpush.msra.mxu0 %v1260
    %1788 = vmatpush.msra.mxu0 %v1257
    %1789 = vmatpush.msra.mxu0 %v1254
    %1790 = vmatpush.msra.mxu0 %v1251
    %1791 = vmatpush.msra.mxu0 %v1248
    %1792 = vmatpush.msra.mxu0 %v1245
    %1793 = vmatpush.msra.mxu0 %v1242
    %1794 = vmatpush.msra.mxu0 %v1239
    %1795 = vmatpush.msra.mxu0 %v1236
    %1796 = vmatpush.msra.mxu0 %v1233
    %1797 = vmatpush.msra.mxu0 %v1230
    %1798 = vmatpush.msra.mxu0 %v1227
    %1799 = vmatpush.msra.mxu0 %v1224
    %1800 = vmatpush.msra.mxu0 %v1221
    %1801 = vmatpush.msra.mxu0 %v1218
    %1802 = vmatpush.msra.mxu0 %v1215
    %1803 = vmatmul.f32.gmra.mxu0 %v1765
    %v1804 = vpop.f32.mrf.mxu0
    %v1805 = vadd.f32 0.0, %v1804
    %1806 = vdwg.mxu0
    %1807 = vmatpush.msra.mxu0 %v1261
    %1808 = vmatpush.msra.mxu0 %v1258
    %1809 = vmatpush.msra.mxu0 %v1255
    %1810 = vmatpush.msra.mxu0 %v1252
    %1811 = vmatpush.msra.mxu0 %v1249
    %1812 = vmatpush.msra.mxu0 %v1246
    %1813 = vmatpush.msra.mxu0 %v1243
    %1814 = vmatpush.msra.mxu0 %v1240
    %1815 = vmatpush.msra.mxu0 %v1237
    %1816 = vmatpush.msra.mxu0 %v1234
    %1817 = vmatpush.msra.mxu0 %v1231
    %1818 = vmatpush.msra.mxu0 %v1228
    %1819 = vmatpush.msra.mxu0 %v1225
    %1820 = vmatpush.msra.mxu0 %v1222
    %1821 = vmatpush.msra.mxu0 %v1219
    %1822 = vmatpush.msra.mxu0 %v1216
    %1823 = vmatmul.f32.gmra.mxu0 %v1765
    %v1824 = vpop.f32.mrf.mxu0
    %v1825 = vadd.f32 0.0, %v1824
    %1826 = vdwg.mxu0
    %v1827 = vadd.f32 %v1302, %v1785
    %v1828 = vxor.u32 %v1827, 2147483648
    %v1829 = vmul.f32 %v1828, 1.442695
    %v1830 = vpow.pop %v1829
    %v1831 = vadd.f32 %v1830, 1.0
    %v1832 = vrcp.pop %v1831
    %v1833 = vmul.f32 %v1831, %v1832
    %v1834 = vsub.f32 1.0, %v1833
    %v1835 = vmul.f32 %v1832, %v1834
    %v1836 = vadd.f32 %v1832, %v1835
    %vm1837 = vweird.f32 %v1831
    %vm1838 = vweird.f32 %v1832
    %vm1839 = vmor %vm1837, %vm1838
    %v1840 = vsel %vm1839, %v1832, %v1836
    %v1841 = vand.u32 2147483647, %v1831
    %vm1842 = vcmp.eq.f32.partialorder %v1841, 8.507059e+37
    %v1843 = vand.u32 %v1831, 2147483648
    %v1844 = vor.u32 1.1754944e-38, %v1843
    %v1845 = vsel %vm1842, %v1844, %v1840
    %v1846 = vmul.f32 1.0, %v1845
    %v1847 = vadd.f32 %v1343, %v1805
    %v1848 = vxor.u32 %v1847, 2147483648
    %v1849 = vmul.f32 %v1848, 1.442695
    %v1850 = vpow.pop %v1849
    %v1851 = vadd.f32 %v1850, 1.0
    %v1852 = vrcp.pop %v1851
    %v1853 = vmul.f32 %v1851, %v1852
    %v1854 = vsub.f32 1.0, %v1853
    %v1855 = vmul.f32 %v1852, %v1854
    %v1856 = vadd.f32 %v1852, %v1855
    %vm1857 = vweird.f32 %v1851
    %vm1858 = vweird.f32 %v1852
    %vm1859 = vmor %vm1857, %vm1858
    %v1860 = vsel %vm1859, %v1852, %v1856
    %v1861 = vand.u32 2147483647, %v1851
    %vm1862 = vcmp.eq.f32.partialorder %v1861, 8.507059e+37
    %v1863 = vand.u32 %v1851, 2147483648
    %v1864 = vor.u32 1.1754944e-38, %v1863
    %v1865 = vsel %vm1862, %v1864, %v1860
    %v1866 = vmul.f32 1.0, %v1865
    %v1867 = vadd.f32 %v1825, %v1395
    %v1868 = vmul.f32 %v1846, %v1867
    %v1869 = vadd.f32 %v1384, %v1868
    %v1870 = vtanh.pop %v1869
    %v1871 = vsub.f32 1.0, %v1866
    %v1872 = vmul.f32 %v1871, %v1870
    %v1873 = vmul.f32 %v1866, %v1765
    %v1874 = vadd.f32 %v1872, %v1873
    %1875 = vst [vmem:[#allocation2 + $0x20] sm:$0xff] %v1874
    %1876 = vmatpush.msra.mxu0 %v1259
    %1877 = vmatpush.msra.mxu0 %v1256
    %1878 = vmatpush.msra.mxu0 %v1253
    %1879 = vmatpush.msra.mxu0 %v1250
    %1880 = vmatpush.msra.mxu0 %v1247
    %1881 = vmatpush.msra.mxu0 %v1244
    %1882 = vmatpush.msra.mxu0 %v1241
    %1883 = vmatpush.msra.mxu0 %v1238
    %1884 = vmatpush.msra.mxu0 %v1235
    %1885 = vmatpush.msra.mxu0 %v1232
    %1886 = vmatpush.msra.mxu0 %v1229
    %1887 = vmatpush.msra.mxu0 %v1226
    %1888 = vmatpush.msra.mxu0 %v1223
    %1889 = vmatpush.msra.mxu0 %v1220
    %1890 = vmatpush.msra.mxu0 %v1217
    %1891 = vmatpush.msra.mxu0 %v1214
    %1892 = vmatmul.f32.gmra.mxu0 %v1874
    %v1893 = vpop.f32.mrf.mxu0
    %v1894 = vadd.f32 0.0, %v1893
    %1895 = vdwg.mxu0
    %1896 = vmatpush.msra.mxu0 %v1260
    %1897 = vmatpush.msra.mxu0 %v1257
    %1898 = vmatpush.msra.mxu0 %v1254
    %1899 = vmatpush.msra.mxu0 %v1251
    %1900 = vmatpush.msra.mxu0 %v1248
    %1901 = vmatpush.msra.mxu0 %v1245
    %1902 = vmatpush.msra.mxu0 %v1242
    %1903 = vmatpush.msra.mxu0 %v1239
    %1904 = vmatpush.msra.mxu0 %v1236
    %1905 = vmatpush.msra.mxu0 %v1233
    %1906 = vmatpush.msra.mxu0 %v1230
    %1907 = vmatpush.msra.mxu0 %v1227
    %1908 = vmatpush.msra.mxu0 %v1224
    %1909 = vmatpush.msra.mxu0 %v1221
    %1910 = vmatpush.msra.mxu0 %v1218
    %1911 = vmatpush.msra.mxu0 %v1215
    %1912 = vmatmul.f32.gmra.mxu0 %v1874
    %v1913 = vpop.f32.mrf.mxu0
    %v1914 = vadd.f32 0.0, %v1913
    %1915 = vdwg.mxu0
    %1916 = vmatpush.msra.mxu0 %v1261
    %1917 = vmatpush.msra.mxu0 %v1258
    %1918 = vmatpush.msra.mxu0 %v1255
    %1919 = vmatpush.msra.mxu0 %v1252
    %1920 = vmatpush.msra.mxu0 %v1249
    %1921 = vmatpush.msra.mxu0 %v1246
    %1922 = vmatpush.msra.mxu0 %v1243
    %1923 = vmatpush.msra.mxu0 %v1240
    %1924 = vmatpush.msra.mxu0 %v1237
    %1925 = vmatpush.msra.mxu0 %v1234
    %1926 = vmatpush.msra.mxu0 %v1231
    %1927 = vmatpush.msra.mxu0 %v1228
    %1928 = vmatpush.msra.mxu0 %v1225
    %1929 = vmatpush.msra.mxu0 %v1222
    %1930 = vmatpush.msra.mxu0 %v1219
    %1931 = vmatpush.msra.mxu0 %v1216
    %1932 = vmatmul.f32.gmra.mxu0 %v1874
    %v1933 = vpop.f32.mrf.mxu0
    %v1934 = vadd.f32 0.0, %v1933
    %1935 = vdwg.mxu0
    %v1936 = vadd.f32 %v1305, %v1894
    %v1937 = vxor.u32 %v1936, 2147483648
    %v1938 = vmul.f32 %v1937, 1.442695
    %v1939 = vpow.pop %v1938
    %v1940 = vadd.f32 %v1939, 1.0
    %v1941 = vrcp.pop %v1940
    %v1942 = vmul.f32 %v1940, %v1941
    %v1943 = vsub.f32 1.0, %v1942
    %v1944 = vmul.f32 %v1941, %v1943
    %v1945 = vadd.f32 %v1941, %v1944
    %vm1946 = vweird.f32 %v1940
    %vm1947 = vweird.f32 %v1941
    %vm1948 = vmor %vm1946, %vm1947
    %v1949 = vsel %vm1948, %v1941, %v1945
    %v1950 = vand.u32 2147483647, %v1940
    %vm1951 = vcmp.eq.f32.partialorder %v1950, 8.507059e+37
    %v1952 = vand.u32 %v1940, 2147483648
    %v1953 = vor.u32 1.1754944e-38, %v1952
    %v1954 = vsel %vm1951, %v1953, %v1949
    %v1955 = vmul.f32 1.0, %v1954
    %v1956 = vadd.f32 %v1346, %v1914
    %v1957 = vxor.u32 %v1956, 2147483648
    %v1958 = vmul.f32 %v1957, 1.442695
    %v1959 = vpow.pop %v1958
    %v1960 = vadd.f32 %v1959, 1.0
    %v1961 = vrcp.pop %v1960
    %v1962 = vmul.f32 %v1960, %v1961
    %v1963 = vsub.f32 1.0, %v1962
    %v1964 = vmul.f32 %v1961, %v1963
    %v1965 = vadd.f32 %v1961, %v1964
    %vm1966 = vweird.f32 %v1960
    %vm1967 = vweird.f32 %v1961
    %vm1968 = vmor %vm1966, %vm1967
    %v1969 = vsel %vm1968, %v1961, %v1965
    %v1970 = vand.u32 2147483647, %v1960
    %vm1971 = vcmp.eq.f32.partialorder %v1970, 8.507059e+37
    %v1972 = vand.u32 %v1960, 2147483648
    %v1973 = vor.u32 1.1754944e-38, %v1972
    %v1974 = vsel %vm1971, %v1973, %v1969
    %v1975 = vmul.f32 1.0, %v1974
    %v1976 = vadd.f32 %v1934, %v1395
    %v1977 = vmul.f32 %v1955, %v1976
    %v1978 = vadd.f32 %v1387, %v1977
    %v1979 = vtanh.pop %v1978
    %v1980 = vsub.f32 1.0, %v1975
    %v1981 = vmul.f32 %v1980, %v1979
    %v1982 = vmul.f32 %v1975, %v1874
    %v1983 = vadd.f32 %v1981, %v1982
    %1984 = vst [vmem:[#allocation2 + $0x28] sm:$0xff] %v1983
    %1985 = vmatpush.msra.mxu0 %v1259
    %1986 = vmatpush.msra.mxu0 %v1256
    %1987 = vmatpush.msra.mxu0 %v1253
    %1988 = vmatpush.msra.mxu0 %v1250
    %1989 = vmatpush.msra.mxu0 %v1247
    %1990 = vmatpush.msra.mxu0 %v1244
    %1991 = vmatpush.msra.mxu0 %v1241
    %1992 = vmatpush.msra.mxu0 %v1238
    %1993 = vmatpush.msra.mxu0 %v1235
    %1994 = vmatpush.msra.mxu0 %v1232
    %1995 = vmatpush.msra.mxu0 %v1229
    %1996 = vmatpush.msra.mxu0 %v1226
    %1997 = vmatpush.msra.mxu0 %v1223
    %1998 = vmatpush.msra.mxu0 %v1220
    %1999 = vmatpush.msra.mxu0 %v1217
    %2000 = vmatpush.msra.mxu0 %v1214
    %2001 = vmatmul.f32.gmra.mxu0 %v1983
    %v2002 = vpop.f32.mrf.mxu0
    %v2003 = vadd.f32 0.0, %v2002
    %2004 = vdwg.mxu0
    %2005 = vmatpush.msra.mxu0 %v1260
    %2006 = vmatpush.msra.mxu0 %v1257
    %2007 = vmatpush.msra.mxu0 %v1254
    %2008 = vmatpush.msra.mxu0 %v1251
    %2009 = vmatpush.msra.mxu0 %v1248
    %2010 = vmatpush.msra.mxu0 %v1245
    %2011 = vmatpush.msra.mxu0 %v1242
    %2012 = vmatpush.msra.mxu0 %v1239
    %2013 = vmatpush.msra.mxu0 %v1236
    %2014 = vmatpush.msra.mxu0 %v1233
    %2015 = vmatpush.msra.mxu0 %v1230
    %2016 = vmatpush.msra.mxu0 %v1227
    %2017 = vmatpush.msra.mxu0 %v1224
    %2018 = vmatpush.msra.mxu0 %v1221
    %2019 = vmatpush.msra.mxu0 %v1218
    %2020 = vmatpush.msra.mxu0 %v1215
    %2021 = vmatmul.f32.gmra.mxu0 %v1983
    %v2022 = vpop.f32.mrf.mxu0
    %v2023 = vadd.f32 0.0, %v2022
    %2024 = vdwg.mxu0
    %2025 = vmatpush.msra.mxu0 %v1261
    %2026 = vmatpush.msra.mxu0 %v1258
    %2027 = vmatpush.msra.mxu0 %v1255
    %2028 = vmatpush.msra.mxu0 %v1252
    %2029 = vmatpush.msra.mxu0 %v1249
    %2030 = vmatpush.msra.mxu0 %v1246
    %2031 = vmatpush.msra.mxu0 %v1243
    %2032 = vmatpush.msra.mxu0 %v1240
    %2033 = vmatpush.msra.mxu0 %v1237
    %2034 = vmatpush.msra.mxu0 %v1234
    %2035 = vmatpush.msra.mxu0 %v1231
    %2036 = vmatpush.msra.mxu0 %v1228
    %2037 = vmatpush.msra.mxu0 %v1225
    %2038 = vmatpush.msra.mxu0 %v1222
    %2039 = vmatpush.msra.mxu0 %v1219
    %2040 = vmatpush.msra.mxu0 %v1216
    %2041 = vmatmul.f32.gmra.mxu0 %v1983
    %v2042 = vpop.f32.mrf.mxu0
    %v2043 = vadd.f32 0.0, %v2042
    %2044 = vdwg.mxu0
    %v2045 = vadd.f32 %v1308, %v2003
    %v2046 = vxor.u32 %v2045, 2147483648
    %v2047 = vmul.f32 %v2046, 1.442695
    %v2048 = vpow.pop %v2047
    %v2049 = vadd.f32 %v2048, 1.0
    %v2050 = vrcp.pop %v2049
    %v2051 = vmul.f32 %v2049, %v2050
    %v2052 = vsub.f32 1.0, %v2051
    %v2053 = vmul.f32 %v2050, %v2052
    %v2054 = vadd.f32 %v2050, %v2053
    %vm2055 = vweird.f32 %v2049
    %vm2056 = vweird.f32 %v2050
    %vm2057 = vmor %vm2055, %vm2056
    %v2058 = vsel %vm2057, %v2050, %v2054
    %v2059 = vand.u32 2147483647, %v2049
    %vm2060 = vcmp.eq.f32.partialorder %v2059, 8.507059e+37
    %v2061 = vand.u32 %v2049, 2147483648
    %v2062 = vor.u32 1.1754944e-38, %v2061
    %v2063 = vsel %vm2060, %v2062, %v2058
    %v2064 = vmul.f32 1.0, %v2063
    %v2065 = vadd.f32 %v1349, %v2023
    %v2066 = vxor.u32 %v2065, 2147483648
    %v2067 = vmul.f32 %v2066, 1.442695
    %v2068 = vpow.pop %v2067
    %v2069 = vadd.f32 %v2068, 1.0
    %v2070 = vrcp.pop %v2069
    %v2071 = vmul.f32 %v2069, %v2070
    %v2072 = vsub.f32 1.0, %v2071
    %v2073 = vmul.f32 %v2070, %v2072
    %v2074 = vadd.f32 %v2070, %v2073
    %vm2075 = vweird.f32 %v2069
    %vm2076 = vweird.f32 %v2070
    %vm2077 = vmor %vm2075, %vm2076
    %v2078 = vsel %vm2077, %v2070, %v2074
    %v2079 = vand.u32 2147483647, %v2069
    %vm2080 = vcmp.eq.f32.partialorder %v2079, 8.507059e+37
    %v2081 = vand.u32 %v2069, 2147483648
    %v2082 = vor.u32 1.1754944e-38, %v2081
    %v2083 = vsel %vm2080, %v2082, %v2078
    %v2084 = vmul.f32 1.0, %v2083
    %v2085 = vadd.f32 %v2043, %v1395
    %v2086 = vmul.f32 %v2064, %v2085
    %v2087 = vadd.f32 %v1390, %v2086
    %v2088 = vtanh.pop %v2087
    %v2089 = vsub.f32 1.0, %v2084
    %v2090 = vmul.f32 %v2089, %v2088
    %v2091 = vmul.f32 %v2084, %v1983
    %v2092 = vadd.f32 %v2090, %v2091
    %2093 = vst [vmem:[#allocation2 + $0x30] sm:$0xff] %v2092
    %2094 = vmatpush.msra.mxu0 %v1259
    %2095 = vmatpush.msra.mxu0 %v1256
    %2096 = vmatpush.msra.mxu0 %v1253
    %2097 = vmatpush.msra.mxu0 %v1250
    %2098 = vmatpush.msra.mxu0 %v1247
    %2099 = vmatpush.msra.mxu0 %v1244
    %2100 = vmatpush.msra.mxu0 %v1241
    %2101 = vmatpush.msra.mxu0 %v1238
    %2102 = vmatpush.msra.mxu0 %v1235
    %2103 = vmatpush.msra.mxu0 %v1232
    %2104 = vmatpush.msra.mxu0 %v1229
    %2105 = vmatpush.msra.mxu0 %v1226
    %2106 = vmatpush.msra.mxu0 %v1223
    %2107 = vmatpush.msra.mxu0 %v1220
    %2108 = vmatpush.msra.mxu0 %v1217
    %2109 = vmatpush.msra.mxu0 %v1214
    %2110 = vmatmul.f32.gmra.mxu0 %v2092
    %v2111 = vpop.f32.mrf.mxu0
    %v2112 = vadd.f32 0.0, %v2111
    %2113 = vdwg.mxu0
    %2114 = vmatpush.msra.mxu0 %v1260
    %2115 = vmatpush.msra.mxu0 %v1257
    %2116 = vmatpush.msra.mxu0 %v1254
    %2117 = vmatpush.msra.mxu0 %v1251
    %2118 = vmatpush.msra.mxu0 %v1248
    %2119 = vmatpush.msra.mxu0 %v1245
    %2120 = vmatpush.msra.mxu0 %v1242
    %2121 = vmatpush.msra.mxu0 %v1239
    %2122 = vmatpush.msra.mxu0 %v1236
    %2123 = vmatpush.msra.mxu0 %v1233
    %2124 = vmatpush.msra.mxu0 %v1230
    %2125 = vmatpush.msra.mxu0 %v1227
    %2126 = vmatpush.msra.mxu0 %v1224
    %2127 = vmatpush.msra.mxu0 %v1221
    %2128 = vmatpush.msra.mxu0 %v1218
    %2129 = vmatpush.msra.mxu0 %v1215
    %2130 = vmatmul.f32.gmra.mxu0 %v2092
    %v2131 = vpop.f32.mrf.mxu0
    %v2132 = vadd.f32 0.0, %v2131
    %2133 = vdwg.mxu0
    %2134 = vmatpush.msra.mxu0 %v1261
    %2135 = vmatpush.msra.mxu0 %v1258
    %2136 = vmatpush.msra.mxu0 %v1255
    %2137 = vmatpush.msra.mxu0 %v1252
    %2138 = vmatpush.msra.mxu0 %v1249
    %2139 = vmatpush.msra.mxu0 %v1246
    %2140 = vmatpush.msra.mxu0 %v1243
    %2141 = vmatpush.msra.mxu0 %v1240
    %2142 = vmatpush.msra.mxu0 %v1237
    %2143 = vmatpush.msra.mxu0 %v1234
    %2144 = vmatpush.msra.mxu0 %v1231
    %2145 = vmatpush.msra.mxu0 %v1228
    %2146 = vmatpush.msra.mxu0 %v1225
    %2147 = vmatpush.msra.mxu0 %v1222
    %2148 = vmatpush.msra.mxu0 %v1219
    %2149 = vmatpush.msra.mxu0 %v1216
    %2150 = vmatmul.f32.gmra.mxu0 %v2092
    %v2151 = vpop.f32.mrf.mxu0
    %v2152 = vadd.f32 0.0, %v2151
    %2153 = vdwg.mxu0
    %v2154 = vadd.f32 %v1311, %v2112
    %v2155 = vxor.u32 %v2154, 2147483648
    %v2156 = vmul.f32 %v2155, 1.442695
    %v2157 = vpow.pop %v2156
    %v2158 = vadd.f32 %v2157, 1.0
    %v2159 = vrcp.pop %v2158
    %v2160 = vmul.f32 %v2158, %v2159
    %v2161 = vsub.f32 1.0, %v2160
    %v2162 = vmul.f32 %v2159, %v2161
    %v2163 = vadd.f32 %v2159, %v2162
    %vm2164 = vweird.f32 %v2158
    %vm2165 = vweird.f32 %v2159
    %vm2166 = vmor %vm2164, %vm2165
    %v2167 = vsel %vm2166, %v2159, %v2163
    %v2168 = vand.u32 2147483647, %v2158
    %vm2169 = vcmp.eq.f32.partialorder %v2168, 8.507059e+37
    %v2170 = vand.u32 %v2158, 2147483648
    %v2171 = vor.u32 1.1754944e-38, %v2170
    %v2172 = vsel %vm2169, %v2171, %v2167
    %v2173 = vmul.f32 1.0, %v2172
    %v2174 = vadd.f32 %v1352, %v2132
    %v2175 = vxor.u32 %v2174, 2147483648
    %v2176 = vmul.f32 %v2175, 1.442695
    %v2177 = vpow.pop %v2176
    %v2178 = vadd.f32 %v2177, 1.0
    %v2179 = vrcp.pop %v2178
    %v2180 = vmul.f32 %v2178, %v2179
    %v2181 = vsub.f32 1.0, %v2180
    %v2182 = vmul.f32 %v2179, %v2181
    %v2183 = vadd.f32 %v2179, %v2182
    %vm2184 = vweird.f32 %v2178
    %vm2185 = vweird.f32 %v2179
    %vm2186 = vmor %vm2184, %vm2185
    %v2187 = vsel %vm2186, %v2179, %v2183
    %v2188 = vand.u32 2147483647, %v2178
    %vm2189 = vcmp.eq.f32.partialorder %v2188, 8.507059e+37
    %v2190 = vand.u32 %v2178, 2147483648
    %v2191 = vor.u32 1.1754944e-38, %v2190
    %v2192 = vsel %vm2189, %v2191, %v2187
    %v2193 = vmul.f32 1.0, %v2192
    %v2194 = vadd.f32 %v2152, %v1395
    %v2195 = vmul.f32 %v2173, %v2194
    %v2196 = vadd.f32 %v1393, %v2195
    %v2197 = vtanh.pop %v2196
    %v2198 = vsub.f32 1.0, %v2193
    %v2199 = vmul.f32 %v2198, %v2197
    %v2200 = vmul.f32 %v2193, %v2092
    %v2201 = vadd.f32 %v2199, %v2200
    %2202 = vst [vmem:[#allocation2 + $0x38] sm:$0xff] %v2201
    %v2203 = vld [vmem:[#allocation2] sm:$0xff]
    %v2204 = vld [vmem:[#allocation2 + $0x8] sm:$0xff]
    %v2205 = vld [vmem:[#allocation2 + $0x10] sm:$0xff]
    %v2206 = vld [vmem:[#allocation2 + $0x18] sm:$0xff]
    %v2207 = vld [vmem:[#allocation2 + $0x20] sm:$0xff]
    %v2208 = vld [vmem:[#allocation2 + $0x28] sm:$0xff]
    %v2209 = vld [vmem:[#allocation2 + $0x30] sm:$0xff]
    %v2210 = vld [vmem:[#allocation2 + $0x38] sm:$0xff]
    %v2211 = vld [vmem:[#allocation3 + $0x98] sm:$0xff]
    %v2212 = vld [vmem:[#allocation3 + $0xa0] sm:$0xff]
    %v2213 = vld [vmem:[#allocation3 + $0xa8] sm:$0xff]
    %v2214 = vld [vmem:[#allocation3 + $0xb0] sm:$0xff]
    %v2215 = vld [vmem:[#allocation3 + $0xb8] sm:$0xff]
    %v2216 = vld [vmem:[#allocation3 + $0xc0] sm:$0xff]
    %v2217 = vld [vmem:[#allocation3 + $0xc8] sm:$0xff]
    %v2218 = vld [vmem:[#allocation3 + $0xd0] sm:$0xff]
    %v2219 = vld [vmem:[#allocation3 + $0xd8] sm:$0xff]
    %v2220 = vld [vmem:[#allocation3 + $0xe0] sm:$0xff]
    %v2221 = vld [vmem:[#allocation3 + $0xe8] sm:$0xff]
    %v2222 = vld [vmem:[#allocation3 + $0xf0] sm:$0xff]
    %v2223 = vld [vmem:[#allocation3 + $0xf8] sm:$0xff]
    %v2224 = vld [vmem:[#allocation3 + $0x100] sm:$0xff]
    %v2225 = vld [vmem:[#allocation3 + $0x108] sm:$0xff]
    %v2226 = vld [vmem:[#allocation3 + $0x110] sm:$0xff]
    %v2227 = vld [vmem:[#allocation3 + $0x118] sm:$0x1]
    %v2228 = vperm.slane %v2227, 0
    %2229 = vmatpush.msra.mxu0 %v2226
    %2230 = vmatpush.msra.mxu0 %v2225
    %2231 = vmatpush.msra.mxu0 %v2224
    %2232 = vmatpush.msra.mxu0 %v2223
    %2233 = vmatpush.msra.mxu0 %v2222
    %2234 = vmatpush.msra.mxu0 %v2221
    %2235 = vmatpush.msra.mxu0 %v2220
    %2236 = vmatpush.msra.mxu0 %v2219
    %2237 = vmatpush.msra.mxu0 %v2218
    %2238 = vmatpush.msra.mxu0 %v2217
    %2239 = vmatpush.msra.mxu0 %v2216
    %2240 = vmatpush.msra.mxu0 %v2215
    %2241 = vmatpush.msra.mxu0 %v2214
    %2242 = vmatpush.msra.mxu0 %v2213
    %2243 = vmatpush.msra.mxu0 %v2212
    %2244 = vmatpush.msra.mxu0 %v2211
    %2245 = vmatmul.f32.gmra.mxu0 %v2203
    %v2246 = vpop.f32.mrf.mxu0
    %v2247 = vadd.f32 %v2228, %v2246
    %2248 = vmatmul.f32.gmra.mxu0 %v2204
    %v2249 = vpop.f32.mrf.mxu0
    %v2250 = vadd.f32 %v2228, %v2249
    %2251 = vmatmul.f32.gmra.mxu0 %v2205
    %v2252 = vpop.f32.mrf.mxu0
    %v2253 = vadd.f32 %v2228, %v2252
    %2254 = vmatmul.f32.gmra.mxu0 %v2206
    %v2255 = vpop.f32.mrf.mxu0
    %v2256 = vadd.f32 %v2228, %v2255
    %2257 = vmatmul.f32.gmra.mxu0 %v2207
    %v2258 = vpop.f32.mrf.mxu0
    %v2259 = vadd.f32 %v2228, %v2258
    %2260 = vmatmul.f32.gmra.mxu0 %v2208
    %v2261 = vpop.f32.mrf.mxu0
    %v2262 = vadd.f32 %v2228, %v2261
    %2263 = vmatmul.f32.gmra.mxu0 %v2209
    %v2264 = vpop.f32.mrf.mxu0
    %v2265 = vadd.f32 %v2228, %v2264
    %2266 = vmatmul.f32.gmra.mxu0 %v2210
    %v2267 = vpop.f32.mrf.mxu0
    %v2268 = vadd.f32 %v2228, %v2267
    %2269 = vdwg.mxu0
    %v2270 = vmax.f32 %v2247, 0.0
    %v2271 = vmax.f32 %v2250, 0.0
    %v2272 = vmax.f32 %v2253, 0.0
    %v2273 = vmax.f32 %v2256, 0.0
    %v2274 = vmax.f32 %v2259, 0.0
    %v2275 = vmax.f32 %v2262, 0.0
    %v2276 = vmax.f32 %v2265, 0.0
    %v2277 = vmax.f32 %v2268, 0.0
    %v2278 = vld [vmem:[#allocation3 + $0x120] sm:$0xff]
    %v2279 = vld [vmem:[#allocation3 + $0x128] sm:$0xff]
    %v2280 = vld [vmem:[#allocation3 + $0x130] sm:$0xff]
    %v2281 = vld [vmem:[#allocation3 + $0x138] sm:$0xff]
    %v2282 = vld [vmem:[#allocation3 + $0x140] sm:$0xff]
    %v2283 = vld [vmem:[#allocation3 + $0x148] sm:$0xff]
    %v2284 = vld [vmem:[#allocation3 + $0x150] sm:$0xff]
    %v2285 = vld [vmem:[#allocation3 + $0x158] sm:$0xff]
    %v2286 = vld [vmem:[#allocation3 + $0x160] sm:$0xff]
    %v2287 = vld [vmem:[#allocation3 + $0x168] sm:$0xff]
    %v2288 = vld [vmem:[#allocation3 + $0x170] sm:$0xff]
    %v2289 = vld [vmem:[#allocation3 + $0x178] sm:$0xff]
    %v2290 = vld [vmem:[#allocation3 + $0x180] sm:$0xff]
    %v2291 = vld [vmem:[#allocation3 + $0x188] sm:$0xff]
    %v2292 = vld [vmem:[#allocation3 + $0x190] sm:$0xff]
    %v2293 = vld [vmem:[#allocation3 + $0x198] sm:$0xff]
    %v2294 = vld [vmem:[#allocation3 + $0x1a0] sm:$0x1]
    %v2295 = vperm.slane %v2294, 0
    %2296 = vmatpush.msra.mxu0 %v2293
    %2297 = vmatpush.msra.mxu0 %v2292
    %2298 = vmatpush.msra.mxu0 %v2291
    %2299 = vmatpush.msra.mxu0 %v2290
    %2300 = vmatpush.msra.mxu0 %v2289
    %2301 = vmatpush.msra.mxu0 %v2288
    %2302 = vmatpush.msra.mxu0 %v2287
    %2303 = vmatpush.msra.mxu0 %v2286
    %2304 = vmatpush.msra.mxu0 %v2285
    %2305 = vmatpush.msra.mxu0 %v2284
    %2306 = vmatpush.msra.mxu0 %v2283
    %2307 = vmatpush.msra.mxu0 %v2282
    %2308 = vmatpush.msra.mxu0 %v2281
    %2309 = vmatpush.msra.mxu0 %v2280
    %2310 = vmatpush.msra.mxu0 %v2279
    %2311 = vmatpush.msra.mxu0 %v2278
    %2312 = vmatmul.f32.gmra.mxu0 %v2270
    %v2313 = vpop.f32.mrf.mxu0
    %v2314 = vadd.f32 %v2295, %v2313
    %2315 = vmatmul.f32.gmra.mxu0 %v2271
    %v2316 = vpop.f32.mrf.mxu0
    %v2317 = vadd.f32 %v2295, %v2316
    %2318 = vmatmul.f32.gmra.mxu0 %v2272
    %v2319 = vpop.f32.mrf.mxu0
    %v2320 = vadd.f32 %v2295, %v2319
    %2321 = vmatmul.f32.gmra.mxu0 %v2273
    %v2322 = vpop.f32.mrf.mxu0
    %v2323 = vadd.f32 %v2295, %v2322
    %2324 = vmatmul.f32.gmra.mxu0 %v2274
    %v2325 = vpop.f32.mrf.mxu0
    %v2326 = vadd.f32 %v2295, %v2325
    %2327 = vmatmul.f32.gmra.mxu0 %v2275
    %v2328 = vpop.f32.mrf.mxu0
    %v2329 = vadd.f32 %v2295, %v2328
    %2330 = vmatmul.f32.gmra.mxu0 %v2276
    %v2331 = vpop.f32.mrf.mxu0
    %v2332 = vadd.f32 %v2295, %v2331
    %2333 = vmatmul.f32.gmra.mxu0 %v2277
    %v2334 = vpop.f32.mrf.mxu0
    %v2335 = vadd.f32 %v2295, %v2334
    %2336 = vdwg.mxu0
    %2337 = vst [vmem:[%s3] sm:$0xff] %v2314
    %2338 = vst [vmem:[%s3 + $0x8] sm:$0xff] %v2317
    %2339 = vst [vmem:[%s3 + $0x10] sm:$0xff] %v2320
    %2340 = vst [vmem:[%s3 + $0x18] sm:$0xff] %v2323
    %2341 = vst [vmem:[%s3 + $0x20] sm:$0xff] %v2326
    %2342 = vst [vmem:[%s3 + $0x28] sm:$0xff] %v2329
    %2343 = vst [vmem:[%s3 + $0x30] sm:$0xff] %v2332
    %2344 = vst [vmem:[%s3 + $0x38] sm:$0xff] %v2335
    // Predicated region
    $region22: #{fwd.1} parent=1 // pred_check
      _
    $region23: #{fwd.1} parent=1 // pred_check_branch
      %2346 = sbr.rel (0) target = $region25
    $region24: #{fwd.1} parent=1 // pred_region
      _
    $region25: #{fwd.1} parent=1 // pred_fallthru
      _
    // Predicated region
    $region26: #{fwd.1} parent=1 // pred_check
      _
    $region27: #{fwd.1} parent=1 // pred_check_branch
      %2348 = sbr.rel (0) target = $region29
    $region28: #{fwd.1} parent=1 // pred_region
      _
    $region29: #{fwd.1} parent=1 // pred_fallthru
      _
    %2349 = vsyncpa [#allocation4], 1
    %2350 = vsyncpa [#allocation6], 1

</llo_original>
